<compile_context>
chip_gen: v5e
topology: v5e:2x2
jax: 0.10.0
libtpu: 0.0.40
codegen_flags: <defaults>
</compile_context>

<pallas_src>
from functools import partial

import jax
import jax.numpy as jnp
from jax.experimental import pallas as pl
from jax.experimental.pallas import tpu as pltpu

PAD = 7          # max dilation among the branches -> single shared spatial padding
NUM_TAPS = 28    # 1 (1x1 branch) + 3 dilated 3x3 branches * 9 taps


def _tap_offsets():
    offs = [(0, 0)]                              # branch1: 1x1 conv, center tap
    for d in (3, 5, 7):                          # branches 2..4: 3x3 dilated convs
        for kh in range(3):
            for kw in range(3):
                offs.append((d * (kh - 1), d * (kw - 1)))
    return offs


def _vmem_capacity_bytes():
    """Generation-aware VMEM capacity with a conservative (v7x) fallback."""
    try:
        cap = int(pltpu.get_tpu_info().vmem_capacity_bytes)
        if cap > 0:
            return cap
    except Exception:
        pass
    return 64 * 1024 * 1024


def _pick_row_tile(H, max_rows):
    """Largest multiple of 8 that divides H and is <= max_rows; else the full H
    (a full-extent block is always legal under the (8,128) rule)."""
    t = min(H, max_rows)
    t -= t % 8
    while t >= 8:
        if H % t == 0:
            return t
        t -= 8
    return H


# ---------------------------- parameter folding -----------------------------

def fold_params(tp):
    """Fold the final 1x1 conv (wf, bf) into every branch tap: the module becomes
    z = bias + sum_{tap t, channel c} w[t, c] * x_shifted_by_tap_t[c], sigmoid(z).
    Returns a flat (28*C + 1,) f32 vector, tap-major / channel-inner, bias last —
    this goes to SMEM and is read as scalars inside the kernel."""
    C = tp['w1'].shape[0]
    wf = tp['wf'][0, :, 0, 0]                                       # (4C,)
    segs = [jnp.einsum('o,oi->i', wf[0:C], tp['w1'][:, :, 0, 0])]   # tap (0,0)
    for i, name in enumerate(('w2', 'w3', 'w4'), start=1):
        wfi = wf[i * C:(i + 1) * C]
        # (O, I, KH, KW) -> per-tap folded weight, (KH, KW, I) row-major
        segs.append(jnp.einsum('o,oikl->kli', wfi, tp[name]).reshape(9 * C))
    bias = tp['bf'][0]
    for i, bname in enumerate(('b1', 'b2', 'b3', 'b4')):
        bias = bias + jnp.dot(wf[i * C:(i + 1) * C], tp[bname])
    return jnp.concatenate(segs + [bias[None]]).astype(jnp.float32)  # (28C + 1,)


# ------------------------------ kernel bodies -------------------------------

def _tap_accumulate(x_view, w_sref, *, C, TH, W, row_base):
    """Accumulate the 28*C folded taps for one (TH, W) row band on the VPU.

    x_view : (C, rows, Wp) VMEM ref view of the zero-padded input
    w_sref : (28*C + 1,) f32 SMEM ref (tap-major, channel-inner; last = bias)
    """
    acc0 = jnp.zeros((TH, W), jnp.float32)     # two accumulators -> shorter
    acc1 = jnp.zeros((TH, W), jnp.float32)     # VALU dependency chains
    idx = 0
    for (dh, dw) in _tap_offsets():
        row0 = row_base + PAD + dh
        col0 = PAD + dw
        for c in range(C):
            patch = x_view[c, pl.ds(row0, TH), pl.ds(col0, W)].astype(jnp.float32)
            term = w_sref[idx] * patch
            if idx % 2 == 0:
                acc0 = acc0 + term
            else:
                acc1 = acc1 + term
            idx += 1
    return acc0 + acc1 + w_sref[NUM_TAPS * C]


def _rfb_resident_kernel(w_sref, x_ref, o_ref, *, C, TH, W):
    # w_sref: (28*C+1,) SMEM     folded weights + bias (scalars)
    # x_ref : (1, C, Hp, Wp)     whole padded image, VMEM-resident across row tiles
    # o_ref : (1, TH, W)         lane-dense output row band
    r = pl.program_id(1)
    row_base = r * TH
    if TH % 8 == 0:
        row_base = pl.multiple_of(row_base, 8)
    acc = _tap_accumulate(x_ref.at[0], w_sref, C=C, TH=TH, W=W, row_base=row_base)
    o_ref[0] = jax.nn.sigmoid(acc).astype(o_ref.dtype)


def _rfb_band_kernel(w_sref, x_hbm, o_ref, xbuf, sem, *, C, TH, W):
    # Large-image path: manual double-buffered halo-band DMA from HBM.
    # x_hbm: (N, C, Hp, Wp) raw HBM ref (memory_space=pl.ANY)
    # xbuf : (2, C, TH+2*PAD, Wp) VMEM scratch (two band slots)
    n = pl.program_id(0)
    r = pl.program_id(1)
    num_r = pl.num_programs(1)
    band_rows = TH + 2 * PAD

    def band_copy(rr, slot):
        return pltpu.make_async_copy(
            x_hbm.at[n, :, pl.ds(rr * TH, band_rows), :],
            xbuf.at[slot],
            sem.at[slot])

    slot = r % 2

    @pl.when(r == 0)                 # prime the pipeline at the start of each batch
    def _():
        band_copy(0, 0).start()

    band_copy(r, slot).wait()        # band for this step (prime or prior prefetch)

    @pl.when(r + 1 < num_r)          # prefetch the next band within the same batch
    def _():
        band_copy(r + 1, 1 - slot).start()

    acc = _tap_accumulate(xbuf.at[slot], w_sref, C=C, TH=TH, W=W, row_base=0)
    o_ref[0] = jax.nn.sigmoid(acc).astype(o_ref.dtype)


# --------------------------------- wrapper ----------------------------------

@partial(jax.jit, static_argnames=("use_bf16", "max_input_block_bytes"))
def rfb_s_forward(x_nchw, torch_params, *, use_bf16=False, max_input_block_bytes=None):
    """x_nchw: (N, C, H, W) float32 -> attention map (N, 1, H, W) float32."""
    N, C, H, W = x_nchw.shape
    Hp, Wp = H + 2 * PAD, W + 2 * PAD
    in_dtype = jnp.bfloat16 if use_bf16 else jnp.float32
    itemsize = jnp.dtype(in_dtype).itemsize

    xp = jnp.pad(x_nchw.astype(jnp.float32),
                 ((0, 0), (0, 0), (PAD, PAD), (PAD, PAD))).astype(in_dtype)
    wvec = fold_params(torch_params)                       # (28*C + 1,) f32 -> SMEM

    vmem_cap = _vmem_capacity_bytes()
    input_budget = (vmem_cap // 3 if max_input_block_bytes is None
                    else int(max_input_block_bytes))

    img_bytes = C * Hp * Wp * itemsize
    use_resident = 2 * img_bytes <= input_budget           # 2x: double-buffered input

    if use_resident:
        # Prefer >= 2 row tiles (keeps both v7x TensorCores busy even at N == 1)
        # while keeping per-step elementwise temporaries modest.
        max_rows = H if H < 16 else min(64, max(8, H // 2))
        TH = _pick_row_tile(H, max_rows)
    else:
        th_cap = input_budget // max(1, 2 * C * Wp * itemsize) - 2 * PAD
        TH = _pick_row_tile(H, min(H, max(8, min(th_cap, 128))))
    R = H // TH
    band_rows = TH + 2 * PAD

    out_block_bytes = TH * W * 4
    if use_resident:
        vmem_need = 2 * img_bytes + 2 * out_block_bytes
    else:
        vmem_need = 2 * C * band_rows * Wp * itemsize + 2 * out_block_bytes
    vmem_limit = int(min(max(2 * vmem_need + (4 << 20), 32 << 20),
                         max(vmem_cap - (8 << 20), 32 << 20)))

    cost = pl.CostEstimate(
        flops=2 * NUM_TAPS * C * N * H * W,
        transcendentals=N * H * W,
        bytes_accessed=N * img_bytes + N * H * W * 4 + int(wvec.size) * 4)

    w_spec = pl.BlockSpec(memory_space=pltpu.MemorySpace.SMEM)
    out_spec = pl.BlockSpec((1, TH, W), lambda n, r: (n, r, 0))
    out_shape = jax.ShapeDtypeStruct((N, H, W), jnp.float32)

    if use_resident:
        out = pl.pallas_call(
            partial(_rfb_resident_kernel, C=C, TH=TH, W=W),
            out_shape=out_shape,
            grid=(N, R),
            in_specs=[w_spec,
                      # Constant block index over r -> padded image stays resident.
                      pl.BlockSpec((1, C, Hp, Wp), lambda n, r: (n, 0, 0, 0))],
            out_specs=out_spec,
            compiler_params=pltpu.CompilerParams(
                dimension_semantics=("parallel", "parallel"),
                vmem_limit_bytes=vmem_limit),
            cost_estimate=cost,
        )(wvec, xp)
    else:
        out = pl.pallas_call(
            partial(_rfb_band_kernel, C=C, TH=TH, W=W),
            out_shape=out_shape,
            grid=(N, R),
            in_specs=[w_spec, pl.BlockSpec(memory_space=pl.ANY)],
            out_specs=out_spec,
            scratch_shapes=[pltpu.VMEM((2, C, band_rows, Wp), xp.dtype),
                            pltpu.SemaphoreType.DMA((2,))],
            compiler_params=pltpu.CompilerParams(
                # Row axis is "arbitrary": the manual prefetch chain relies on
                # sequential execution of row tiles within one batch element.
                dimension_semantics=("parallel", "arbitrary"),
                vmem_limit_bytes=vmem_limit),
            cost_estimate=cost,
        )(wvec, xp)

    return out.reshape(N, 1, H, W)


# ------------------- deterministic init + pure-JAX reference ----------------

def init_params(key, C):
    ks = jax.random.split(key, 10)
    s = 0.1
    return {
        'w1': jax.random.normal(ks[0], (C, C, 1, 1), jnp.float32) * s,
        'w2': jax.random.normal(ks[1], (C, C, 3, 3), jnp.float32) * s,
        'w3': jax.random.normal(ks[2], (C, C, 3, 3), jnp.float32) * s,
        'w4': jax.random.normal(ks[3], (C, C, 3, 3), jnp.float32) * s,
        'wf': jax.random.normal(ks[4], (1, 4 * C, 1, 1), jnp.float32) * s,
        'b1': jax.random.normal(ks[5], (C,), jnp.float32) * s,
        'b2': jax.random.normal(ks[6], (C,), jnp.float32) * s,
        'b3': jax.random.normal(ks[7], (C,), jnp.float32) * s,
        'b4': jax.random.normal(ks[8], (C,), jnp.float32) * s,
        'bf': jax.random.normal(ks[9], (1,), jnp.float32) * s,
    }


def ref_forward(x, tp):
    def conv(inp, w, b, dil, pad):
        y = jax.lax.conv_general_dilated(
            inp, w, window_strides=(1, 1), padding=[(pad, pad), (pad, pad)],
            rhs_dilation=(dil, dil),
            dimension_numbers=('NCHW', 'OIHW', 'NCHW'))
        return y + b.reshape(1, -1, 1, 1)

    br1 = conv(x, tp['w1'], tp['b1'], 1, 0)
    br2 = conv(x, tp['w2'], tp['b2'], 3, 3)
    br3 = conv(x, tp['w3'], tp['b3'], 5, 5)
    br4 = conv(x, tp['w4'], tp['b4'], 7, 7)
    cat = jnp.concatenate([br1, br2, br3, br4], axis=1)
    z = conv(cat, tp['wf'], tp['bf'], 1, 0)
    return jax.nn.sigmoid(z)


if __name__ == "__main__":
    key = jax.random.PRNGKey(0)
    k_x, k_p = jax.random.split(key)

    N, C, H, W = 2, 4, 16, 16
    x = jax.random.normal(k_x, (N, C, H, W), jnp.float32)
    torch_params = init_params(k_p, C)

    ref = ref_forward(x, torch_params)

    # Primary path: VMEM-resident padded image, in-kernel tap gather.
    out = jax.block_until_ready(rfb_s_forward(x, torch_params))
    assert out.shape == (N, 1, H, W), out.shape
    assert jnp.allclose(out, ref, atol=1e-4, rtol=1e-4), \
        f"max abs diff = {jnp.max(jnp.abs(out - ref))}"

    # Large-image fallback: force the double-buffered halo-band DMA path so it is
    # exercised (and checked) at this small shape too.
    out_band = jax.block_until_ready(
        rfb_s_forward(x, torch_params, max_input_block_bytes=1024))
    assert out_band.shape == (N, 1, H, W), out_band.shape
    assert jnp.allclose(out_band, ref, atol=1e-4, rtol=1e-4), \
        f"max abs diff (band path) = {jnp.max(jnp.abs(out_band - ref))}"

    print("KERNEL_OK")
</pallas_src>

<mosaic_0001>
module attributes {stable_mosaic.version = 11 : i64} {
  func.func @_rfb_resident_kernel(%arg0: i32, %arg1: i32, %arg2: memref<113xf32, #tpu.memory_space<smem>>, %arg3: memref<1x4x30x30xf32, #tpu.memory_space<vmem>>, %arg4: memref<1x8x16xf32, #tpu.memory_space<vmem>>) attributes {dimension_semantics = [#tpu.dimension_semantics<parallel>, #tpu.dimension_semantics<parallel>], iteration_bounds = array<i64: 2, 2>, scalar_prefetch = 0 : i64, scratch_operands = 0 : i64, tpu.core_type = #tpu.core_type<tc>, window_params = [{transform_indices = @transform_0, window_bounds = array<i64: 113>}, {transform_indices = @transform_1, window_bounds = array<i64: 1, 4, 30, 30>}, {transform_indices = @transform_2, window_bounds = array<i64: 1, 8, 16>}]} {
    %c8_i32 = arith.constant 8 : i32
    %0 = arith.muli %arg1, %c8_i32 : i32
    %1 = tpu.assume_multiple %0, 8 : i32
    %cst = arith.constant 0.000000e+00 : f32
    %2 = vector.broadcast %cst : f32 to vector<8x16xf32>
    %cst_0 = arith.constant 0.000000e+00 : f32
    %3 = vector.broadcast %cst_0 : f32 to vector<8x16xf32>
    %c7_i32 = arith.constant 7 : i32
    %4 = arith.addi %1, %c7_i32 : i32
    %c0_i32 = arith.constant 0 : i32
    %5 = arith.addi %4, %c0_i32 : i32
    %c0_i32_1 = arith.constant 0 : i32
    %c0_i32_2 = arith.constant 0 : i32
    %c0_i32_3 = arith.constant 0 : i32
    %c0_i32_4 = arith.constant 0 : i32
    %6 = tpu.memref_slice %arg3[%c0_i32_1, %c0_i32_2, %c0_i32_3, %c0_i32_4] : memref<1x4x30x30xf32, #tpu.memory_space<vmem>> -> memref<1x4x30x30xf32, #tpu.memory_space<vmem>>
    %7 = tpu.memref_squeeze %6 : memref<1x4x30x30xf32, #tpu.memory_space<vmem>> -> memref<4x30x30xf32, #tpu.memory_space<vmem>>
    %c0 = arith.constant 0 : index
    %8 = arith.index_cast %5 : i32 to index
    %c7 = arith.constant 7 : index
    %9 = vector.load %7[%c0, %8, %c7] : memref<4x30x30xf32, #tpu.memory_space<vmem>>, vector<1x8x16xf32>
    %10 = vector.shape_cast %9 : vector<1x8x16xf32> to vector<8x16xf32>
    %c0_5 = arith.constant 0 : index
    %11 = memref.load %arg2[%c0_5] : memref<113xf32, #tpu.memory_space<smem>>
    %12 = vector.broadcast %11 : f32 to vector<8x16xf32>
    %13 = arith.mulf %12, %10 : vector<8x16xf32>
    %14 = arith.addf %2, %13 : vector<8x16xf32>
    %c0_i32_6 = arith.constant 0 : i32
    %c0_i32_7 = arith.constant 0 : i32
    %c0_i32_8 = arith.constant 0 : i32
    %c0_i32_9 = arith.constant 0 : i32
    %15 = tpu.memref_slice %arg3[%c0_i32_6, %c0_i32_7, %c0_i32_8, %c0_i32_9] : memref<1x4x30x30xf32, #tpu.memory_space<vmem>> -> memref<1x4x30x30xf32, #tpu.memory_space<vmem>>
    %16 = tpu.memref_squeeze %15 : memref<1x4x30x30xf32, #tpu.memory_space<vmem>> -> memref<4x30x30xf32, #tpu.memory_space<vmem>>
    %c1 = arith.constant 1 : index
    %17 = arith.index_cast %5 : i32 to index
    %c7_10 = arith.constant 7 : index
    %18 = vector.load %16[%c1, %17, %c7_10] : memref<4x30x30xf32, #tpu.memory_space<vmem>>, vector<1x8x16xf32>
    %19 = vector.shape_cast %18 : vector<1x8x16xf32> to vector<8x16xf32>
    %c1_11 = arith.constant 1 : index
    %20 = memref.load %arg2[%c1_11] : memref<113xf32, #tpu.memory_space<smem>>
    %21 = vector.broadcast %20 : f32 to vector<8x16xf32>
    %22 = arith.mulf %21, %19 : vector<8x16xf32>
    %23 = arith.addf %3, %22 : vector<8x16xf32>
    %c0_i32_12 = arith.constant 0 : i32
    %c0_i32_13 = arith.constant 0 : i32
    %c0_i32_14 = arith.constant 0 : i32
    %c0_i32_15 = arith.constant 0 : i32
    %24 = tpu.memref_slice %arg3[%c0_i32_12, %c0_i32_13, %c0_i32_14, %c0_i32_15] : memref<1x4x30x30xf32, #tpu.memory_space<vmem>> -> memref<1x4x30x30xf32, #tpu.memory_space<vmem>>
    %25 = tpu.memref_squeeze %24 : memref<1x4x30x30xf32, #tpu.memory_space<vmem>> -> memref<4x30x30xf32, #tpu.memory_space<vmem>>
    %c2 = arith.constant 2 : index
    %26 = arith.index_cast %5 : i32 to index
    %c7_16 = arith.constant 7 : index
    %27 = vector.load %25[%c2, %26, %c7_16] : memref<4x30x30xf32, #tpu.memory_space<vmem>>, vector<1x8x16xf32>
    %28 = vector.shape_cast %27 : vector<1x8x16xf32> to vector<8x16xf32>
    %c2_17 = arith.constant 2 : index
    %29 = memref.load %arg2[%c2_17] : memref<113xf32, #tpu.memory_space<smem>>
    %30 = vector.broadcast %29 : f32 to vector<8x16xf32>
    %31 = arith.mulf %30, %28 : vector<8x16xf32>
    %32 = arith.addf %14, %31 : vector<8x16xf32>
    %c0_i32_18 = arith.constant 0 : i32
    %c0_i32_19 = arith.constant 0 : i32
    %c0_i32_20 = arith.constant 0 : i32
    %c0_i32_21 = arith.constant 0 : i32
    %33 = tpu.memref_slice %arg3[%c0_i32_18, %c0_i32_19, %c0_i32_20, %c0_i32_21] : memref<1x4x30x30xf32, #tpu.memory_space<vmem>> -> memref<1x4x30x30xf32, #tpu.memory_space<vmem>>
    %34 = tpu.memref_squeeze %33 : memref<1x4x30x30xf32, #tpu.memory_space<vmem>> -> memref<4x30x30xf32, #tpu.memory_space<vmem>>
    %c3 = arith.constant 3 : index
    %35 = arith.index_cast %5 : i32 to index
    %c7_22 = arith.constant 7 : index
    %36 = vector.load %34[%c3, %35, %c7_22] : memref<4x30x30xf32, #tpu.memory_space<vmem>>, vector<1x8x16xf32>
    %37 = vector.shape_cast %36 : vector<1x8x16xf32> to vector<8x16xf32>
    %c3_23 = arith.constant 3 : index
    %38 = memref.load %arg2[%c3_23] : memref<113xf32, #tpu.memory_space<smem>>
    %39 = vector.broadcast %38 : f32 to vector<8x16xf32>
    %40 = arith.mulf %39, %37 : vector<8x16xf32>
    %41 = arith.addf %23, %40 : vector<8x16xf32>
    %c7_i32_24 = arith.constant 7 : i32
    %42 = arith.addi %1, %c7_i32_24 : i32
    %c-3_i32 = arith.constant -3 : i32
    %43 = arith.addi %42, %c-3_i32 : i32
    %c0_i32_25 = arith.constant 0 : i32
    %c0_i32_26 = arith.constant 0 : i32
    %c0_i32_27 = arith.constant 0 : i32
    %c0_i32_28 = arith.constant 0 : i32
    %44 = tpu.memref_slice %arg3[%c0_i32_25, %c0_i32_26, %c0_i32_27, %c0_i32_28] : memref<1x4x30x30xf32, #tpu.memory_space<vmem>> -> memref<1x4x30x30xf32, #tpu.memory_space<vmem>>
    %45 = tpu.memref_squeeze %44 : memref<1x4x30x30xf32, #tpu.memory_space<vmem>> -> memref<4x30x30xf32, #tpu.memory_space<vmem>>
    %c0_29 = arith.constant 0 : index
    %46 = arith.index_cast %43 : i32 to index
    %c4 = arith.constant 4 : index
    %47 = vector.load %45[%c0_29, %46, %c4] : memref<4x30x30xf32, #tpu.memory_space<vmem>>, vector<1x8x16xf32>
    %48 = vector.shape_cast %47 : vector<1x8x16xf32> to vector<8x16xf32>
    %c4_30 = arith.constant 4 : index
    %49 = memref.load %arg2[%c4_30] : memref<113xf32, #tpu.memory_space<smem>>
    %50 = vector.broadcast %49 : f32 to vector<8x16xf32>
    %51 = arith.mulf %50, %48 : vector<8x16xf32>
    %52 = arith.addf %32, %51 : vector<8x16xf32>
    %c0_i32_31 = arith.constant 0 : i32
    %c0_i32_32 = arith.constant 0 : i32
    %c0_i32_33 = arith.constant 0 : i32
    %c0_i32_34 = arith.constant 0 : i32
    %53 = tpu.memref_slice %arg3[%c0_i32_31, %c0_i32_32, %c0_i32_33, %c0_i32_34] : memref<1x4x30x30xf32, #tpu.memory_space<vmem>> -> memref<1x4x30x30xf32, #tpu.memory_space<vmem>>
    %54 = tpu.memref_squeeze %53 : memref<1x4x30x30xf32, #tpu.memory_space<vmem>> -> memref<4x30x30xf32, #tpu.memory_space<vmem>>
    %c1_35 = arith.constant 1 : index
    %55 = arith.index_cast %43 : i32 to index
    %c4_36 = arith.constant 4 : index
    %56 = vector.load %54[%c1_35, %55, %c4_36] : memref<4x30x30xf32, #tpu.memory_space<vmem>>, vector<1x8x16xf32>
    %57 = vector.shape_cast %56 : vector<1x8x16xf32> to vector<8x16xf32>
    %c5 = arith.constant 5 : index
    %58 = memref.load %arg2[%c5] : memref<113xf32, #tpu.memory_space<smem>>
    %59 = vector.broadcast %58 : f32 to vector<8x16xf32>
    %60 = arith.mulf %59, %57 : vector<8x16xf32>
    %61 = arith.addf %41, %60 : vector<8x16xf32>
    %c0_i32_37 = arith.constant 0 : i32
    %c0_i32_38 = arith.constant 0 : i32
    %c0_i32_39 = arith.constant 0 : i32
    %c0_i32_40 = arith.constant 0 : i32
    %62 = tpu.memref_slice %arg3[%c0_i32_37, %c0_i32_38, %c0_i32_39, %c0_i32_40] : memref<1x4x30x30xf32, #tpu.memory_space<vmem>> -> memref<1x4x30x30xf32, #tpu.memory_space<vmem>>
    %63 = tpu.memref_squeeze %62 : memref<1x4x30x30xf32, #tpu.memory_space<vmem>> -> memref<4x30x30xf32, #tpu.memory_space<vmem>>
    %c2_41 = arith.constant 2 : index
    %64 = arith.index_cast %43 : i32 to index
    %c4_42 = arith.constant 4 : index
    %65 = vector.load %63[%c2_41, %64, %c4_42] : memref<4x30x30xf32, #tpu.memory_space<vmem>>, vector<1x8x16xf32>
    %66 = vector.shape_cast %65 : vector<1x8x16xf32> to vector<8x16xf32>
    %c6 = arith.constant 6 : index
    %67 = memref.load %arg2[%c6] : memref<113xf32, #tpu.memory_space<smem>>
    %68 = vector.broadcast %67 : f32 to vector<8x16xf32>
    %69 = arith.mulf %68, %66 : vector<8x16xf32>
    %70 = arith.addf %52, %69 : vector<8x16xf32>
    %c0_i32_43 = arith.constant 0 : i32
    %c0_i32_44 = arith.constant 0 : i32
    %c0_i32_45 = arith.constant 0 : i32
    %c0_i32_46 = arith.constant 0 : i32
    %71 = tpu.memref_slice %arg3[%c0_i32_43, %c0_i32_44, %c0_i32_45, %c0_i32_46] : memref<1x4x30x30xf32, #tpu.memory_space<vmem>> -> memref<1x4x30x30xf32, #tpu.memory_space<vmem>>
    %72 = tpu.memref_squeeze %71 : memref<1x4x30x30xf32, #tpu.memory_space<vmem>> -> memref<4x30x30xf32, #tpu.memory_space<vmem>>
    %c3_47 = arith.constant 3 : index
    %73 = arith.index_cast %43 : i32 to index
    %c4_48 = arith.constant 4 : index
    %74 = vector.load %72[%c3_47, %73, %c4_48] : memref<4x30x30xf32, #tpu.memory_space<vmem>>, vector<1x8x16xf32>
    %75 = vector.shape_cast %74 : vector<1x8x16xf32> to vector<8x16xf32>
    %c7_49 = arith.constant 7 : index
    %76 = memref.load %arg2[%c7_49] : memref<113xf32, #tpu.memory_space<smem>>
    %77 = vector.broadcast %76 : f32 to vector<8x16xf32>
    %78 = arith.mulf %77, %75 : vector<8x16xf32>
    %79 = arith.addf %61, %78 : vector<8x16xf32>
    %c7_i32_50 = arith.constant 7 : i32
    %80 = arith.addi %1, %c7_i32_50 : i32
    %c-3_i32_51 = arith.constant -3 : i32
    %81 = arith.addi %80, %c-3_i32_51 : i32
    %c0_i32_52 = arith.constant 0 : i32
    %c0_i32_53 = arith.constant 0 : i32
    %c0_i32_54 = arith.constant 0 : i32
    %c0_i32_55 = arith.constant 0 : i32
    %82 = tpu.memref_slice %arg3[%c0_i32_52, %c0_i32_53, %c0_i32_54, %c0_i32_55] : memref<1x4x30x30xf32, #tpu.memory_space<vmem>> -> memref<1x4x30x30xf32, #tpu.memory_space<vmem>>
    %83 = tpu.memref_squeeze %82 : memref<1x4x30x30xf32, #tpu.memory_space<vmem>> -> memref<4x30x30xf32, #tpu.memory_space<vmem>>
    %c0_56 = arith.constant 0 : index
    %84 = arith.index_cast %81 : i32 to index
    %c7_57 = arith.constant 7 : index
    %85 = vector.load %83[%c0_56, %84, %c7_57] : memref<4x30x30xf32, #tpu.memory_space<vmem>>, vector<1x8x16xf32>
    %86 = vector.shape_cast %85 : vector<1x8x16xf32> to vector<8x16xf32>
    %c8 = arith.constant 8 : index
    %87 = memref.load %arg2[%c8] : memref<113xf32, #tpu.memory_space<smem>>
    %88 = vector.broadcast %87 : f32 to vector<8x16xf32>
    %89 = arith.mulf %88, %86 : vector<8x16xf32>
    %90 = arith.addf %70, %89 : vector<8x16xf32>
    %c0_i32_58 = arith.constant 0 : i32
    %c0_i32_59 = arith.constant 0 : i32
    %c0_i32_60 = arith.constant 0 : i32
    %c0_i32_61 = arith.constant 0 : i32
    %91 = tpu.memref_slice %arg3[%c0_i32_58, %c0_i32_59, %c0_i32_60, %c0_i32_61] : memref<1x4x30x30xf32, #tpu.memory_space<vmem>> -> memref<1x4x30x30xf32, #tpu.memory_space<vmem>>
    %92 = tpu.memref_squeeze %91 : memref<1x4x30x30xf32, #tpu.memory_space<vmem>> -> memref<4x30x30xf32, #tpu.memory_space<vmem>>
    %c1_62 = arith.constant 1 : index
    %93 = arith.index_cast %81 : i32 to index
    %c7_63 = arith.constant 7 : index
    %94 = vector.load %92[%c1_62, %93, %c7_63] : memref<4x30x30xf32, #tpu.memory_space<vmem>>, vector<1x8x16xf32>
    %95 = vector.shape_cast %94 : vector<1x8x16xf32> to vector<8x16xf32>
    %c9 = arith.constant 9 : index
    %96 = memref.load %arg2[%c9] : memref<113xf32, #tpu.memory_space<smem>>
    %97 = vector.broadcast %96 : f32 to vector<8x16xf32>
    %98 = arith.mulf %97, %95 : vector<8x16xf32>
    %99 = arith.addf %79, %98 : vector<8x16xf32>
    %c0_i32_64 = arith.constant 0 : i32
    %c0_i32_65 = arith.constant 0 : i32
    %c0_i32_66 = arith.constant 0 : i32
    %c0_i32_67 = arith.constant 0 : i32
    %100 = tpu.memref_slice %arg3[%c0_i32_64, %c0_i32_65, %c0_i32_66, %c0_i32_67] : memref<1x4x30x30xf32, #tpu.memory_space<vmem>> -> memref<1x4x30x30xf32, #tpu.memory_space<vmem>>
    %101 = tpu.memref_squeeze %100 : memref<1x4x30x30xf32, #tpu.memory_space<vmem>> -> memref<4x30x30xf32, #tpu.memory_space<vmem>>
    %c2_68 = arith.constant 2 : index
    %102 = arith.index_cast %81 : i32 to index
    %c7_69 = arith.constant 7 : index
    %103 = vector.load %101[%c2_68, %102, %c7_69] : memref<4x30x30xf32, #tpu.memory_space<vmem>>, vector<1x8x16xf32>
    %104 = vector.shape_cast %103 : vector<1x8x16xf32> to vector<8x16xf32>
    %c10 = arith.constant 10 : index
    %105 = memref.load %arg2[%c10] : memref<113xf32, #tpu.memory_space<smem>>
    %106 = vector.broadcast %105 : f32 to vector<8x16xf32>
    %107 = arith.mulf %106, %104 : vector<8x16xf32>
    %108 = arith.addf %90, %107 : vector<8x16xf32>
    %c0_i32_70 = arith.constant 0 : i32
    %c0_i32_71 = arith.constant 0 : i32
    %c0_i32_72 = arith.constant 0 : i32
    %c0_i32_73 = arith.constant 0 : i32
    %109 = tpu.memref_slice %arg3[%c0_i32_70, %c0_i32_71, %c0_i32_72, %c0_i32_73] : memref<1x4x30x30xf32, #tpu.memory_space<vmem>> -> memref<1x4x30x30xf32, #tpu.memory_space<vmem>>
    %110 = tpu.memref_squeeze %109 : memref<1x4x30x30xf32, #tpu.memory_space<vmem>> -> memref<4x30x30xf32, #tpu.memory_space<vmem>>
    %c3_74 = arith.constant 3 : index
    %111 = arith.index_cast %81 : i32 to index
    %c7_75 = arith.constant 7 : index
    %112 = vector.load %110[%c3_74, %111, %c7_75] : memref<4x30x30xf32, #tpu.memory_space<vmem>>, vector<1x8x16xf32>
    %113 = vector.shape_cast %112 : vector<1x8x16xf32> to vector<8x16xf32>
    %c11 = arith.constant 11 : index
    %114 = memref.load %arg2[%c11] : memref<113xf32, #tpu.memory_space<smem>>
    %115 = vector.broadcast %114 : f32 to vector<8x16xf32>
    %116 = arith.mulf %115, %113 : vector<8x16xf32>
    %117 = arith.addf %99, %116 : vector<8x16xf32>
    %c7_i32_76 = arith.constant 7 : i32
    %118 = arith.addi %1, %c7_i32_76 : i32
    %c-3_i32_77 = arith.constant -3 : i32
    %119 = arith.addi %118, %c-3_i32_77 : i32
    %c0_i32_78 = arith.constant 0 : i32
    %c0_i32_79 = arith.constant 0 : i32
    %c0_i32_80 = arith.constant 0 : i32
    %c0_i32_81 = arith.constant 0 : i32
    %120 = tpu.memref_slice %arg3[%c0_i32_78, %c0_i32_79, %c0_i32_80, %c0_i32_81] : memref<1x4x30x30xf32, #tpu.memory_space<vmem>> -> memref<1x4x30x30xf32, #tpu.memory_space<vmem>>
    %121 = tpu.memref_squeeze %120 : memref<1x4x30x30xf32, #tpu.memory_space<vmem>> -> memref<4x30x30xf32, #tpu.memory_space<vmem>>
    %c0_82 = arith.constant 0 : index
    %122 = arith.index_cast %119 : i32 to index
    %c10_83 = arith.constant 10 : index
    %123 = vector.load %121[%c0_82, %122, %c10_83] : memref<4x30x30xf32, #tpu.memory_space<vmem>>, vector<1x8x16xf32>
    %124 = vector.shape_cast %123 : vector<1x8x16xf32> to vector<8x16xf32>
    %c12 = arith.constant 12 : index
    %125 = memref.load %arg2[%c12] : memref<113xf32, #tpu.memory_space<smem>>
    %126 = vector.broadcast %125 : f32 to vector<8x16xf32>
    %127 = arith.mulf %126, %124 : vector<8x16xf32>
    %128 = arith.addf %108, %127 : vector<8x16xf32>
    %c0_i32_84 = arith.constant 0 : i32
    %c0_i32_85 = arith.constant 0 : i32
    %c0_i32_86 = arith.constant 0 : i32
    %c0_i32_87 = arith.constant 0 : i32
    %129 = tpu.memref_slice %arg3[%c0_i32_84, %c0_i32_85, %c0_i32_86, %c0_i32_87] : memref<1x4x30x30xf32, #tpu.memory_space<vmem>> -> memref<1x4x30x30xf32, #tpu.memory_space<vmem>>
    %130 = tpu.memref_squeeze %129 : memref<1x4x30x30xf32, #tpu.memory_space<vmem>> -> memref<4x30x30xf32, #tpu.memory_space<vmem>>
    %c1_88 = arith.constant 1 : index
    %131 = arith.index_cast %119 : i32 to index
    %c10_89 = arith.constant 10 : index
    %132 = vector.load %130[%c1_88, %131, %c10_89] : memref<4x30x30xf32, #tpu.memory_space<vmem>>, vector<1x8x16xf32>
    %133 = vector.shape_cast %132 : vector<1x8x16xf32> to vector<8x16xf32>
    %c13 = arith.constant 13 : index
    %134 = memref.load %arg2[%c13] : memref<113xf32, #tpu.memory_space<smem>>
    %135 = vector.broadcast %134 : f32 to vector<8x16xf32>
    %136 = arith.mulf %135, %133 : vector<8x16xf32>
    %137 = arith.addf %117, %136 : vector<8x16xf32>
    %c0_i32_90 = arith.constant 0 : i32
    %c0_i32_91 = arith.constant 0 : i32
    %c0_i32_92 = arith.constant 0 : i32
    %c0_i32_93 = arith.constant 0 : i32
    %138 = tpu.memref_slice %arg3[%c0_i32_90, %c0_i32_91, %c0_i32_92, %c0_i32_93] : memref<1x4x30x30xf32, #tpu.memory_space<vmem>> -> memref<1x4x30x30xf32, #tpu.memory_space<vmem>>
    %139 = tpu.memref_squeeze %138 : memref<1x4x30x30xf32, #tpu.memory_space<vmem>> -> memref<4x30x30xf32, #tpu.memory_space<vmem>>
    %c2_94 = arith.constant 2 : index
    %140 = arith.index_cast %119 : i32 to index
    %c10_95 = arith.constant 10 : index
    %141 = vector.load %139[%c2_94, %140, %c10_95] : memref<4x30x30xf32, #tpu.memory_space<vmem>>, vector<1x8x16xf32>
    %142 = vector.shape_cast %141 : vector<1x8x16xf32> to vector<8x16xf32>
    %c14 = arith.constant 14 : index
    %143 = memref.load %arg2[%c14] : memref<113xf32, #tpu.memory_space<smem>>
    %144 = vector.broadcast %143 : f32 to vector<8x16xf32>
    %145 = arith.mulf %144, %142 : vector<8x16xf32>
    %146 = arith.addf %128, %145 : vector<8x16xf32>
    %c0_i32_96 = arith.constant 0 : i32
    %c0_i32_97 = arith.constant 0 : i32
    %c0_i32_98 = arith.constant 0 : i32
    %c0_i32_99 = arith.constant 0 : i32
    %147 = tpu.memref_slice %arg3[%c0_i32_96, %c0_i32_97, %c0_i32_98, %c0_i32_99] : memref<1x4x30x30xf32, #tpu.memory_space<vmem>> -> memref<1x4x30x30xf32, #tpu.memory_space<vmem>>
    %148 = tpu.memref_squeeze %147 : memref<1x4x30x30xf32, #tpu.memory_space<vmem>> -> memref<4x30x30xf32, #tpu.memory_space<vmem>>
    %c3_100 = arith.constant 3 : index
    %149 = arith.index_cast %119 : i32 to index
    %c10_101 = arith.constant 10 : index
    %150 = vector.load %148[%c3_100, %149, %c10_101] : memref<4x30x30xf32, #tpu.memory_space<vmem>>, vector<1x8x16xf32>
    %151 = vector.shape_cast %150 : vector<1x8x16xf32> to vector<8x16xf32>
    %c15 = arith.constant 15 : index
    %152 = memref.load %arg2[%c15] : memref<113xf32, #tpu.memory_space<smem>>
    %153 = vector.broadcast %152 : f32 to vector<8x16xf32>
    %154 = arith.mulf %153, %151 : vector<8x16xf32>
    %155 = arith.addf %137, %154 : vector<8x16xf32>
    %c7_i32_102 = arith.constant 7 : i32
    %156 = arith.addi %1, %c7_i32_102 : i32
    %c0_i32_103 = arith.constant 0 : i32
    %157 = arith.addi %156, %c0_i32_103 : i32
    %c0_i32_104 = arith.constant 0 : i32
    %c0_i32_105 = arith.constant 0 : i32
    %c0_i32_106 = arith.constant 0 : i32
    %c0_i32_107 = arith.constant 0 : i32
    %158 = tpu.memref_slice %arg3[%c0_i32_104, %c0_i32_105, %c0_i32_106, %c0_i32_107] : memref<1x4x30x30xf32, #tpu.memory_space<vmem>> -> memref<1x4x30x30xf32, #tpu.memory_space<vmem>>
    %159 = tpu.memref_squeeze %158 : memref<1x4x30x30xf32, #tpu.memory_space<vmem>> -> memref<4x30x30xf32, #tpu.memory_space<vmem>>
    %c0_108 = arith.constant 0 : index
    %160 = arith.index_cast %157 : i32 to index
    %c4_109 = arith.constant 4 : index
    %161 = vector.load %159[%c0_108, %160, %c4_109] : memref<4x30x30xf32, #tpu.memory_space<vmem>>, vector<1x8x16xf32>
    %162 = vector.shape_cast %161 : vector<1x8x16xf32> to vector<8x16xf32>
    %c16 = arith.constant 16 : index
    %163 = memref.load %arg2[%c16] : memref<113xf32, #tpu.memory_space<smem>>
    %164 = vector.broadcast %163 : f32 to vector<8x16xf32>
    %165 = arith.mulf %164, %162 : vector<8x16xf32>
    %166 = arith.addf %146, %165 : vector<8x16xf32>
    %c0_i32_110 = arith.constant 0 : i32
    %c0_i32_111 = arith.constant 0 : i32
    %c0_i32_112 = arith.constant 0 : i32
    %c0_i32_113 = arith.constant 0 : i32
    %167 = tpu.memref_slice %arg3[%c0_i32_110, %c0_i32_111, %c0_i32_112, %c0_i32_113] : memref<1x4x30x30xf32, #tpu.memory_space<vmem>> -> memref<1x4x30x30xf32, #tpu.memory_space<vmem>>
    %168 = tpu.memref_squeeze %167 : memref<1x4x30x30xf32, #tpu.memory_space<vmem>> -> memref<4x30x30xf32, #tpu.memory_space<vmem>>
    %c1_114 = arith.constant 1 : index
    %169 = arith.index_cast %157 : i32 to index
    %c4_115 = arith.constant 4 : index
    %170 = vector.load %168[%c1_114, %169, %c4_115] : memref<4x30x30xf32, #tpu.memory_space<vmem>>, vector<1x8x16xf32>
    %171 = vector.shape_cast %170 : vector<1x8x16xf32> to vector<8x16xf32>
    %c17 = arith.constant 17 : index
    %172 = memref.load %arg2[%c17] : memref<113xf32, #tpu.memory_space<smem>>
    %173 = vector.broadcast %172 : f32 to vector<8x16xf32>
    %174 = arith.mulf %173, %171 : vector<8x16xf32>
    %175 = arith.addf %155, %174 : vector<8x16xf32>
    %c0_i32_116 = arith.constant 0 : i32
    %c0_i32_117 = arith.constant 0 : i32
    %c0_i32_118 = arith.constant 0 : i32
    %c0_i32_119 = arith.constant 0 : i32
    %176 = tpu.memref_slice %arg3[%c0_i32_116, %c0_i32_117, %c0_i32_118, %c0_i32_119] : memref<1x4x30x30xf32, #tpu.memory_space<vmem>> -> memref<1x4x30x30xf32, #tpu.memory_space<vmem>>
    %177 = tpu.memref_squeeze %176 : memref<1x4x30x30xf32, #tpu.memory_space<vmem>> -> memref<4x30x30xf32, #tpu.memory_space<vmem>>
    %c2_120 = arith.constant 2 : index
    %178 = arith.index_cast %157 : i32 to index
    %c4_121 = arith.constant 4 : index
    %179 = vector.load %177[%c2_120, %178, %c4_121] : memref<4x30x30xf32, #tpu.memory_space<vmem>>, vector<1x8x16xf32>
    %180 = vector.shape_cast %179 : vector<1x8x16xf32> to vector<8x16xf32>
    %c18 = arith.constant 18 : index
    %181 = memref.load %arg2[%c18] : memref<113xf32, #tpu.memory_space<smem>>
    %182 = vector.broadcast %181 : f32 to vector<8x16xf32>
    %183 = arith.mulf %182, %180 : vector<8x16xf32>
    %184 = arith.addf %166, %183 : vector<8x16xf32>
    %c0_i32_122 = arith.constant 0 : i32
    %c0_i32_123 = arith.constant 0 : i32
    %c0_i32_124 = arith.constant 0 : i32
    %c0_i32_125 = arith.constant 0 : i32
    %185 = tpu.memref_slice %arg3[%c0_i32_122, %c0_i32_123, %c0_i32_124, %c0_i32_125] : memref<1x4x30x30xf32, #tpu.memory_space<vmem>> -> memref<1x4x30x30xf32, #tpu.memory_space<vmem>>
    %186 = tpu.memref_squeeze %185 : memref<1x4x30x30xf32, #tpu.memory_space<vmem>> -> memref<4x30x30xf32, #tpu.memory_space<vmem>>
    %c3_126 = arith.constant 3 : index
    %187 = arith.index_cast %157 : i32 to index
    %c4_127 = arith.constant 4 : index
    %188 = vector.load %186[%c3_126, %187, %c4_127] : memref<4x30x30xf32, #tpu.memory_space<vmem>>, vector<1x8x16xf32>
    %189 = vector.shape_cast %188 : vector<1x8x16xf32> to vector<8x16xf32>
    %c19 = arith.constant 19 : index
    %190 = memref.load %arg2[%c19] : memref<113xf32, #tpu.memory_space<smem>>
    %191 = vector.broadcast %190 : f32 to vector<8x16xf32>
    %192 = arith.mulf %191, %189 : vector<8x16xf32>
    %193 = arith.addf %175, %192 : vector<8x16xf32>
    %c7_i32_128 = arith.constant 7 : i32
    %194 = arith.addi %1, %c7_i32_128 : i32
    %c0_i32_129 = arith.constant 0 : i32
    %195 = arith.addi %194, %c0_i32_129 : i32
    %c0_i32_130 = arith.constant 0 : i32
    %c0_i32_131 = arith.constant 0 : i32
    %c0_i32_132 = arith.constant 0 : i32
    %c0_i32_133 = arith.constant 0 : i32
    %196 = tpu.memref_slice %arg3[%c0_i32_130, %c0_i32_131, %c0_i32_132, %c0_i32_133] : memref<1x4x30x30xf32, #tpu.memory_space<vmem>> -> memref<1x4x30x30xf32, #tpu.memory_space<vmem>>
    %197 = tpu.memref_squeeze %196 : memref<1x4x30x30xf32, #tpu.memory_space<vmem>> -> memref<4x30x30xf32, #tpu.memory_space<vmem>>
    %c0_134 = arith.constant 0 : index
    %198 = arith.index_cast %195 : i32 to index
    %c7_135 = arith.constant 7 : index
    %199 = vector.load %197[%c0_134, %198, %c7_135] : memref<4x30x30xf32, #tpu.memory_space<vmem>>, vector<1x8x16xf32>
    %200 = vector.shape_cast %199 : vector<1x8x16xf32> to vector<8x16xf32>
    %c20 = arith.constant 20 : index
    %201 = memref.load %arg2[%c20] : memref<113xf32, #tpu.memory_space<smem>>
    %202 = vector.broadcast %201 : f32 to vector<8x16xf32>
    %203 = arith.mulf %202, %200 : vector<8x16xf32>
    %204 = arith.addf %184, %203 : vector<8x16xf32>
    %c0_i32_136 = arith.constant 0 : i32
    %c0_i32_137 = arith.constant 0 : i32
    %c0_i32_138 = arith.constant 0 : i32
    %c0_i32_139 = arith.constant 0 : i32
    %205 = tpu.memref_slice %arg3[%c0_i32_136, %c0_i32_137, %c0_i32_138, %c0_i32_139] : memref<1x4x30x30xf32, #tpu.memory_space<vmem>> -> memref<1x4x30x30xf32, #tpu.memory_space<vmem>>
    %206 = tpu.memref_squeeze %205 : memref<1x4x30x30xf32, #tpu.memory_space<vmem>> -> memref<4x30x30xf32, #tpu.memory_space<vmem>>
    %c1_140 = arith.constant 1 : index
    %207 = arith.index_cast %195 : i32 to index
    %c7_141 = arith.constant 7 : index
    %208 = vector.load %206[%c1_140, %207, %c7_141] : memref<4x30x30xf32, #tpu.memory_space<vmem>>, vector<1x8x16xf32>
    %209 = vector.shape_cast %208 : vector<1x8x16xf32> to vector<8x16xf32>
    %c21 = arith.constant 21 : index
    %210 = memref.load %arg2[%c21] : memref<113xf32, #tpu.memory_space<smem>>
    %211 = vector.broadcast %210 : f32 to vector<8x16xf32>
    %212 = arith.mulf %211, %209 : vector<8x16xf32>
    %213 = arith.addf %193, %212 : vector<8x16xf32>
    %c0_i32_142 = arith.constant 0 : i32
    %c0_i32_143 = arith.constant 0 : i32
    %c0_i32_144 = arith.constant 0 : i32
    %c0_i32_145 = arith.constant 0 : i32
    %214 = tpu.memref_slice %arg3[%c0_i32_142, %c0_i32_143, %c0_i32_144, %c0_i32_145] : memref<1x4x30x30xf32, #tpu.memory_space<vmem>> -> memref<1x4x30x30xf32, #tpu.memory_space<vmem>>
    %215 = tpu.memref_squeeze %214 : memref<1x4x30x30xf32, #tpu.memory_space<vmem>> -> memref<4x30x30xf32, #tpu.memory_space<vmem>>
    %c2_146 = arith.constant 2 : index
    %216 = arith.index_cast %195 : i32 to index
    %c7_147 = arith.constant 7 : index
    %217 = vector.load %215[%c2_146, %216, %c7_147] : memref<4x30x30xf32, #tpu.memory_space<vmem>>, vector<1x8x16xf32>
    %218 = vector.shape_cast %217 : vector<1x8x16xf32> to vector<8x16xf32>
    %c22 = arith.constant 22 : index
    %219 = memref.load %arg2[%c22] : memref<113xf32, #tpu.memory_space<smem>>
    %220 = vector.broadcast %219 : f32 to vector<8x16xf32>
    %221 = arith.mulf %220, %218 : vector<8x16xf32>
    %222 = arith.addf %204, %221 : vector<8x16xf32>
    %c0_i32_148 = arith.constant 0 : i32
    %c0_i32_149 = arith.constant 0 : i32
    %c0_i32_150 = arith.constant 0 : i32
    %c0_i32_151 = arith.constant 0 : i32
    %223 = tpu.memref_slice %arg3[%c0_i32_148, %c0_i32_149, %c0_i32_150, %c0_i32_151] : memref<1x4x30x30xf32, #tpu.memory_space<vmem>> -> memref<1x4x30x30xf32, #tpu.memory_space<vmem>>
    %224 = tpu.memref_squeeze %223 : memref<1x4x30x30xf32, #tpu.memory_space<vmem>> -> memref<4x30x30xf32, #tpu.memory_space<vmem>>
    %c3_152 = arith.constant 3 : index
    %225 = arith.index_cast %195 : i32 to index
    %c7_153 = arith.constant 7 : index
    %226 = vector.load %224[%c3_152, %225, %c7_153] : memref<4x30x30xf32, #tpu.memory_space<vmem>>, vector<1x8x16xf32>
    %227 = vector.shape_cast %226 : vector<1x8x16xf32> to vector<8x16xf32>
    %c23 = arith.constant 23 : index
    %228 = memref.load %arg2[%c23] : memref<113xf32, #tpu.memory_space<smem>>
    %229 = vector.broadcast %228 : f32 to vector<8x16xf32>
    %230 = arith.mulf %229, %227 : vector<8x16xf32>
    %231 = arith.addf %213, %230 : vector<8x16xf32>
    %c7_i32_154 = arith.constant 7 : i32
    %232 = arith.addi %1, %c7_i32_154 : i32
    %c0_i32_155 = arith.constant 0 : i32
    %233 = arith.addi %232, %c0_i32_155 : i32
    %c0_i32_156 = arith.constant 0 : i32
    %c0_i32_157 = arith.constant 0 : i32
    %c0_i32_158 = arith.constant 0 : i32
    %c0_i32_159 = arith.constant 0 : i32
    %234 = tpu.memref_slice %arg3[%c0_i32_156, %c0_i32_157, %c0_i32_158, %c0_i32_159] : memref<1x4x30x30xf32, #tpu.memory_space<vmem>> -> memref<1x4x30x30xf32, #tpu.memory_space<vmem>>
    %235 = tpu.memref_squeeze %234 : memref<1x4x30x30xf32, #tpu.memory_space<vmem>> -> memref<4x30x30xf32, #tpu.memory_space<vmem>>
    %c0_160 = arith.constant 0 : index
    %236 = arith.index_cast %233 : i32 to index
    %c10_161 = arith.constant 10 : index
    %237 = vector.load %235[%c0_160, %236, %c10_161] : memref<4x30x30xf32, #tpu.memory_space<vmem>>, vector<1x8x16xf32>
    %238 = vector.shape_cast %237 : vector<1x8x16xf32> to vector<8x16xf32>
    %c24 = arith.constant 24 : index
    %239 = memref.load %arg2[%c24] : memref<113xf32, #tpu.memory_space<smem>>
    %240 = vector.broadcast %239 : f32 to vector<8x16xf32>
    %241 = arith.mulf %240, %238 : vector<8x16xf32>
    %242 = arith.addf %222, %241 : vector<8x16xf32>
    %c0_i32_162 = arith.constant 0 : i32
    %c0_i32_163 = arith.constant 0 : i32
    %c0_i32_164 = arith.constant 0 : i32
    %c0_i32_165 = arith.constant 0 : i32
    %243 = tpu.memref_slice %arg3[%c0_i32_162, %c0_i32_163, %c0_i32_164, %c0_i32_165] : memref<1x4x30x30xf32, #tpu.memory_space<vmem>> -> memref<1x4x30x30xf32, #tpu.memory_space<vmem>>
    %244 = tpu.memref_squeeze %243 : memref<1x4x30x30xf32, #tpu.memory_space<vmem>> -> memref<4x30x30xf32, #tpu.memory_space<vmem>>
    %c1_166 = arith.constant 1 : index
    %245 = arith.index_cast %233 : i32 to index
    %c10_167 = arith.constant 10 : index
    %246 = vector.load %244[%c1_166, %245, %c10_167] : memref<4x30x30xf32, #tpu.memory_space<vmem>>, vector<1x8x16xf32>
    %247 = vector.shape_cast %246 : vector<1x8x16xf32> to vector<8x16xf32>
    %c25 = arith.constant 25 : index
    %248 = memref.load %arg2[%c25] : memref<113xf32, #tpu.memory_space<smem>>
    %249 = vector.broadcast %248 : f32 to vector<8x16xf32>
    %250 = arith.mulf %249, %247 : vector<8x16xf32>
    %251 = arith.addf %231, %250 : vector<8x16xf32>
    %c0_i32_168 = arith.constant 0 : i32
    %c0_i32_169 = arith.constant 0 : i32
    %c0_i32_170 = arith.constant 0 : i32
    %c0_i32_171 = arith.constant 0 : i32
    %252 = tpu.memref_slice %arg3[%c0_i32_168, %c0_i32_169, %c0_i32_170, %c0_i32_171] : memref<1x4x30x30xf32, #tpu.memory_space<vmem>> -> memref<1x4x30x30xf32, #tpu.memory_space<vmem>>
    %253 = tpu.memref_squeeze %252 : memref<1x4x30x30xf32, #tpu.memory_space<vmem>> -> memref<4x30x30xf32, #tpu.memory_space<vmem>>
    %c2_172 = arith.constant 2 : index
    %254 = arith.index_cast %233 : i32 to index
    %c10_173 = arith.constant 10 : index
    %255 = vector.load %253[%c2_172, %254, %c10_173] : memref<4x30x30xf32, #tpu.memory_space<vmem>>, vector<1x8x16xf32>
    %256 = vector.shape_cast %255 : vector<1x8x16xf32> to vector<8x16xf32>
    %c26 = arith.constant 26 : index
    %257 = memref.load %arg2[%c26] : memref<113xf32, #tpu.memory_space<smem>>
    %258 = vector.broadcast %257 : f32 to vector<8x16xf32>
    %259 = arith.mulf %258, %256 : vector<8x16xf32>
    %260 = arith.addf %242, %259 : vector<8x16xf32>
    %c0_i32_174 = arith.constant 0 : i32
    %c0_i32_175 = arith.constant 0 : i32
    %c0_i32_176 = arith.constant 0 : i32
    %c0_i32_177 = arith.constant 0 : i32
    %261 = tpu.memref_slice %arg3[%c0_i32_174, %c0_i32_175, %c0_i32_176, %c0_i32_177] : memref<1x4x30x30xf32, #tpu.memory_space<vmem>> -> memref<1x4x30x30xf32, #tpu.memory_space<vmem>>
    %262 = tpu.memref_squeeze %261 : memref<1x4x30x30xf32, #tpu.memory_space<vmem>> -> memref<4x30x30xf32, #tpu.memory_space<vmem>>
    %c3_178 = arith.constant 3 : index
    %263 = arith.index_cast %233 : i32 to index
    %c10_179 = arith.constant 10 : index
    %264 = vector.load %262[%c3_178, %263, %c10_179] : memref<4x30x30xf32, #tpu.memory_space<vmem>>, vector<1x8x16xf32>
    %265 = vector.shape_cast %264 : vector<1x8x16xf32> to vector<8x16xf32>
    %c27 = arith.constant 27 : index
    %266 = memref.load %arg2[%c27] : memref<113xf32, #tpu.memory_space<smem>>
    %267 = vector.broadcast %266 : f32 to vector<8x16xf32>
    %268 = arith.mulf %267, %265 : vector<8x16xf32>
    %269 = arith.addf %251, %268 : vector<8x16xf32>
    %c7_i32_180 = arith.constant 7 : i32
    %270 = arith.addi %1, %c7_i32_180 : i32
    %c3_i32 = arith.constant 3 : i32
    %271 = arith.addi %270, %c3_i32 : i32
    %c0_i32_181 = arith.constant 0 : i32
    %c0_i32_182 = arith.constant 0 : i32
    %c0_i32_183 = arith.constant 0 : i32
    %c0_i32_184 = arith.constant 0 : i32
    %272 = tpu.memref_slice %arg3[%c0_i32_181, %c0_i32_182, %c0_i32_183, %c0_i32_184] : memref<1x4x30x30xf32, #tpu.memory_space<vmem>> -> memref<1x4x30x30xf32, #tpu.memory_space<vmem>>
    %273 = tpu.memref_squeeze %272 : memref<1x4x30x30xf32, #tpu.memory_space<vmem>> -> memref<4x30x30xf32, #tpu.memory_space<vmem>>
    %c0_185 = arith.constant 0 : index
    %274 = arith.index_cast %271 : i32 to index
    %c4_186 = arith.constant 4 : index
    %275 = vector.load %273[%c0_185, %274, %c4_186] : memref<4x30x30xf32, #tpu.memory_space<vmem>>, vector<1x8x16xf32>
    %276 = vector.shape_cast %275 : vector<1x8x16xf32> to vector<8x16xf32>
    %c28 = arith.constant 28 : index
    %277 = memref.load %arg2[%c28] : memref<113xf32, #tpu.memory_space<smem>>
    %278 = vector.broadcast %277 : f32 to vector<8x16xf32>
    %279 = arith.mulf %278, %276 : vector<8x16xf32>
    %280 = arith.addf %260, %279 : vector<8x16xf32>
    %c0_i32_187 = arith.constant 0 : i32
    %c0_i32_188 = arith.constant 0 : i32
    %c0_i32_189 = arith.constant 0 : i32
    %c0_i32_190 = arith.constant 0 : i32
    %281 = tpu.memref_slice %arg3[%c0_i32_187, %c0_i32_188, %c0_i32_189, %c0_i32_190] : memref<1x4x30x30xf32, #tpu.memory_space<vmem>> -> memref<1x4x30x30xf32, #tpu.memory_space<vmem>>
    %282 = tpu.memref_squeeze %281 : memref<1x4x30x30xf32, #tpu.memory_space<vmem>> -> memref<4x30x30xf32, #tpu.memory_space<vmem>>
    %c1_191 = arith.constant 1 : index
    %283 = arith.index_cast %271 : i32 to index
    %c4_192 = arith.constant 4 : index
    %284 = vector.load %282[%c1_191, %283, %c4_192] : memref<4x30x30xf32, #tpu.memory_space<vmem>>, vector<1x8x16xf32>
    %285 = vector.shape_cast %284 : vector<1x8x16xf32> to vector<8x16xf32>
    %c29 = arith.constant 29 : index
    %286 = memref.load %arg2[%c29] : memref<113xf32, #tpu.memory_space<smem>>
    %287 = vector.broadcast %286 : f32 to vector<8x16xf32>
    %288 = arith.mulf %287, %285 : vector<8x16xf32>
    %289 = arith.addf %269, %288 : vector<8x16xf32>
    %c0_i32_193 = arith.constant 0 : i32
    %c0_i32_194 = arith.constant 0 : i32
    %c0_i32_195 = arith.constant 0 : i32
    %c0_i32_196 = arith.constant 0 : i32
    %290 = tpu.memref_slice %arg3[%c0_i32_193, %c0_i32_194, %c0_i32_195, %c0_i32_196] : memref<1x4x30x30xf32, #tpu.memory_space<vmem>> -> memref<1x4x30x30xf32, #tpu.memory_space<vmem>>
    %291 = tpu.memref_squeeze %290 : memref<1x4x30x30xf32, #tpu.memory_space<vmem>> -> memref<4x30x30xf32, #tpu.memory_space<vmem>>
    %c2_197 = arith.constant 2 : index
    %292 = arith.index_cast %271 : i32 to index
    %c4_198 = arith.constant 4 : index
    %293 = vector.load %291[%c2_197, %292, %c4_198] : memref<4x30x30xf32, #tpu.memory_space<vmem>>, vector<1x8x16xf32>
    %294 = vector.shape_cast %293 : vector<1x8x16xf32> to vector<8x16xf32>
    %c30 = arith.constant 30 : index
    %295 = memref.load %arg2[%c30] : memref<113xf32, #tpu.memory_space<smem>>
    %296 = vector.broadcast %295 : f32 to vector<8x16xf32>
    %297 = arith.mulf %296, %294 : vector<8x16xf32>
    %298 = arith.addf %280, %297 : vector<8x16xf32>
    %c0_i32_199 = arith.constant 0 : i32
    %c0_i32_200 = arith.constant 0 : i32
    %c0_i32_201 = arith.constant 0 : i32
    %c0_i32_202 = arith.constant 0 : i32
    %299 = tpu.memref_slice %arg3[%c0_i32_199, %c0_i32_200, %c0_i32_201, %c0_i32_202] : memref<1x4x30x30xf32, #tpu.memory_space<vmem>> -> memref<1x4x30x30xf32, #tpu.memory_space<vmem>>
    %300 = tpu.memref_squeeze %299 : memref<1x4x30x30xf32, #tpu.memory_space<vmem>> -> memref<4x30x30xf32, #tpu.memory_space<vmem>>
    %c3_203 = arith.constant 3 : index
    %301 = arith.index_cast %271 : i32 to index
    %c4_204 = arith.constant 4 : index
    %302 = vector.load %300[%c3_203, %301, %c4_204] : memref<4x30x30xf32, #tpu.memory_space<vmem>>, vector<1x8x16xf32>
    %303 = vector.shape_cast %302 : vector<1x8x16xf32> to vector<8x16xf32>
    %c31 = arith.constant 31 : index
    %304 = memref.load %arg2[%c31] : memref<113xf32, #tpu.memory_space<smem>>
    %305 = vector.broadcast %304 : f32 to vector<8x16xf32>
    %306 = arith.mulf %305, %303 : vector<8x16xf32>
    %307 = arith.addf %289, %306 : vector<8x16xf32>
    %c7_i32_205 = arith.constant 7 : i32
    %308 = arith.addi %1, %c7_i32_205 : i32
    %c3_i32_206 = arith.constant 3 : i32
    %309 = arith.addi %308, %c3_i32_206 : i32
    %c0_i32_207 = arith.constant 0 : i32
    %c0_i32_208 = arith.constant 0 : i32
    %c0_i32_209 = arith.constant 0 : i32
    %c0_i32_210 = arith.constant 0 : i32
    %310 = tpu.memref_slice %arg3[%c0_i32_207, %c0_i32_208, %c0_i32_209, %c0_i32_210] : memref<1x4x30x30xf32, #tpu.memory_space<vmem>> -> memref<1x4x30x30xf32, #tpu.memory_space<vmem>>
    %311 = tpu.memref_squeeze %310 : memref<1x4x30x30xf32, #tpu.memory_space<vmem>> -> memref<4x30x30xf32, #tpu.memory_space<vmem>>
    %c0_211 = arith.constant 0 : index
    %312 = arith.index_cast %309 : i32 to index
    %c7_212 = arith.constant 7 : index
    %313 = vector.load %311[%c0_211, %312, %c7_212] : memref<4x30x30xf32, #tpu.memory_space<vmem>>, vector<1x8x16xf32>
    %314 = vector.shape_cast %313 : vector<1x8x16xf32> to vector<8x16xf32>
    %c32 = arith.constant 32 : index
    %315 = memref.load %arg2[%c32] : memref<113xf32, #tpu.memory_space<smem>>
    %316 = vector.broadcast %315 : f32 to vector<8x16xf32>
    %317 = arith.mulf %316, %314 : vector<8x16xf32>
    %318 = arith.addf %298, %317 : vector<8x16xf32>
    %c0_i32_213 = arith.constant 0 : i32
    %c0_i32_214 = arith.constant 0 : i32
    %c0_i32_215 = arith.constant 0 : i32
    %c0_i32_216 = arith.constant 0 : i32
    %319 = tpu.memref_slice %arg3[%c0_i32_213, %c0_i32_214, %c0_i32_215, %c0_i32_216] : memref<1x4x30x30xf32, #tpu.memory_space<vmem>> -> memref<1x4x30x30xf32, #tpu.memory_space<vmem>>
    %320 = tpu.memref_squeeze %319 : memref<1x4x30x30xf32, #tpu.memory_space<vmem>> -> memref<4x30x30xf32, #tpu.memory_space<vmem>>
    %c1_217 = arith.constant 1 : index
    %321 = arith.index_cast %309 : i32 to index
    %c7_218 = arith.constant 7 : index
    %322 = vector.load %320[%c1_217, %321, %c7_218] : memref<4x30x30xf32, #tpu.memory_space<vmem>>, vector<1x8x16xf32>
    %323 = vector.shape_cast %322 : vector<1x8x16xf32> to vector<8x16xf32>
    %c33 = arith.constant 33 : index
    %324 = memref.load %arg2[%c33] : memref<113xf32, #tpu.memory_space<smem>>
    %325 = vector.broadcast %324 : f32 to vector<8x16xf32>
    %326 = arith.mulf %325, %323 : vector<8x16xf32>
    %327 = arith.addf %307, %326 : vector<8x16xf32>
    %c0_i32_219 = arith.constant 0 : i32
    %c0_i32_220 = arith.constant 0 : i32
    %c0_i32_221 = arith.constant 0 : i32
    %c0_i32_222 = arith.constant 0 : i32
    %328 = tpu.memref_slice %arg3[%c0_i32_219, %c0_i32_220, %c0_i32_221, %c0_i32_222] : memref<1x4x30x30xf32, #tpu.memory_space<vmem>> -> memref<1x4x30x30xf32, #tpu.memory_space<vmem>>
    %329 = tpu.memref_squeeze %328 : memref<1x4x30x30xf32, #tpu.memory_space<vmem>> -> memref<4x30x30xf32, #tpu.memory_space<vmem>>
    %c2_223 = arith.constant 2 : index
    %330 = arith.index_cast %309 : i32 to index
    %c7_224 = arith.constant 7 : index
    %331 = vector.load %329[%c2_223, %330, %c7_224] : memref<4x30x30xf32, #tpu.memory_space<vmem>>, vector<1x8x16xf32>
    %332 = vector.shape_cast %331 : vector<1x8x16xf32> to vector<8x16xf32>
    %c34 = arith.constant 34 : index
    %333 = memref.load %arg2[%c34] : memref<113xf32, #tpu.memory_space<smem>>
    %334 = vector.broadcast %333 : f32 to vector<8x16xf32>
    %335 = arith.mulf %334, %332 : vector<8x16xf32>
    %336 = arith.addf %318, %335 : vector<8x16xf32>
    %c0_i32_225 = arith.constant 0 : i32
    %c0_i32_226 = arith.constant 0 : i32
    %c0_i32_227 = arith.constant 0 : i32
    %c0_i32_228 = arith.constant 0 : i32
    %337 = tpu.memref_slice %arg3[%c0_i32_225, %c0_i32_226, %c0_i32_227, %c0_i32_228] : memref<1x4x30x30xf32, #tpu.memory_space<vmem>> -> memref<1x4x30x30xf32, #tpu.memory_space<vmem>>
    %338 = tpu.memref_squeeze %337 : memref<1x4x30x30xf32, #tpu.memory_space<vmem>> -> memref<4x30x30xf32, #tpu.memory_space<vmem>>
    %c3_229 = arith.constant 3 : index
    %339 = arith.index_cast %309 : i32 to index
    %c7_230 = arith.constant 7 : index
    %340 = vector.load %338[%c3_229, %339, %c7_230] : memref<4x30x30xf32, #tpu.memory_space<vmem>>, vector<1x8x16xf32>
    %341 = vector.shape_cast %340 : vector<1x8x16xf32> to vector<8x16xf32>
    %c35 = arith.constant 35 : index
    %342 = memref.load %arg2[%c35] : memref<113xf32, #tpu.memory_space<smem>>
    %343 = vector.broadcast %342 : f32 to vector<8x16xf32>
    %344 = arith.mulf %343, %341 : vector<8x16xf32>
    %345 = arith.addf %327, %344 : vector<8x16xf32>
    %c7_i32_231 = arith.constant 7 : i32
    %346 = arith.addi %1, %c7_i32_231 : i32
    %c3_i32_232 = arith.constant 3 : i32
    %347 = arith.addi %346, %c3_i32_232 : i32
    %c0_i32_233 = arith.constant 0 : i32
    %c0_i32_234 = arith.constant 0 : i32
    %c0_i32_235 = arith.constant 0 : i32
    %c0_i32_236 = arith.constant 0 : i32
    %348 = tpu.memref_slice %arg3[%c0_i32_233, %c0_i32_234, %c0_i32_235, %c0_i32_236] : memref<1x4x30x30xf32, #tpu.memory_space<vmem>> -> memref<1x4x30x30xf32, #tpu.memory_space<vmem>>
    %349 = tpu.memref_squeeze %348 : memref<1x4x30x30xf32, #tpu.memory_space<vmem>> -> memref<4x30x30xf32, #tpu.memory_space<vmem>>
    %c0_237 = arith.constant 0 : index
    %350 = arith.index_cast %347 : i32 to index
    %c10_238 = arith.constant 10 : index
    %351 = vector.load %349[%c0_237, %350, %c10_238] : memref<4x30x30xf32, #tpu.memory_space<vmem>>, vector<1x8x16xf32>
    %352 = vector.shape_cast %351 : vector<1x8x16xf32> to vector<8x16xf32>
    %c36 = arith.constant 36 : index
    %353 = memref.load %arg2[%c36] : memref<113xf32, #tpu.memory_space<smem>>
    %354 = vector.broadcast %353 : f32 to vector<8x16xf32>
    %355 = arith.mulf %354, %352 : vector<8x16xf32>
    %356 = arith.addf %336, %355 : vector<8x16xf32>
    %c0_i32_239 = arith.constant 0 : i32
    %c0_i32_240 = arith.constant 0 : i32
    %c0_i32_241 = arith.constant 0 : i32
    %c0_i32_242 = arith.constant 0 : i32
    %357 = tpu.memref_slice %arg3[%c0_i32_239, %c0_i32_240, %c0_i32_241, %c0_i32_242] : memref<1x4x30x30xf32, #tpu.memory_space<vmem>> -> memref<1x4x30x30xf32, #tpu.memory_space<vmem>>
    %358 = tpu.memref_squeeze %357 : memref<1x4x30x30xf32, #tpu.memory_space<vmem>> -> memref<4x30x30xf32, #tpu.memory_space<vmem>>
    %c1_243 = arith.constant 1 : index
    %359 = arith.index_cast %347 : i32 to index
    %c10_244 = arith.constant 10 : index
    %360 = vector.load %358[%c1_243, %359, %c10_244] : memref<4x30x30xf32, #tpu.memory_space<vmem>>, vector<1x8x16xf32>
    %361 = vector.shape_cast %360 : vector<1x8x16xf32> to vector<8x16xf32>
    %c37 = arith.constant 37 : index
    %362 = memref.load %arg2[%c37] : memref<113xf32, #tpu.memory_space<smem>>
    %363 = vector.broadcast %362 : f32 to vector<8x16xf32>
    %364 = arith.mulf %363, %361 : vector<8x16xf32>
    %365 = arith.addf %345, %364 : vector<8x16xf32>
    %c0_i32_245 = arith.constant 0 : i32
    %c0_i32_246 = arith.constant 0 : i32
    %c0_i32_247 = arith.constant 0 : i32
    %c0_i32_248 = arith.constant 0 : i32
    %366 = tpu.memref_slice %arg3[%c0_i32_245, %c0_i32_246, %c0_i32_247, %c0_i32_248] : memref<1x4x30x30xf32, #tpu.memory_space<vmem>> -> memref<1x4x30x30xf32, #tpu.memory_space<vmem>>
    %367 = tpu.memref_squeeze %366 : memref<1x4x30x30xf32, #tpu.memory_space<vmem>> -> memref<4x30x30xf32, #tpu.memory_space<vmem>>
    %c2_249 = arith.constant 2 : index
    %368 = arith.index_cast %347 : i32 to index
    %c10_250 = arith.constant 10 : index
    %369 = vector.load %367[%c2_249, %368, %c10_250] : memref<4x30x30xf32, #tpu.memory_space<vmem>>, vector<1x8x16xf32>
    %370 = vector.shape_cast %369 : vector<1x8x16xf32> to vector<8x16xf32>
    %c38 = arith.constant 38 : index
    %371 = memref.load %arg2[%c38] : memref<113xf32, #tpu.memory_space<smem>>
    %372 = vector.broadcast %371 : f32 to vector<8x16xf32>
    %373 = arith.mulf %372, %370 : vector<8x16xf32>
    %374 = arith.addf %356, %373 : vector<8x16xf32>
    %c0_i32_251 = arith.constant 0 : i32
    %c0_i32_252 = arith.constant 0 : i32
    %c0_i32_253 = arith.constant 0 : i32
    %c0_i32_254 = arith.constant 0 : i32
    %375 = tpu.memref_slice %arg3[%c0_i32_251, %c0_i32_252, %c0_i32_253, %c0_i32_254] : memref<1x4x30x30xf32, #tpu.memory_space<vmem>> -> memref<1x4x30x30xf32, #tpu.memory_space<vmem>>
    %376 = tpu.memref_squeeze %375 : memref<1x4x30x30xf32, #tpu.memory_space<vmem>> -> memref<4x30x30xf32, #tpu.memory_space<vmem>>
    %c3_255 = arith.constant 3 : index
    %377 = arith.index_cast %347 : i32 to index
    %c10_256 = arith.constant 10 : index
    %378 = vector.load %376[%c3_255, %377, %c10_256] : memref<4x30x30xf32, #tpu.memory_space<vmem>>, vector<1x8x16xf32>
    %379 = vector.shape_cast %378 : vector<1x8x16xf32> to vector<8x16xf32>
    %c39 = arith.constant 39 : index
    %380 = memref.load %arg2[%c39] : memref<113xf32, #tpu.memory_space<smem>>
    %381 = vector.broadcast %380 : f32 to vector<8x16xf32>
    %382 = arith.mulf %381, %379 : vector<8x16xf32>
    %383 = arith.addf %365, %382 : vector<8x16xf32>
    %c7_i32_257 = arith.constant 7 : i32
    %384 = arith.addi %1, %c7_i32_257 : i32
    %c-5_i32 = arith.constant -5 : i32
    %385 = arith.addi %384, %c-5_i32 : i32
    %c0_i32_258 = arith.constant 0 : i32
    %c0_i32_259 = arith.constant 0 : i32
    %c0_i32_260 = arith.constant 0 : i32
    %c0_i32_261 = arith.constant 0 : i32
    %386 = tpu.memref_slice %arg3[%c0_i32_258, %c0_i32_259, %c0_i32_260, %c0_i32_261] : memref<1x4x30x30xf32, #tpu.memory_space<vmem>> -> memref<1x4x30x30xf32, #tpu.memory_space<vmem>>
    %387 = tpu.memref_squeeze %386 : memref<1x4x30x30xf32, #tpu.memory_space<vmem>> -> memref<4x30x30xf32, #tpu.memory_space<vmem>>
    %c0_262 = arith.constant 0 : index
    %388 = arith.index_cast %385 : i32 to index
    %c2_263 = arith.constant 2 : index
    %389 = vector.load %387[%c0_262, %388, %c2_263] : memref<4x30x30xf32, #tpu.memory_space<vmem>>, vector<1x8x16xf32>
    %390 = vector.shape_cast %389 : vector<1x8x16xf32> to vector<8x16xf32>
    %c40 = arith.constant 40 : index
    %391 = memref.load %arg2[%c40] : memref<113xf32, #tpu.memory_space<smem>>
    %392 = vector.broadcast %391 : f32 to vector<8x16xf32>
    %393 = arith.mulf %392, %390 : vector<8x16xf32>
    %394 = arith.addf %374, %393 : vector<8x16xf32>
    %c0_i32_264 = arith.constant 0 : i32
    %c0_i32_265 = arith.constant 0 : i32
    %c0_i32_266 = arith.constant 0 : i32
    %c0_i32_267 = arith.constant 0 : i32
    %395 = tpu.memref_slice %arg3[%c0_i32_264, %c0_i32_265, %c0_i32_266, %c0_i32_267] : memref<1x4x30x30xf32, #tpu.memory_space<vmem>> -> memref<1x4x30x30xf32, #tpu.memory_space<vmem>>
    %396 = tpu.memref_squeeze %395 : memref<1x4x30x30xf32, #tpu.memory_space<vmem>> -> memref<4x30x30xf32, #tpu.memory_space<vmem>>
    %c1_268 = arith.constant 1 : index
    %397 = arith.index_cast %385 : i32 to index
    %c2_269 = arith.constant 2 : index
    %398 = vector.load %396[%c1_268, %397, %c2_269] : memref<4x30x30xf32, #tpu.memory_space<vmem>>, vector<1x8x16xf32>
    %399 = vector.shape_cast %398 : vector<1x8x16xf32> to vector<8x16xf32>
    %c41 = arith.constant 41 : index
    %400 = memref.load %arg2[%c41] : memref<113xf32, #tpu.memory_space<smem>>
    %401 = vector.broadcast %400 : f32 to vector<8x16xf32>
    %402 = arith.mulf %401, %399 : vector<8x16xf32>
    %403 = arith.addf %383, %402 : vector<8x16xf32>
    %c0_i32_270 = arith.constant 0 : i32
    %c0_i32_271 = arith.constant 0 : i32
    %c0_i32_272 = arith.constant 0 : i32
    %c0_i32_273 = arith.constant 0 : i32
    %404 = tpu.memref_slice %arg3[%c0_i32_270, %c0_i32_271, %c0_i32_272, %c0_i32_273] : memref<1x4x30x30xf32, #tpu.memory_space<vmem>> -> memref<1x4x30x30xf32, #tpu.memory_space<vmem>>
    %405 = tpu.memref_squeeze %404 : memref<1x4x30x30xf32, #tpu.memory_space<vmem>> -> memref<4x30x30xf32, #tpu.memory_space<vmem>>
    %c2_274 = arith.constant 2 : index
    %406 = arith.index_cast %385 : i32 to index
    %c2_275 = arith.constant 2 : index
    %407 = vector.load %405[%c2_274, %406, %c2_275] : memref<4x30x30xf32, #tpu.memory_space<vmem>>, vector<1x8x16xf32>
    %408 = vector.shape_cast %407 : vector<1x8x16xf32> to vector<8x16xf32>
    %c42 = arith.constant 42 : index
    %409 = memref.load %arg2[%c42] : memref<113xf32, #tpu.memory_space<smem>>
    %410 = vector.broadcast %409 : f32 to vector<8x16xf32>
    %411 = arith.mulf %410, %408 : vector<8x16xf32>
    %412 = arith.addf %394, %411 : vector<8x16xf32>
    %c0_i32_276 = arith.constant 0 : i32
    %c0_i32_277 = arith.constant 0 : i32
    %c0_i32_278 = arith.constant 0 : i32
    %c0_i32_279 = arith.constant 0 : i32
    %413 = tpu.memref_slice %arg3[%c0_i32_276, %c0_i32_277, %c0_i32_278, %c0_i32_279] : memref<1x4x30x30xf32, #tpu.memory_space<vmem>> -> memref<1x4x30x30xf32, #tpu.memory_space<vmem>>
    %414 = tpu.memref_squeeze %413 : memref<1x4x30x30xf32, #tpu.memory_space<vmem>> -> memref<4x30x30xf32, #tpu.memory_space<vmem>>
    %c3_280 = arith.constant 3 : index
    %415 = arith.index_cast %385 : i32 to index
    %c2_281 = arith.constant 2 : index
    %416 = vector.load %414[%c3_280, %415, %c2_281] : memref<4x30x30xf32, #tpu.memory_space<vmem>>, vector<1x8x16xf32>
    %417 = vector.shape_cast %416 : vector<1x8x16xf32> to vector<8x16xf32>
    %c43 = arith.constant 43 : index
    %418 = memref.load %arg2[%c43] : memref<113xf32, #tpu.memory_space<smem>>
    %419 = vector.broadcast %418 : f32 to vector<8x16xf32>
    %420 = arith.mulf %419, %417 : vector<8x16xf32>
    %421 = arith.addf %403, %420 : vector<8x16xf32>
    %c7_i32_282 = arith.constant 7 : i32
    %422 = arith.addi %1, %c7_i32_282 : i32
    %c-5_i32_283 = arith.constant -5 : i32
    %423 = arith.addi %422, %c-5_i32_283 : i32
    %c0_i32_284 = arith.constant 0 : i32
    %c0_i32_285 = arith.constant 0 : i32
    %c0_i32_286 = arith.constant 0 : i32
    %c0_i32_287 = arith.constant 0 : i32
    %424 = tpu.memref_slice %arg3[%c0_i32_284, %c0_i32_285, %c0_i32_286, %c0_i32_287] : memref<1x4x30x30xf32, #tpu.memory_space<vmem>> -> memref<1x4x30x30xf32, #tpu.memory_space<vmem>>
    %425 = tpu.memref_squeeze %424 : memref<1x4x30x30xf32, #tpu.memory_space<vmem>> -> memref<4x30x30xf32, #tpu.memory_space<vmem>>
    %c0_288 = arith.constant 0 : index
    %426 = arith.index_cast %423 : i32 to index
    %c7_289 = arith.constant 7 : index
    %427 = vector.load %425[%c0_288, %426, %c7_289] : memref<4x30x30xf32, #tpu.memory_space<vmem>>, vector<1x8x16xf32>
    %428 = vector.shape_cast %427 : vector<1x8x16xf32> to vector<8x16xf32>
    %c44 = arith.constant 44 : index
    %429 = memref.load %arg2[%c44] : memref<113xf32, #tpu.memory_space<smem>>
    %430 = vector.broadcast %429 : f32 to vector<8x16xf32>
    %431 = arith.mulf %430, %428 : vector<8x16xf32>
    %432 = arith.addf %412, %431 : vector<8x16xf32>
    %c0_i32_290 = arith.constant 0 : i32
    %c0_i32_291 = arith.constant 0 : i32
    %c0_i32_292 = arith.constant 0 : i32
    %c0_i32_293 = arith.constant 0 : i32
    %433 = tpu.memref_slice %arg3[%c0_i32_290, %c0_i32_291, %c0_i32_292, %c0_i32_293] : memref<1x4x30x30xf32, #tpu.memory_space<vmem>> -> memref<1x4x30x30xf32, #tpu.memory_space<vmem>>
    %434 = tpu.memref_squeeze %433 : memref<1x4x30x30xf32, #tpu.memory_space<vmem>> -> memref<4x30x30xf32, #tpu.memory_space<vmem>>
    %c1_294 = arith.constant 1 : index
    %435 = arith.index_cast %423 : i32 to index
    %c7_295 = arith.constant 7 : index
    %436 = vector.load %434[%c1_294, %435, %c7_295] : memref<4x30x30xf32, #tpu.memory_space<vmem>>, vector<1x8x16xf32>
    %437 = vector.shape_cast %436 : vector<1x8x16xf32> to vector<8x16xf32>
    %c45 = arith.constant 45 : index
    %438 = memref.load %arg2[%c45] : memref<113xf32, #tpu.memory_space<smem>>
    %439 = vector.broadcast %438 : f32 to vector<8x16xf32>
    %440 = arith.mulf %439, %437 : vector<8x16xf32>
    %441 = arith.addf %421, %440 : vector<8x16xf32>
    %c0_i32_296 = arith.constant 0 : i32
    %c0_i32_297 = arith.constant 0 : i32
    %c0_i32_298 = arith.constant 0 : i32
    %c0_i32_299 = arith.constant 0 : i32
    %442 = tpu.memref_slice %arg3[%c0_i32_296, %c0_i32_297, %c0_i32_298, %c0_i32_299] : memref<1x4x30x30xf32, #tpu.memory_space<vmem>> -> memref<1x4x30x30xf32, #tpu.memory_space<vmem>>
    %443 = tpu.memref_squeeze %442 : memref<1x4x30x30xf32, #tpu.memory_space<vmem>> -> memref<4x30x30xf32, #tpu.memory_space<vmem>>
    %c2_300 = arith.constant 2 : index
    %444 = arith.index_cast %423 : i32 to index
    %c7_301 = arith.constant 7 : index
    %445 = vector.load %443[%c2_300, %444, %c7_301] : memref<4x30x30xf32, #tpu.memory_space<vmem>>, vector<1x8x16xf32>
    %446 = vector.shape_cast %445 : vector<1x8x16xf32> to vector<8x16xf32>
    %c46 = arith.constant 46 : index
    %447 = memref.load %arg2[%c46] : memref<113xf32, #tpu.memory_space<smem>>
    %448 = vector.broadcast %447 : f32 to vector<8x16xf32>
    %449 = arith.mulf %448, %446 : vector<8x16xf32>
    %450 = arith.addf %432, %449 : vector<8x16xf32>
    %c0_i32_302 = arith.constant 0 : i32
    %c0_i32_303 = arith.constant 0 : i32
    %c0_i32_304 = arith.constant 0 : i32
    %c0_i32_305 = arith.constant 0 : i32
    %451 = tpu.memref_slice %arg3[%c0_i32_302, %c0_i32_303, %c0_i32_304, %c0_i32_305] : memref<1x4x30x30xf32, #tpu.memory_space<vmem>> -> memref<1x4x30x30xf32, #tpu.memory_space<vmem>>
    %452 = tpu.memref_squeeze %451 : memref<1x4x30x30xf32, #tpu.memory_space<vmem>> -> memref<4x30x30xf32, #tpu.memory_space<vmem>>
    %c3_306 = arith.constant 3 : index
    %453 = arith.index_cast %423 : i32 to index
    %c7_307 = arith.constant 7 : index
    %454 = vector.load %452[%c3_306, %453, %c7_307] : memref<4x30x30xf32, #tpu.memory_space<vmem>>, vector<1x8x16xf32>
    %455 = vector.shape_cast %454 : vector<1x8x16xf32> to vector<8x16xf32>
    %c47 = arith.constant 47 : index
    %456 = memref.load %arg2[%c47] : memref<113xf32, #tpu.memory_space<smem>>
    %457 = vector.broadcast %456 : f32 to vector<8x16xf32>
    %458 = arith.mulf %457, %455 : vector<8x16xf32>
    %459 = arith.addf %441, %458 : vector<8x16xf32>
    %c7_i32_308 = arith.constant 7 : i32
    %460 = arith.addi %1, %c7_i32_308 : i32
    %c-5_i32_309 = arith.constant -5 : i32
    %461 = arith.addi %460, %c-5_i32_309 : i32
    %c0_i32_310 = arith.constant 0 : i32
    %c0_i32_311 = arith.constant 0 : i32
    %c0_i32_312 = arith.constant 0 : i32
    %c0_i32_313 = arith.constant 0 : i32
    %462 = tpu.memref_slice %arg3[%c0_i32_310, %c0_i32_311, %c0_i32_312, %c0_i32_313] : memref<1x4x30x30xf32, #tpu.memory_space<vmem>> -> memref<1x4x30x30xf32, #tpu.memory_space<vmem>>
    %463 = tpu.memref_squeeze %462 : memref<1x4x30x30xf32, #tpu.memory_space<vmem>> -> memref<4x30x30xf32, #tpu.memory_space<vmem>>
    %c0_314 = arith.constant 0 : index
    %464 = arith.index_cast %461 : i32 to index
    %c12_315 = arith.constant 12 : index
    %465 = vector.load %463[%c0_314, %464, %c12_315] : memref<4x30x30xf32, #tpu.memory_space<vmem>>, vector<1x8x16xf32>
    %466 = vector.shape_cast %465 : vector<1x8x16xf32> to vector<8x16xf32>
    %c48 = arith.constant 48 : index
    %467 = memref.load %arg2[%c48] : memref<113xf32, #tpu.memory_space<smem>>
    %468 = vector.broadcast %467 : f32 to vector<8x16xf32>
    %469 = arith.mulf %468, %466 : vector<8x16xf32>
    %470 = arith.addf %450, %469 : vector<8x16xf32>
    %c0_i32_316 = arith.constant 0 : i32
    %c0_i32_317 = arith.constant 0 : i32
    %c0_i32_318 = arith.constant 0 : i32
    %c0_i32_319 = arith.constant 0 : i32
    %471 = tpu.memref_slice %arg3[%c0_i32_316, %c0_i32_317, %c0_i32_318, %c0_i32_319] : memref<1x4x30x30xf32, #tpu.memory_space<vmem>> -> memref<1x4x30x30xf32, #tpu.memory_space<vmem>>
    %472 = tpu.memref_squeeze %471 : memref<1x4x30x30xf32, #tpu.memory_space<vmem>> -> memref<4x30x30xf32, #tpu.memory_space<vmem>>
    %c1_320 = arith.constant 1 : index
    %473 = arith.index_cast %461 : i32 to index
    %c12_321 = arith.constant 12 : index
    %474 = vector.load %472[%c1_320, %473, %c12_321] : memref<4x30x30xf32, #tpu.memory_space<vmem>>, vector<1x8x16xf32>
    %475 = vector.shape_cast %474 : vector<1x8x16xf32> to vector<8x16xf32>
    %c49 = arith.constant 49 : index
    %476 = memref.load %arg2[%c49] : memref<113xf32, #tpu.memory_space<smem>>
    %477 = vector.broadcast %476 : f32 to vector<8x16xf32>
    %478 = arith.mulf %477, %475 : vector<8x16xf32>
    %479 = arith.addf %459, %478 : vector<8x16xf32>
    %c0_i32_322 = arith.constant 0 : i32
    %c0_i32_323 = arith.constant 0 : i32
    %c0_i32_324 = arith.constant 0 : i32
    %c0_i32_325 = arith.constant 0 : i32
    %480 = tpu.memref_slice %arg3[%c0_i32_322, %c0_i32_323, %c0_i32_324, %c0_i32_325] : memref<1x4x30x30xf32, #tpu.memory_space<vmem>> -> memref<1x4x30x30xf32, #tpu.memory_space<vmem>>
    %481 = tpu.memref_squeeze %480 : memref<1x4x30x30xf32, #tpu.memory_space<vmem>> -> memref<4x30x30xf32, #tpu.memory_space<vmem>>
    %c2_326 = arith.constant 2 : index
    %482 = arith.index_cast %461 : i32 to index
    %c12_327 = arith.constant 12 : index
    %483 = vector.load %481[%c2_326, %482, %c12_327] : memref<4x30x30xf32, #tpu.memory_space<vmem>>, vector<1x8x16xf32>
    %484 = vector.shape_cast %483 : vector<1x8x16xf32> to vector<8x16xf32>
    %c50 = arith.constant 50 : index
    %485 = memref.load %arg2[%c50] : memref<113xf32, #tpu.memory_space<smem>>
    %486 = vector.broadcast %485 : f32 to vector<8x16xf32>
    %487 = arith.mulf %486, %484 : vector<8x16xf32>
    %488 = arith.addf %470, %487 : vector<8x16xf32>
    %c0_i32_328 = arith.constant 0 : i32
    %c0_i32_329 = arith.constant 0 : i32
    %c0_i32_330 = arith.constant 0 : i32
    %c0_i32_331 = arith.constant 0 : i32
    %489 = tpu.memref_slice %arg3[%c0_i32_328, %c0_i32_329, %c0_i32_330, %c0_i32_331] : memref<1x4x30x30xf32, #tpu.memory_space<vmem>> -> memref<1x4x30x30xf32, #tpu.memory_space<vmem>>
    %490 = tpu.memref_squeeze %489 : memref<1x4x30x30xf32, #tpu.memory_space<vmem>> -> memref<4x30x30xf32, #tpu.memory_space<vmem>>
    %c3_332 = arith.constant 3 : index
    %491 = arith.index_cast %461 : i32 to index
    %c12_333 = arith.constant 12 : index
    %492 = vector.load %490[%c3_332, %491, %c12_333] : memref<4x30x30xf32, #tpu.memory_space<vmem>>, vector<1x8x16xf32>
    %493 = vector.shape_cast %492 : vector<1x8x16xf32> to vector<8x16xf32>
    %c51 = arith.constant 51 : index
    %494 = memref.load %arg2[%c51] : memref<113xf32, #tpu.memory_space<smem>>
    %495 = vector.broadcast %494 : f32 to vector<8x16xf32>
    %496 = arith.mulf %495, %493 : vector<8x16xf32>
    %497 = arith.addf %479, %496 : vector<8x16xf32>
    %c7_i32_334 = arith.constant 7 : i32
    %498 = arith.addi %1, %c7_i32_334 : i32
    %c0_i32_335 = arith.constant 0 : i32
    %499 = arith.addi %498, %c0_i32_335 : i32
    %c0_i32_336 = arith.constant 0 : i32
    %c0_i32_337 = arith.constant 0 : i32
    %c0_i32_338 = arith.constant 0 : i32
    %c0_i32_339 = arith.constant 0 : i32
    %500 = tpu.memref_slice %arg3[%c0_i32_336, %c0_i32_337, %c0_i32_338, %c0_i32_339] : memref<1x4x30x30xf32, #tpu.memory_space<vmem>> -> memref<1x4x30x30xf32, #tpu.memory_space<vmem>>
    %501 = tpu.memref_squeeze %500 : memref<1x4x30x30xf32, #tpu.memory_space<vmem>> -> memref<4x30x30xf32, #tpu.memory_space<vmem>>
    %c0_340 = arith.constant 0 : index
    %502 = arith.index_cast %499 : i32 to index
    %c2_341 = arith.constant 2 : index
    %503 = vector.load %501[%c0_340, %502, %c2_341] : memref<4x30x30xf32, #tpu.memory_space<vmem>>, vector<1x8x16xf32>
    %504 = vector.shape_cast %503 : vector<1x8x16xf32> to vector<8x16xf32>
    %c52 = arith.constant 52 : index
    %505 = memref.load %arg2[%c52] : memref<113xf32, #tpu.memory_space<smem>>
    %506 = vector.broadcast %505 : f32 to vector<8x16xf32>
    %507 = arith.mulf %506, %504 : vector<8x16xf32>
    %508 = arith.addf %488, %507 : vector<8x16xf32>
    %c0_i32_342 = arith.constant 0 : i32
    %c0_i32_343 = arith.constant 0 : i32
    %c0_i32_344 = arith.constant 0 : i32
    %c0_i32_345 = arith.constant 0 : i32
    %509 = tpu.memref_slice %arg3[%c0_i32_342, %c0_i32_343, %c0_i32_344, %c0_i32_345] : memref<1x4x30x30xf32, #tpu.memory_space<vmem>> -> memref<1x4x30x30xf32, #tpu.memory_space<vmem>>
    %510 = tpu.memref_squeeze %509 : memref<1x4x30x30xf32, #tpu.memory_space<vmem>> -> memref<4x30x30xf32, #tpu.memory_space<vmem>>
    %c1_346 = arith.constant 1 : index
    %511 = arith.index_cast %499 : i32 to index
    %c2_347 = arith.constant 2 : index
    %512 = vector.load %510[%c1_346, %511, %c2_347] : memref<4x30x30xf32, #tpu.memory_space<vmem>>, vector<1x8x16xf32>
    %513 = vector.shape_cast %512 : vector<1x8x16xf32> to vector<8x16xf32>
    %c53 = arith.constant 53 : index
    %514 = memref.load %arg2[%c53] : memref<113xf32, #tpu.memory_space<smem>>
    %515 = vector.broadcast %514 : f32 to vector<8x16xf32>
    %516 = arith.mulf %515, %513 : vector<8x16xf32>
    %517 = arith.addf %497, %516 : vector<8x16xf32>
    %c0_i32_348 = arith.constant 0 : i32
    %c0_i32_349 = arith.constant 0 : i32
    %c0_i32_350 = arith.constant 0 : i32
    %c0_i32_351 = arith.constant 0 : i32
    %518 = tpu.memref_slice %arg3[%c0_i32_348, %c0_i32_349, %c0_i32_350, %c0_i32_351] : memref<1x4x30x30xf32, #tpu.memory_space<vmem>> -> memref<1x4x30x30xf32, #tpu.memory_space<vmem>>
    %519 = tpu.memref_squeeze %518 : memref<1x4x30x30xf32, #tpu.memory_space<vmem>> -> memref<4x30x30xf32, #tpu.memory_space<vmem>>
    %c2_352 = arith.constant 2 : index
    %520 = arith.index_cast %499 : i32 to index
    %c2_353 = arith.constant 2 : index
    %521 = vector.load %519[%c2_352, %520, %c2_353] : memref<4x30x30xf32, #tpu.memory_space<vmem>>, vector<1x8x16xf32>
    %522 = vector.shape_cast %521 : vector<1x8x16xf32> to vector<8x16xf32>
    %c54 = arith.constant 54 : index
    %523 = memref.load %arg2[%c54] : memref<113xf32, #tpu.memory_space<smem>>
    %524 = vector.broadcast %523 : f32 to vector<8x16xf32>
    %525 = arith.mulf %524, %522 : vector<8x16xf32>
    %526 = arith.addf %508, %525 : vector<8x16xf32>
    %c0_i32_354 = arith.constant 0 : i32
    %c0_i32_355 = arith.constant 0 : i32
    %c0_i32_356 = arith.constant 0 : i32
    %c0_i32_357 = arith.constant 0 : i32
    %527 = tpu.memref_slice %arg3[%c0_i32_354, %c0_i32_355, %c0_i32_356, %c0_i32_357] : memref<1x4x30x30xf32, #tpu.memory_space<vmem>> -> memref<1x4x30x30xf32, #tpu.memory_space<vmem>>
    %528 = tpu.memref_squeeze %527 : memref<1x4x30x30xf32, #tpu.memory_space<vmem>> -> memref<4x30x30xf32, #tpu.memory_space<vmem>>
    %c3_358 = arith.constant 3 : index
    %529 = arith.index_cast %499 : i32 to index
    %c2_359 = arith.constant 2 : index
    %530 = vector.load %528[%c3_358, %529, %c2_359] : memref<4x30x30xf32, #tpu.memory_space<vmem>>, vector<1x8x16xf32>
    %531 = vector.shape_cast %530 : vector<1x8x16xf32> to vector<8x16xf32>
    %c55 = arith.constant 55 : index
    %532 = memref.load %arg2[%c55] : memref<113xf32, #tpu.memory_space<smem>>
    %533 = vector.broadcast %532 : f32 to vector<8x16xf32>
    %534 = arith.mulf %533, %531 : vector<8x16xf32>
    %535 = arith.addf %517, %534 : vector<8x16xf32>
    %c7_i32_360 = arith.constant 7 : i32
    %536 = arith.addi %1, %c7_i32_360 : i32
    %c0_i32_361 = arith.constant 0 : i32
    %537 = arith.addi %536, %c0_i32_361 : i32
    %c0_i32_362 = arith.constant 0 : i32
    %c0_i32_363 = arith.constant 0 : i32
    %c0_i32_364 = arith.constant 0 : i32
    %c0_i32_365 = arith.constant 0 : i32
    %538 = tpu.memref_slice %arg3[%c0_i32_362, %c0_i32_363, %c0_i32_364, %c0_i32_365] : memref<1x4x30x30xf32, #tpu.memory_space<vmem>> -> memref<1x4x30x30xf32, #tpu.memory_space<vmem>>
    %539 = tpu.memref_squeeze %538 : memref<1x4x30x30xf32, #tpu.memory_space<vmem>> -> memref<4x30x30xf32, #tpu.memory_space<vmem>>
    %c0_366 = arith.constant 0 : index
    %540 = arith.index_cast %537 : i32 to index
    %c7_367 = arith.constant 7 : index
    %541 = vector.load %539[%c0_366, %540, %c7_367] : memref<4x30x30xf32, #tpu.memory_space<vmem>>, vector<1x8x16xf32>
    %542 = vector.shape_cast %541 : vector<1x8x16xf32> to vector<8x16xf32>
    %c56 = arith.constant 56 : index
    %543 = memref.load %arg2[%c56] : memref<113xf32, #tpu.memory_space<smem>>
    %544 = vector.broadcast %543 : f32 to vector<8x16xf32>
    %545 = arith.mulf %544, %542 : vector<8x16xf32>
    %546 = arith.addf %526, %545 : vector<8x16xf32>
    %c0_i32_368 = arith.constant 0 : i32
    %c0_i32_369 = arith.constant 0 : i32
    %c0_i32_370 = arith.constant 0 : i32
    %c0_i32_371 = arith.constant 0 : i32
    %547 = tpu.memref_slice %arg3[%c0_i32_368, %c0_i32_369, %c0_i32_370, %c0_i32_371] : memref<1x4x30x30xf32, #tpu.memory_space<vmem>> -> memref<1x4x30x30xf32, #tpu.memory_space<vmem>>
    %548 = tpu.memref_squeeze %547 : memref<1x4x30x30xf32, #tpu.memory_space<vmem>> -> memref<4x30x30xf32, #tpu.memory_space<vmem>>
    %c1_372 = arith.constant 1 : index
    %549 = arith.index_cast %537 : i32 to index
    %c7_373 = arith.constant 7 : index
    %550 = vector.load %548[%c1_372, %549, %c7_373] : memref<4x30x30xf32, #tpu.memory_space<vmem>>, vector<1x8x16xf32>
    %551 = vector.shape_cast %550 : vector<1x8x16xf32> to vector<8x16xf32>
    %c57 = arith.constant 57 : index
    %552 = memref.load %arg2[%c57] : memref<113xf32, #tpu.memory_space<smem>>
    %553 = vector.broadcast %552 : f32 to vector<8x16xf32>
    %554 = arith.mulf %553, %551 : vector<8x16xf32>
    %555 = arith.addf %535, %554 : vector<8x16xf32>
    %c0_i32_374 = arith.constant 0 : i32
    %c0_i32_375 = arith.constant 0 : i32
    %c0_i32_376 = arith.constant 0 : i32
    %c0_i32_377 = arith.constant 0 : i32
    %556 = tpu.memref_slice %arg3[%c0_i32_374, %c0_i32_375, %c0_i32_376, %c0_i32_377] : memref<1x4x30x30xf32, #tpu.memory_space<vmem>> -> memref<1x4x30x30xf32, #tpu.memory_space<vmem>>
    %557 = tpu.memref_squeeze %556 : memref<1x4x30x30xf32, #tpu.memory_space<vmem>> -> memref<4x30x30xf32, #tpu.memory_space<vmem>>
    %c2_378 = arith.constant 2 : index
    %558 = arith.index_cast %537 : i32 to index
    %c7_379 = arith.constant 7 : index
    %559 = vector.load %557[%c2_378, %558, %c7_379] : memref<4x30x30xf32, #tpu.memory_space<vmem>>, vector<1x8x16xf32>
    %560 = vector.shape_cast %559 : vector<1x8x16xf32> to vector<8x16xf32>
    %c58 = arith.constant 58 : index
    %561 = memref.load %arg2[%c58] : memref<113xf32, #tpu.memory_space<smem>>
    %562 = vector.broadcast %561 : f32 to vector<8x16xf32>
    %563 = arith.mulf %562, %560 : vector<8x16xf32>
    %564 = arith.addf %546, %563 : vector<8x16xf32>
    %c0_i32_380 = arith.constant 0 : i32
    %c0_i32_381 = arith.constant 0 : i32
    %c0_i32_382 = arith.constant 0 : i32
    %c0_i32_383 = arith.constant 0 : i32
    %565 = tpu.memref_slice %arg3[%c0_i32_380, %c0_i32_381, %c0_i32_382, %c0_i32_383] : memref<1x4x30x30xf32, #tpu.memory_space<vmem>> -> memref<1x4x30x30xf32, #tpu.memory_space<vmem>>
    %566 = tpu.memref_squeeze %565 : memref<1x4x30x30xf32, #tpu.memory_space<vmem>> -> memref<4x30x30xf32, #tpu.memory_space<vmem>>
    %c3_384 = arith.constant 3 : index
    %567 = arith.index_cast %537 : i32 to index
    %c7_385 = arith.constant 7 : index
    %568 = vector.load %566[%c3_384, %567, %c7_385] : memref<4x30x30xf32, #tpu.memory_space<vmem>>, vector<1x8x16xf32>
    %569 = vector.shape_cast %568 : vector<1x8x16xf32> to vector<8x16xf32>
    %c59 = arith.constant 59 : index
    %570 = memref.load %arg2[%c59] : memref<113xf32, #tpu.memory_space<smem>>
    %571 = vector.broadcast %570 : f32 to vector<8x16xf32>
    %572 = arith.mulf %571, %569 : vector<8x16xf32>
    %573 = arith.addf %555, %572 : vector<8x16xf32>
    %c7_i32_386 = arith.constant 7 : i32
    %574 = arith.addi %1, %c7_i32_386 : i32
    %c0_i32_387 = arith.constant 0 : i32
    %575 = arith.addi %574, %c0_i32_387 : i32
    %c0_i32_388 = arith.constant 0 : i32
    %c0_i32_389 = arith.constant 0 : i32
    %c0_i32_390 = arith.constant 0 : i32
    %c0_i32_391 = arith.constant 0 : i32
    %576 = tpu.memref_slice %arg3[%c0_i32_388, %c0_i32_389, %c0_i32_390, %c0_i32_391] : memref<1x4x30x30xf32, #tpu.memory_space<vmem>> -> memref<1x4x30x30xf32, #tpu.memory_space<vmem>>
    %577 = tpu.memref_squeeze %576 : memref<1x4x30x30xf32, #tpu.memory_space<vmem>> -> memref<4x30x30xf32, #tpu.memory_space<vmem>>
    %c0_392 = arith.constant 0 : index
    %578 = arith.index_cast %575 : i32 to index
    %c12_393 = arith.constant 12 : index
    %579 = vector.load %577[%c0_392, %578, %c12_393] : memref<4x30x30xf32, #tpu.memory_space<vmem>>, vector<1x8x16xf32>
    %580 = vector.shape_cast %579 : vector<1x8x16xf32> to vector<8x16xf32>
    %c60 = arith.constant 60 : index
    %581 = memref.load %arg2[%c60] : memref<113xf32, #tpu.memory_space<smem>>
    %582 = vector.broadcast %581 : f32 to vector<8x16xf32>
    %583 = arith.mulf %582, %580 : vector<8x16xf32>
    %584 = arith.addf %564, %583 : vector<8x16xf32>
    %c0_i32_394 = arith.constant 0 : i32
    %c0_i32_395 = arith.constant 0 : i32
    %c0_i32_396 = arith.constant 0 : i32
    %c0_i32_397 = arith.constant 0 : i32
    %585 = tpu.memref_slice %arg3[%c0_i32_394, %c0_i32_395, %c0_i32_396, %c0_i32_397] : memref<1x4x30x30xf32, #tpu.memory_space<vmem>> -> memref<1x4x30x30xf32, #tpu.memory_space<vmem>>
    %586 = tpu.memref_squeeze %585 : memref<1x4x30x30xf32, #tpu.memory_space<vmem>> -> memref<4x30x30xf32, #tpu.memory_space<vmem>>
    %c1_398 = arith.constant 1 : index
    %587 = arith.index_cast %575 : i32 to index
    %c12_399 = arith.constant 12 : index
    %588 = vector.load %586[%c1_398, %587, %c12_399] : memref<4x30x30xf32, #tpu.memory_space<vmem>>, vector<1x8x16xf32>
    %589 = vector.shape_cast %588 : vector<1x8x16xf32> to vector<8x16xf32>
    %c61 = arith.constant 61 : index
    %590 = memref.load %arg2[%c61] : memref<113xf32, #tpu.memory_space<smem>>
    %591 = vector.broadcast %590 : f32 to vector<8x16xf32>
    %592 = arith.mulf %591, %589 : vector<8x16xf32>
    %593 = arith.addf %573, %592 : vector<8x16xf32>
    %c0_i32_400 = arith.constant 0 : i32
    %c0_i32_401 = arith.constant 0 : i32
    %c0_i32_402 = arith.constant 0 : i32
    %c0_i32_403 = arith.constant 0 : i32
    %594 = tpu.memref_slice %arg3[%c0_i32_400, %c0_i32_401, %c0_i32_402, %c0_i32_403] : memref<1x4x30x30xf32, #tpu.memory_space<vmem>> -> memref<1x4x30x30xf32, #tpu.memory_space<vmem>>
    %595 = tpu.memref_squeeze %594 : memref<1x4x30x30xf32, #tpu.memory_space<vmem>> -> memref<4x30x30xf32, #tpu.memory_space<vmem>>
    %c2_404 = arith.constant 2 : index
    %596 = arith.index_cast %575 : i32 to index
    %c12_405 = arith.constant 12 : index
    %597 = vector.load %595[%c2_404, %596, %c12_405] : memref<4x30x30xf32, #tpu.memory_space<vmem>>, vector<1x8x16xf32>
    %598 = vector.shape_cast %597 : vector<1x8x16xf32> to vector<8x16xf32>
    %c62 = arith.constant 62 : index
    %599 = memref.load %arg2[%c62] : memref<113xf32, #tpu.memory_space<smem>>
    %600 = vector.broadcast %599 : f32 to vector<8x16xf32>
    %601 = arith.mulf %600, %598 : vector<8x16xf32>
    %602 = arith.addf %584, %601 : vector<8x16xf32>
    %c0_i32_406 = arith.constant 0 : i32
    %c0_i32_407 = arith.constant 0 : i32
    %c0_i32_408 = arith.constant 0 : i32
    %c0_i32_409 = arith.constant 0 : i32
    %603 = tpu.memref_slice %arg3[%c0_i32_406, %c0_i32_407, %c0_i32_408, %c0_i32_409] : memref<1x4x30x30xf32, #tpu.memory_space<vmem>> -> memref<1x4x30x30xf32, #tpu.memory_space<vmem>>
    %604 = tpu.memref_squeeze %603 : memref<1x4x30x30xf32, #tpu.memory_space<vmem>> -> memref<4x30x30xf32, #tpu.memory_space<vmem>>
    %c3_410 = arith.constant 3 : index
    %605 = arith.index_cast %575 : i32 to index
    %c12_411 = arith.constant 12 : index
    %606 = vector.load %604[%c3_410, %605, %c12_411] : memref<4x30x30xf32, #tpu.memory_space<vmem>>, vector<1x8x16xf32>
    %607 = vector.shape_cast %606 : vector<1x8x16xf32> to vector<8x16xf32>
    %c63 = arith.constant 63 : index
    %608 = memref.load %arg2[%c63] : memref<113xf32, #tpu.memory_space<smem>>
    %609 = vector.broadcast %608 : f32 to vector<8x16xf32>
    %610 = arith.mulf %609, %607 : vector<8x16xf32>
    %611 = arith.addf %593, %610 : vector<8x16xf32>
    %c7_i32_412 = arith.constant 7 : i32
    %612 = arith.addi %1, %c7_i32_412 : i32
    %c5_i32 = arith.constant 5 : i32
    %613 = arith.addi %612, %c5_i32 : i32
    %c0_i32_413 = arith.constant 0 : i32
    %c0_i32_414 = arith.constant 0 : i32
    %c0_i32_415 = arith.constant 0 : i32
    %c0_i32_416 = arith.constant 0 : i32
    %614 = tpu.memref_slice %arg3[%c0_i32_413, %c0_i32_414, %c0_i32_415, %c0_i32_416] : memref<1x4x30x30xf32, #tpu.memory_space<vmem>> -> memref<1x4x30x30xf32, #tpu.memory_space<vmem>>
    %615 = tpu.memref_squeeze %614 : memref<1x4x30x30xf32, #tpu.memory_space<vmem>> -> memref<4x30x30xf32, #tpu.memory_space<vmem>>
    %c0_417 = arith.constant 0 : index
    %616 = arith.index_cast %613 : i32 to index
    %c2_418 = arith.constant 2 : index
    %617 = vector.load %615[%c0_417, %616, %c2_418] : memref<4x30x30xf32, #tpu.memory_space<vmem>>, vector<1x8x16xf32>
    %618 = vector.shape_cast %617 : vector<1x8x16xf32> to vector<8x16xf32>
    %c64 = arith.constant 64 : index
    %619 = memref.load %arg2[%c64] : memref<113xf32, #tpu.memory_space<smem>>
    %620 = vector.broadcast %619 : f32 to vector<8x16xf32>
    %621 = arith.mulf %620, %618 : vector<8x16xf32>
    %622 = arith.addf %602, %621 : vector<8x16xf32>
    %c0_i32_419 = arith.constant 0 : i32
    %c0_i32_420 = arith.constant 0 : i32
    %c0_i32_421 = arith.constant 0 : i32
    %c0_i32_422 = arith.constant 0 : i32
    %623 = tpu.memref_slice %arg3[%c0_i32_419, %c0_i32_420, %c0_i32_421, %c0_i32_422] : memref<1x4x30x30xf32, #tpu.memory_space<vmem>> -> memref<1x4x30x30xf32, #tpu.memory_space<vmem>>
    %624 = tpu.memref_squeeze %623 : memref<1x4x30x30xf32, #tpu.memory_space<vmem>> -> memref<4x30x30xf32, #tpu.memory_space<vmem>>
    %c1_423 = arith.constant 1 : index
    %625 = arith.index_cast %613 : i32 to index
    %c2_424 = arith.constant 2 : index
    %626 = vector.load %624[%c1_423, %625, %c2_424] : memref<4x30x30xf32, #tpu.memory_space<vmem>>, vector<1x8x16xf32>
    %627 = vector.shape_cast %626 : vector<1x8x16xf32> to vector<8x16xf32>
    %c65 = arith.constant 65 : index
    %628 = memref.load %arg2[%c65] : memref<113xf32, #tpu.memory_space<smem>>
    %629 = vector.broadcast %628 : f32 to vector<8x16xf32>
    %630 = arith.mulf %629, %627 : vector<8x16xf32>
    %631 = arith.addf %611, %630 : vector<8x16xf32>
    %c0_i32_425 = arith.constant 0 : i32
    %c0_i32_426 = arith.constant 0 : i32
    %c0_i32_427 = arith.constant 0 : i32
    %c0_i32_428 = arith.constant 0 : i32
    %632 = tpu.memref_slice %arg3[%c0_i32_425, %c0_i32_426, %c0_i32_427, %c0_i32_428] : memref<1x4x30x30xf32, #tpu.memory_space<vmem>> -> memref<1x4x30x30xf32, #tpu.memory_space<vmem>>
    %633 = tpu.memref_squeeze %632 : memref<1x4x30x30xf32, #tpu.memory_space<vmem>> -> memref<4x30x30xf32, #tpu.memory_space<vmem>>
    %c2_429 = arith.constant 2 : index
    %634 = arith.index_cast %613 : i32 to index
    %c2_430 = arith.constant 2 : index
    %635 = vector.load %633[%c2_429, %634, %c2_430] : memref<4x30x30xf32, #tpu.memory_space<vmem>>, vector<1x8x16xf32>
    %636 = vector.shape_cast %635 : vector<1x8x16xf32> to vector<8x16xf32>
    %c66 = arith.constant 66 : index
    %637 = memref.load %arg2[%c66] : memref<113xf32, #tpu.memory_space<smem>>
    %638 = vector.broadcast %637 : f32 to vector<8x16xf32>
    %639 = arith.mulf %638, %636 : vector<8x16xf32>
    %640 = arith.addf %622, %639 : vector<8x16xf32>
    %c0_i32_431 = arith.constant 0 : i32
    %c0_i32_432 = arith.constant 0 : i32
    %c0_i32_433 = arith.constant 0 : i32
    %c0_i32_434 = arith.constant 0 : i32
    %641 = tpu.memref_slice %arg3[%c0_i32_431, %c0_i32_432, %c0_i32_433, %c0_i32_434] : memref<1x4x30x30xf32, #tpu.memory_space<vmem>> -> memref<1x4x30x30xf32, #tpu.memory_space<vmem>>
    %642 = tpu.memref_squeeze %641 : memref<1x4x30x30xf32, #tpu.memory_space<vmem>> -> memref<4x30x30xf32, #tpu.memory_space<vmem>>
    %c3_435 = arith.constant 3 : index
    %643 = arith.index_cast %613 : i32 to index
    %c2_436 = arith.constant 2 : index
    %644 = vector.load %642[%c3_435, %643, %c2_436] : memref<4x30x30xf32, #tpu.memory_space<vmem>>, vector<1x8x16xf32>
    %645 = vector.shape_cast %644 : vector<1x8x16xf32> to vector<8x16xf32>
    %c67 = arith.constant 67 : index
    %646 = memref.load %arg2[%c67] : memref<113xf32, #tpu.memory_space<smem>>
    %647 = vector.broadcast %646 : f32 to vector<8x16xf32>
    %648 = arith.mulf %647, %645 : vector<8x16xf32>
    %649 = arith.addf %631, %648 : vector<8x16xf32>
    %c7_i32_437 = arith.constant 7 : i32
    %650 = arith.addi %1, %c7_i32_437 : i32
    %c5_i32_438 = arith.constant 5 : i32
    %651 = arith.addi %650, %c5_i32_438 : i32
    %c0_i32_439 = arith.constant 0 : i32
    %c0_i32_440 = arith.constant 0 : i32
    %c0_i32_441 = arith.constant 0 : i32
    %c0_i32_442 = arith.constant 0 : i32
    %652 = tpu.memref_slice %arg3[%c0_i32_439, %c0_i32_440, %c0_i32_441, %c0_i32_442] : memref<1x4x30x30xf32, #tpu.memory_space<vmem>> -> memref<1x4x30x30xf32, #tpu.memory_space<vmem>>
    %653 = tpu.memref_squeeze %652 : memref<1x4x30x30xf32, #tpu.memory_space<vmem>> -> memref<4x30x30xf32, #tpu.memory_space<vmem>>
    %c0_443 = arith.constant 0 : index
    %654 = arith.index_cast %651 : i32 to index
    %c7_444 = arith.constant 7 : index
    %655 = vector.load %653[%c0_443, %654, %c7_444] : memref<4x30x30xf32, #tpu.memory_space<vmem>>, vector<1x8x16xf32>
    %656 = vector.shape_cast %655 : vector<1x8x16xf32> to vector<8x16xf32>
    %c68 = arith.constant 68 : index
    %657 = memref.load %arg2[%c68] : memref<113xf32, #tpu.memory_space<smem>>
    %658 = vector.broadcast %657 : f32 to vector<8x16xf32>
    %659 = arith.mulf %658, %656 : vector<8x16xf32>
    %660 = arith.addf %640, %659 : vector<8x16xf32>
    %c0_i32_445 = arith.constant 0 : i32
    %c0_i32_446 = arith.constant 0 : i32
    %c0_i32_447 = arith.constant 0 : i32
    %c0_i32_448 = arith.constant 0 : i32
    %661 = tpu.memref_slice %arg3[%c0_i32_445, %c0_i32_446, %c0_i32_447, %c0_i32_448] : memref<1x4x30x30xf32, #tpu.memory_space<vmem>> -> memref<1x4x30x30xf32, #tpu.memory_space<vmem>>
    %662 = tpu.memref_squeeze %661 : memref<1x4x30x30xf32, #tpu.memory_space<vmem>> -> memref<4x30x30xf32, #tpu.memory_space<vmem>>
    %c1_449 = arith.constant 1 : index
    %663 = arith.index_cast %651 : i32 to index
    %c7_450 = arith.constant 7 : index
    %664 = vector.load %662[%c1_449, %663, %c7_450] : memref<4x30x30xf32, #tpu.memory_space<vmem>>, vector<1x8x16xf32>
    %665 = vector.shape_cast %664 : vector<1x8x16xf32> to vector<8x16xf32>
    %c69 = arith.constant 69 : index
    %666 = memref.load %arg2[%c69] : memref<113xf32, #tpu.memory_space<smem>>
    %667 = vector.broadcast %666 : f32 to vector<8x16xf32>
    %668 = arith.mulf %667, %665 : vector<8x16xf32>
    %669 = arith.addf %649, %668 : vector<8x16xf32>
    %c0_i32_451 = arith.constant 0 : i32
    %c0_i32_452 = arith.constant 0 : i32
    %c0_i32_453 = arith.constant 0 : i32
    %c0_i32_454 = arith.constant 0 : i32
    %670 = tpu.memref_slice %arg3[%c0_i32_451, %c0_i32_452, %c0_i32_453, %c0_i32_454] : memref<1x4x30x30xf32, #tpu.memory_space<vmem>> -> memref<1x4x30x30xf32, #tpu.memory_space<vmem>>
    %671 = tpu.memref_squeeze %670 : memref<1x4x30x30xf32, #tpu.memory_space<vmem>> -> memref<4x30x30xf32, #tpu.memory_space<vmem>>
    %c2_455 = arith.constant 2 : index
    %672 = arith.index_cast %651 : i32 to index
    %c7_456 = arith.constant 7 : index
    %673 = vector.load %671[%c2_455, %672, %c7_456] : memref<4x30x30xf32, #tpu.memory_space<vmem>>, vector<1x8x16xf32>
    %674 = vector.shape_cast %673 : vector<1x8x16xf32> to vector<8x16xf32>
    %c70 = arith.constant 70 : index
    %675 = memref.load %arg2[%c70] : memref<113xf32, #tpu.memory_space<smem>>
    %676 = vector.broadcast %675 : f32 to vector<8x16xf32>
    %677 = arith.mulf %676, %674 : vector<8x16xf32>
    %678 = arith.addf %660, %677 : vector<8x16xf32>
    %c0_i32_457 = arith.constant 0 : i32
    %c0_i32_458 = arith.constant 0 : i32
    %c0_i32_459 = arith.constant 0 : i32
    %c0_i32_460 = arith.constant 0 : i32
    %679 = tpu.memref_slice %arg3[%c0_i32_457, %c0_i32_458, %c0_i32_459, %c0_i32_460] : memref<1x4x30x30xf32, #tpu.memory_space<vmem>> -> memref<1x4x30x30xf32, #tpu.memory_space<vmem>>
    %680 = tpu.memref_squeeze %679 : memref<1x4x30x30xf32, #tpu.memory_space<vmem>> -> memref<4x30x30xf32, #tpu.memory_space<vmem>>
    %c3_461 = arith.constant 3 : index
    %681 = arith.index_cast %651 : i32 to index
    %c7_462 = arith.constant 7 : index
    %682 = vector.load %680[%c3_461, %681, %c7_462] : memref<4x30x30xf32, #tpu.memory_space<vmem>>, vector<1x8x16xf32>
    %683 = vector.shape_cast %682 : vector<1x8x16xf32> to vector<8x16xf32>
    %c71 = arith.constant 71 : index
    %684 = memref.load %arg2[%c71] : memref<113xf32, #tpu.memory_space<smem>>
    %685 = vector.broadcast %684 : f32 to vector<8x16xf32>
    %686 = arith.mulf %685, %683 : vector<8x16xf32>
    %687 = arith.addf %669, %686 : vector<8x16xf32>
    %c7_i32_463 = arith.constant 7 : i32
    %688 = arith.addi %1, %c7_i32_463 : i32
    %c5_i32_464 = arith.constant 5 : i32
    %689 = arith.addi %688, %c5_i32_464 : i32
    %c0_i32_465 = arith.constant 0 : i32
    %c0_i32_466 = arith.constant 0 : i32
    %c0_i32_467 = arith.constant 0 : i32
    %c0_i32_468 = arith.constant 0 : i32
    %690 = tpu.memref_slice %arg3[%c0_i32_465, %c0_i32_466, %c0_i32_467, %c0_i32_468] : memref<1x4x30x30xf32, #tpu.memory_space<vmem>> -> memref<1x4x30x30xf32, #tpu.memory_space<vmem>>
    %691 = tpu.memref_squeeze %690 : memref<1x4x30x30xf32, #tpu.memory_space<vmem>> -> memref<4x30x30xf32, #tpu.memory_space<vmem>>
    %c0_469 = arith.constant 0 : index
    %692 = arith.index_cast %689 : i32 to index
    %c12_470 = arith.constant 12 : index
    %693 = vector.load %691[%c0_469, %692, %c12_470] : memref<4x30x30xf32, #tpu.memory_space<vmem>>, vector<1x8x16xf32>
    %694 = vector.shape_cast %693 : vector<1x8x16xf32> to vector<8x16xf32>
    %c72 = arith.constant 72 : index
    %695 = memref.load %arg2[%c72] : memref<113xf32, #tpu.memory_space<smem>>
    %696 = vector.broadcast %695 : f32 to vector<8x16xf32>
    %697 = arith.mulf %696, %694 : vector<8x16xf32>
    %698 = arith.addf %678, %697 : vector<8x16xf32>
    %c0_i32_471 = arith.constant 0 : i32
    %c0_i32_472 = arith.constant 0 : i32
    %c0_i32_473 = arith.constant 0 : i32
    %c0_i32_474 = arith.constant 0 : i32
    %699 = tpu.memref_slice %arg3[%c0_i32_471, %c0_i32_472, %c0_i32_473, %c0_i32_474] : memref<1x4x30x30xf32, #tpu.memory_space<vmem>> -> memref<1x4x30x30xf32, #tpu.memory_space<vmem>>
    %700 = tpu.memref_squeeze %699 : memref<1x4x30x30xf32, #tpu.memory_space<vmem>> -> memref<4x30x30xf32, #tpu.memory_space<vmem>>
    %c1_475 = arith.constant 1 : index
    %701 = arith.index_cast %689 : i32 to index
    %c12_476 = arith.constant 12 : index
    %702 = vector.load %700[%c1_475, %701, %c12_476] : memref<4x30x30xf32, #tpu.memory_space<vmem>>, vector<1x8x16xf32>
    %703 = vector.shape_cast %702 : vector<1x8x16xf32> to vector<8x16xf32>
    %c73 = arith.constant 73 : index
    %704 = memref.load %arg2[%c73] : memref<113xf32, #tpu.memory_space<smem>>
    %705 = vector.broadcast %704 : f32 to vector<8x16xf32>
    %706 = arith.mulf %705, %703 : vector<8x16xf32>
    %707 = arith.addf %687, %706 : vector<8x16xf32>
    %c0_i32_477 = arith.constant 0 : i32
    %c0_i32_478 = arith.constant 0 : i32
    %c0_i32_479 = arith.constant 0 : i32
    %c0_i32_480 = arith.constant 0 : i32
    %708 = tpu.memref_slice %arg3[%c0_i32_477, %c0_i32_478, %c0_i32_479, %c0_i32_480] : memref<1x4x30x30xf32, #tpu.memory_space<vmem>> -> memref<1x4x30x30xf32, #tpu.memory_space<vmem>>
    %709 = tpu.memref_squeeze %708 : memref<1x4x30x30xf32, #tpu.memory_space<vmem>> -> memref<4x30x30xf32, #tpu.memory_space<vmem>>
    %c2_481 = arith.constant 2 : index
    %710 = arith.index_cast %689 : i32 to index
    %c12_482 = arith.constant 12 : index
    %711 = vector.load %709[%c2_481, %710, %c12_482] : memref<4x30x30xf32, #tpu.memory_space<vmem>>, vector<1x8x16xf32>
    %712 = vector.shape_cast %711 : vector<1x8x16xf32> to vector<8x16xf32>
    %c74 = arith.constant 74 : index
    %713 = memref.load %arg2[%c74] : memref<113xf32, #tpu.memory_space<smem>>
    %714 = vector.broadcast %713 : f32 to vector<8x16xf32>
    %715 = arith.mulf %714, %712 : vector<8x16xf32>
    %716 = arith.addf %698, %715 : vector<8x16xf32>
    %c0_i32_483 = arith.constant 0 : i32
    %c0_i32_484 = arith.constant 0 : i32
    %c0_i32_485 = arith.constant 0 : i32
    %c0_i32_486 = arith.constant 0 : i32
    %717 = tpu.memref_slice %arg3[%c0_i32_483, %c0_i32_484, %c0_i32_485, %c0_i32_486] : memref<1x4x30x30xf32, #tpu.memory_space<vmem>> -> memref<1x4x30x30xf32, #tpu.memory_space<vmem>>
    %718 = tpu.memref_squeeze %717 : memref<1x4x30x30xf32, #tpu.memory_space<vmem>> -> memref<4x30x30xf32, #tpu.memory_space<vmem>>
    %c3_487 = arith.constant 3 : index
    %719 = arith.index_cast %689 : i32 to index
    %c12_488 = arith.constant 12 : index
    %720 = vector.load %718[%c3_487, %719, %c12_488] : memref<4x30x30xf32, #tpu.memory_space<vmem>>, vector<1x8x16xf32>
    %721 = vector.shape_cast %720 : vector<1x8x16xf32> to vector<8x16xf32>
    %c75 = arith.constant 75 : index
    %722 = memref.load %arg2[%c75] : memref<113xf32, #tpu.memory_space<smem>>
    %723 = vector.broadcast %722 : f32 to vector<8x16xf32>
    %724 = arith.mulf %723, %721 : vector<8x16xf32>
    %725 = arith.addf %707, %724 : vector<8x16xf32>
    %c7_i32_489 = arith.constant 7 : i32
    %726 = arith.addi %1, %c7_i32_489 : i32
    %c-7_i32 = arith.constant -7 : i32
    %727 = arith.addi %726, %c-7_i32 : i32
    %c0_i32_490 = arith.constant 0 : i32
    %c0_i32_491 = arith.constant 0 : i32
    %c0_i32_492 = arith.constant 0 : i32
    %c0_i32_493 = arith.constant 0 : i32
    %728 = tpu.memref_slice %arg3[%c0_i32_490, %c0_i32_491, %c0_i32_492, %c0_i32_493] : memref<1x4x30x30xf32, #tpu.memory_space<vmem>> -> memref<1x4x30x30xf32, #tpu.memory_space<vmem>>
    %729 = tpu.memref_squeeze %728 : memref<1x4x30x30xf32, #tpu.memory_space<vmem>> -> memref<4x30x30xf32, #tpu.memory_space<vmem>>
    %c0_494 = arith.constant 0 : index
    %730 = arith.index_cast %727 : i32 to index
    %c0_495 = arith.constant 0 : index
    %731 = vector.load %729[%c0_494, %730, %c0_495] : memref<4x30x30xf32, #tpu.memory_space<vmem>>, vector<1x8x16xf32>
    %732 = vector.shape_cast %731 : vector<1x8x16xf32> to vector<8x16xf32>
    %c76 = arith.constant 76 : index
    %733 = memref.load %arg2[%c76] : memref<113xf32, #tpu.memory_space<smem>>
    %734 = vector.broadcast %733 : f32 to vector<8x16xf32>
    %735 = arith.mulf %734, %732 : vector<8x16xf32>
    %736 = arith.addf %716, %735 : vector<8x16xf32>
    %c0_i32_496 = arith.constant 0 : i32
    %c0_i32_497 = arith.constant 0 : i32
    %c0_i32_498 = arith.constant 0 : i32
    %c0_i32_499 = arith.constant 0 : i32
    %737 = tpu.memref_slice %arg3[%c0_i32_496, %c0_i32_497, %c0_i32_498, %c0_i32_499] : memref<1x4x30x30xf32, #tpu.memory_space<vmem>> -> memref<1x4x30x30xf32, #tpu.memory_space<vmem>>
    %738 = tpu.memref_squeeze %737 : memref<1x4x30x30xf32, #tpu.memory_space<vmem>> -> memref<4x30x30xf32, #tpu.memory_space<vmem>>
    %c1_500 = arith.constant 1 : index
    %739 = arith.index_cast %727 : i32 to index
    %c0_501 = arith.constant 0 : index
    %740 = vector.load %738[%c1_500, %739, %c0_501] : memref<4x30x30xf32, #tpu.memory_space<vmem>>, vector<1x8x16xf32>
    %741 = vector.shape_cast %740 : vector<1x8x16xf32> to vector<8x16xf32>
    %c77 = arith.constant 77 : index
    %742 = memref.load %arg2[%c77] : memref<113xf32, #tpu.memory_space<smem>>
    %743 = vector.broadcast %742 : f32 to vector<8x16xf32>
    %744 = arith.mulf %743, %741 : vector<8x16xf32>
    %745 = arith.addf %725, %744 : vector<8x16xf32>
    %c0_i32_502 = arith.constant 0 : i32
    %c0_i32_503 = arith.constant 0 : i32
    %c0_i32_504 = arith.constant 0 : i32
    %c0_i32_505 = arith.constant 0 : i32
    %746 = tpu.memref_slice %arg3[%c0_i32_502, %c0_i32_503, %c0_i32_504, %c0_i32_505] : memref<1x4x30x30xf32, #tpu.memory_space<vmem>> -> memref<1x4x30x30xf32, #tpu.memory_space<vmem>>
    %747 = tpu.memref_squeeze %746 : memref<1x4x30x30xf32, #tpu.memory_space<vmem>> -> memref<4x30x30xf32, #tpu.memory_space<vmem>>
    %c2_506 = arith.constant 2 : index
    %748 = arith.index_cast %727 : i32 to index
    %c0_507 = arith.constant 0 : index
    %749 = vector.load %747[%c2_506, %748, %c0_507] : memref<4x30x30xf32, #tpu.memory_space<vmem>>, vector<1x8x16xf32>
    %750 = vector.shape_cast %749 : vector<1x8x16xf32> to vector<8x16xf32>
    %c78 = arith.constant 78 : index
    %751 = memref.load %arg2[%c78] : memref<113xf32, #tpu.memory_space<smem>>
    %752 = vector.broadcast %751 : f32 to vector<8x16xf32>
    %753 = arith.mulf %752, %750 : vector<8x16xf32>
    %754 = arith.addf %736, %753 : vector<8x16xf32>
    %c0_i32_508 = arith.constant 0 : i32
    %c0_i32_509 = arith.constant 0 : i32
    %c0_i32_510 = arith.constant 0 : i32
    %c0_i32_511 = arith.constant 0 : i32
    %755 = tpu.memref_slice %arg3[%c0_i32_508, %c0_i32_509, %c0_i32_510, %c0_i32_511] : memref<1x4x30x30xf32, #tpu.memory_space<vmem>> -> memref<1x4x30x30xf32, #tpu.memory_space<vmem>>
    %756 = tpu.memref_squeeze %755 : memref<1x4x30x30xf32, #tpu.memory_space<vmem>> -> memref<4x30x30xf32, #tpu.memory_space<vmem>>
    %c3_512 = arith.constant 3 : index
    %757 = arith.index_cast %727 : i32 to index
    %c0_513 = arith.constant 0 : index
    %758 = vector.load %756[%c3_512, %757, %c0_513] : memref<4x30x30xf32, #tpu.memory_space<vmem>>, vector<1x8x16xf32>
    %759 = vector.shape_cast %758 : vector<1x8x16xf32> to vector<8x16xf32>
    %c79 = arith.constant 79 : index
    %760 = memref.load %arg2[%c79] : memref<113xf32, #tpu.memory_space<smem>>
    %761 = vector.broadcast %760 : f32 to vector<8x16xf32>
    %762 = arith.mulf %761, %759 : vector<8x16xf32>
    %763 = arith.addf %745, %762 : vector<8x16xf32>
    %c7_i32_514 = arith.constant 7 : i32
    %764 = arith.addi %1, %c7_i32_514 : i32
    %c-7_i32_515 = arith.constant -7 : i32
    %765 = arith.addi %764, %c-7_i32_515 : i32
    %c0_i32_516 = arith.constant 0 : i32
    %c0_i32_517 = arith.constant 0 : i32
    %c0_i32_518 = arith.constant 0 : i32
    %c0_i32_519 = arith.constant 0 : i32
    %766 = tpu.memref_slice %arg3[%c0_i32_516, %c0_i32_517, %c0_i32_518, %c0_i32_519] : memref<1x4x30x30xf32, #tpu.memory_space<vmem>> -> memref<1x4x30x30xf32, #tpu.memory_space<vmem>>
    %767 = tpu.memref_squeeze %766 : memref<1x4x30x30xf32, #tpu.memory_space<vmem>> -> memref<4x30x30xf32, #tpu.memory_space<vmem>>
    %c0_520 = arith.constant 0 : index
    %768 = arith.index_cast %765 : i32 to index
    %c7_521 = arith.constant 7 : index
    %769 = vector.load %767[%c0_520, %768, %c7_521] : memref<4x30x30xf32, #tpu.memory_space<vmem>>, vector<1x8x16xf32>
    %770 = vector.shape_cast %769 : vector<1x8x16xf32> to vector<8x16xf32>
    %c80 = arith.constant 80 : index
    %771 = memref.load %arg2[%c80] : memref<113xf32, #tpu.memory_space<smem>>
    %772 = vector.broadcast %771 : f32 to vector<8x16xf32>
    %773 = arith.mulf %772, %770 : vector<8x16xf32>
    %774 = arith.addf %754, %773 : vector<8x16xf32>
    %c0_i32_522 = arith.constant 0 : i32
    %c0_i32_523 = arith.constant 0 : i32
    %c0_i32_524 = arith.constant 0 : i32
    %c0_i32_525 = arith.constant 0 : i32
    %775 = tpu.memref_slice %arg3[%c0_i32_522, %c0_i32_523, %c0_i32_524, %c0_i32_525] : memref<1x4x30x30xf32, #tpu.memory_space<vmem>> -> memref<1x4x30x30xf32, #tpu.memory_space<vmem>>
    %776 = tpu.memref_squeeze %775 : memref<1x4x30x30xf32, #tpu.memory_space<vmem>> -> memref<4x30x30xf32, #tpu.memory_space<vmem>>
    %c1_526 = arith.constant 1 : index
    %777 = arith.index_cast %765 : i32 to index
    %c7_527 = arith.constant 7 : index
    %778 = vector.load %776[%c1_526, %777, %c7_527] : memref<4x30x30xf32, #tpu.memory_space<vmem>>, vector<1x8x16xf32>
    %779 = vector.shape_cast %778 : vector<1x8x16xf32> to vector<8x16xf32>
    %c81 = arith.constant 81 : index
    %780 = memref.load %arg2[%c81] : memref<113xf32, #tpu.memory_space<smem>>
    %781 = vector.broadcast %780 : f32 to vector<8x16xf32>
    %782 = arith.mulf %781, %779 : vector<8x16xf32>
    %783 = arith.addf %763, %782 : vector<8x16xf32>
    %c0_i32_528 = arith.constant 0 : i32
    %c0_i32_529 = arith.constant 0 : i32
    %c0_i32_530 = arith.constant 0 : i32
    %c0_i32_531 = arith.constant 0 : i32
    %784 = tpu.memref_slice %arg3[%c0_i32_528, %c0_i32_529, %c0_i32_530, %c0_i32_531] : memref<1x4x30x30xf32, #tpu.memory_space<vmem>> -> memref<1x4x30x30xf32, #tpu.memory_space<vmem>>
    %785 = tpu.memref_squeeze %784 : memref<1x4x30x30xf32, #tpu.memory_space<vmem>> -> memref<4x30x30xf32, #tpu.memory_space<vmem>>
    %c2_532 = arith.constant 2 : index
    %786 = arith.index_cast %765 : i32 to index
    %c7_533 = arith.constant 7 : index
    %787 = vector.load %785[%c2_532, %786, %c7_533] : memref<4x30x30xf32, #tpu.memory_space<vmem>>, vector<1x8x16xf32>
    %788 = vector.shape_cast %787 : vector<1x8x16xf32> to vector<8x16xf32>
    %c82 = arith.constant 82 : index
    %789 = memref.load %arg2[%c82] : memref<113xf32, #tpu.memory_space<smem>>
    %790 = vector.broadcast %789 : f32 to vector<8x16xf32>
    %791 = arith.mulf %790, %788 : vector<8x16xf32>
    %792 = arith.addf %774, %791 : vector<8x16xf32>
    %c0_i32_534 = arith.constant 0 : i32
    %c0_i32_535 = arith.constant 0 : i32
    %c0_i32_536 = arith.constant 0 : i32
    %c0_i32_537 = arith.constant 0 : i32
    %793 = tpu.memref_slice %arg3[%c0_i32_534, %c0_i32_535, %c0_i32_536, %c0_i32_537] : memref<1x4x30x30xf32, #tpu.memory_space<vmem>> -> memref<1x4x30x30xf32, #tpu.memory_space<vmem>>
    %794 = tpu.memref_squeeze %793 : memref<1x4x30x30xf32, #tpu.memory_space<vmem>> -> memref<4x30x30xf32, #tpu.memory_space<vmem>>
    %c3_538 = arith.constant 3 : index
    %795 = arith.index_cast %765 : i32 to index
    %c7_539 = arith.constant 7 : index
    %796 = vector.load %794[%c3_538, %795, %c7_539] : memref<4x30x30xf32, #tpu.memory_space<vmem>>, vector<1x8x16xf32>
    %797 = vector.shape_cast %796 : vector<1x8x16xf32> to vector<8x16xf32>
    %c83 = arith.constant 83 : index
    %798 = memref.load %arg2[%c83] : memref<113xf32, #tpu.memory_space<smem>>
    %799 = vector.broadcast %798 : f32 to vector<8x16xf32>
    %800 = arith.mulf %799, %797 : vector<8x16xf32>
    %801 = arith.addf %783, %800 : vector<8x16xf32>
    %c7_i32_540 = arith.constant 7 : i32
    %802 = arith.addi %1, %c7_i32_540 : i32
    %c-7_i32_541 = arith.constant -7 : i32
    %803 = arith.addi %802, %c-7_i32_541 : i32
    %c0_i32_542 = arith.constant 0 : i32
    %c0_i32_543 = arith.constant 0 : i32
    %c0_i32_544 = arith.constant 0 : i32
    %c0_i32_545 = arith.constant 0 : i32
    %804 = tpu.memref_slice %arg3[%c0_i32_542, %c0_i32_543, %c0_i32_544, %c0_i32_545] : memref<1x4x30x30xf32, #tpu.memory_space<vmem>> -> memref<1x4x30x30xf32, #tpu.memory_space<vmem>>
    %805 = tpu.memref_squeeze %804 : memref<1x4x30x30xf32, #tpu.memory_space<vmem>> -> memref<4x30x30xf32, #tpu.memory_space<vmem>>
    %c0_546 = arith.constant 0 : index
    %806 = arith.index_cast %803 : i32 to index
    %c14_547 = arith.constant 14 : index
    %807 = vector.load %805[%c0_546, %806, %c14_547] : memref<4x30x30xf32, #tpu.memory_space<vmem>>, vector<1x8x16xf32>
    %808 = vector.shape_cast %807 : vector<1x8x16xf32> to vector<8x16xf32>
    %c84 = arith.constant 84 : index
    %809 = memref.load %arg2[%c84] : memref<113xf32, #tpu.memory_space<smem>>
    %810 = vector.broadcast %809 : f32 to vector<8x16xf32>
    %811 = arith.mulf %810, %808 : vector<8x16xf32>
    %812 = arith.addf %792, %811 : vector<8x16xf32>
    %c0_i32_548 = arith.constant 0 : i32
    %c0_i32_549 = arith.constant 0 : i32
    %c0_i32_550 = arith.constant 0 : i32
    %c0_i32_551 = arith.constant 0 : i32
    %813 = tpu.memref_slice %arg3[%c0_i32_548, %c0_i32_549, %c0_i32_550, %c0_i32_551] : memref<1x4x30x30xf32, #tpu.memory_space<vmem>> -> memref<1x4x30x30xf32, #tpu.memory_space<vmem>>
    %814 = tpu.memref_squeeze %813 : memref<1x4x30x30xf32, #tpu.memory_space<vmem>> -> memref<4x30x30xf32, #tpu.memory_space<vmem>>
    %c1_552 = arith.constant 1 : index
    %815 = arith.index_cast %803 : i32 to index
    %c14_553 = arith.constant 14 : index
    %816 = vector.load %814[%c1_552, %815, %c14_553] : memref<4x30x30xf32, #tpu.memory_space<vmem>>, vector<1x8x16xf32>
    %817 = vector.shape_cast %816 : vector<1x8x16xf32> to vector<8x16xf32>
    %c85 = arith.constant 85 : index
    %818 = memref.load %arg2[%c85] : memref<113xf32, #tpu.memory_space<smem>>
    %819 = vector.broadcast %818 : f32 to vector<8x16xf32>
    %820 = arith.mulf %819, %817 : vector<8x16xf32>
    %821 = arith.addf %801, %820 : vector<8x16xf32>
    %c0_i32_554 = arith.constant 0 : i32
    %c0_i32_555 = arith.constant 0 : i32
    %c0_i32_556 = arith.constant 0 : i32
    %c0_i32_557 = arith.constant 0 : i32
    %822 = tpu.memref_slice %arg3[%c0_i32_554, %c0_i32_555, %c0_i32_556, %c0_i32_557] : memref<1x4x30x30xf32, #tpu.memory_space<vmem>> -> memref<1x4x30x30xf32, #tpu.memory_space<vmem>>
    %823 = tpu.memref_squeeze %822 : memref<1x4x30x30xf32, #tpu.memory_space<vmem>> -> memref<4x30x30xf32, #tpu.memory_space<vmem>>
    %c2_558 = arith.constant 2 : index
    %824 = arith.index_cast %803 : i32 to index
    %c14_559 = arith.constant 14 : index
    %825 = vector.load %823[%c2_558, %824, %c14_559] : memref<4x30x30xf32, #tpu.memory_space<vmem>>, vector<1x8x16xf32>
    %826 = vector.shape_cast %825 : vector<1x8x16xf32> to vector<8x16xf32>
    %c86 = arith.constant 86 : index
    %827 = memref.load %arg2[%c86] : memref<113xf32, #tpu.memory_space<smem>>
    %828 = vector.broadcast %827 : f32 to vector<8x16xf32>
    %829 = arith.mulf %828, %826 : vector<8x16xf32>
    %830 = arith.addf %812, %829 : vector<8x16xf32>
    %c0_i32_560 = arith.constant 0 : i32
    %c0_i32_561 = arith.constant 0 : i32
    %c0_i32_562 = arith.constant 0 : i32
    %c0_i32_563 = arith.constant 0 : i32
    %831 = tpu.memref_slice %arg3[%c0_i32_560, %c0_i32_561, %c0_i32_562, %c0_i32_563] : memref<1x4x30x30xf32, #tpu.memory_space<vmem>> -> memref<1x4x30x30xf32, #tpu.memory_space<vmem>>
    %832 = tpu.memref_squeeze %831 : memref<1x4x30x30xf32, #tpu.memory_space<vmem>> -> memref<4x30x30xf32, #tpu.memory_space<vmem>>
    %c3_564 = arith.constant 3 : index
    %833 = arith.index_cast %803 : i32 to index
    %c14_565 = arith.constant 14 : index
    %834 = vector.load %832[%c3_564, %833, %c14_565] : memref<4x30x30xf32, #tpu.memory_space<vmem>>, vector<1x8x16xf32>
    %835 = vector.shape_cast %834 : vector<1x8x16xf32> to vector<8x16xf32>
    %c87 = arith.constant 87 : index
    %836 = memref.load %arg2[%c87] : memref<113xf32, #tpu.memory_space<smem>>
    %837 = vector.broadcast %836 : f32 to vector<8x16xf32>
    %838 = arith.mulf %837, %835 : vector<8x16xf32>
    %839 = arith.addf %821, %838 : vector<8x16xf32>
    %c7_i32_566 = arith.constant 7 : i32
    %840 = arith.addi %1, %c7_i32_566 : i32
    %c0_i32_567 = arith.constant 0 : i32
    %841 = arith.addi %840, %c0_i32_567 : i32
    %c0_i32_568 = arith.constant 0 : i32
    %c0_i32_569 = arith.constant 0 : i32
    %c0_i32_570 = arith.constant 0 : i32
    %c0_i32_571 = arith.constant 0 : i32
    %842 = tpu.memref_slice %arg3[%c0_i32_568, %c0_i32_569, %c0_i32_570, %c0_i32_571] : memref<1x4x30x30xf32, #tpu.memory_space<vmem>> -> memref<1x4x30x30xf32, #tpu.memory_space<vmem>>
    %843 = tpu.memref_squeeze %842 : memref<1x4x30x30xf32, #tpu.memory_space<vmem>> -> memref<4x30x30xf32, #tpu.memory_space<vmem>>
    %c0_572 = arith.constant 0 : index
    %844 = arith.index_cast %841 : i32 to index
    %c0_573 = arith.constant 0 : index
    %845 = vector.load %843[%c0_572, %844, %c0_573] : memref<4x30x30xf32, #tpu.memory_space<vmem>>, vector<1x8x16xf32>
    %846 = vector.shape_cast %845 : vector<1x8x16xf32> to vector<8x16xf32>
    %c88 = arith.constant 88 : index
    %847 = memref.load %arg2[%c88] : memref<113xf32, #tpu.memory_space<smem>>
    %848 = vector.broadcast %847 : f32 to vector<8x16xf32>
    %849 = arith.mulf %848, %846 : vector<8x16xf32>
    %850 = arith.addf %830, %849 : vector<8x16xf32>
    %c0_i32_574 = arith.constant 0 : i32
    %c0_i32_575 = arith.constant 0 : i32
    %c0_i32_576 = arith.constant 0 : i32
    %c0_i32_577 = arith.constant 0 : i32
    %851 = tpu.memref_slice %arg3[%c0_i32_574, %c0_i32_575, %c0_i32_576, %c0_i32_577] : memref<1x4x30x30xf32, #tpu.memory_space<vmem>> -> memref<1x4x30x30xf32, #tpu.memory_space<vmem>>
    %852 = tpu.memref_squeeze %851 : memref<1x4x30x30xf32, #tpu.memory_space<vmem>> -> memref<4x30x30xf32, #tpu.memory_space<vmem>>
    %c1_578 = arith.constant 1 : index
    %853 = arith.index_cast %841 : i32 to index
    %c0_579 = arith.constant 0 : index
    %854 = vector.load %852[%c1_578, %853, %c0_579] : memref<4x30x30xf32, #tpu.memory_space<vmem>>, vector<1x8x16xf32>
    %855 = vector.shape_cast %854 : vector<1x8x16xf32> to vector<8x16xf32>
    %c89 = arith.constant 89 : index
    %856 = memref.load %arg2[%c89] : memref<113xf32, #tpu.memory_space<smem>>
    %857 = vector.broadcast %856 : f32 to vector<8x16xf32>
    %858 = arith.mulf %857, %855 : vector<8x16xf32>
    %859 = arith.addf %839, %858 : vector<8x16xf32>
    %c0_i32_580 = arith.constant 0 : i32
    %c0_i32_581 = arith.constant 0 : i32
    %c0_i32_582 = arith.constant 0 : i32
    %c0_i32_583 = arith.constant 0 : i32
    %860 = tpu.memref_slice %arg3[%c0_i32_580, %c0_i32_581, %c0_i32_582, %c0_i32_583] : memref<1x4x30x30xf32, #tpu.memory_space<vmem>> -> memref<1x4x30x30xf32, #tpu.memory_space<vmem>>
    %861 = tpu.memref_squeeze %860 : memref<1x4x30x30xf32, #tpu.memory_space<vmem>> -> memref<4x30x30xf32, #tpu.memory_space<vmem>>
    %c2_584 = arith.constant 2 : index
    %862 = arith.index_cast %841 : i32 to index
    %c0_585 = arith.constant 0 : index
    %863 = vector.load %861[%c2_584, %862, %c0_585] : memref<4x30x30xf32, #tpu.memory_space<vmem>>, vector<1x8x16xf32>
    %864 = vector.shape_cast %863 : vector<1x8x16xf32> to vector<8x16xf32>
    %c90 = arith.constant 90 : index
    %865 = memref.load %arg2[%c90] : memref<113xf32, #tpu.memory_space<smem>>
    %866 = vector.broadcast %865 : f32 to vector<8x16xf32>
    %867 = arith.mulf %866, %864 : vector<8x16xf32>
    %868 = arith.addf %850, %867 : vector<8x16xf32>
    %c0_i32_586 = arith.constant 0 : i32
    %c0_i32_587 = arith.constant 0 : i32
    %c0_i32_588 = arith.constant 0 : i32
    %c0_i32_589 = arith.constant 0 : i32
    %869 = tpu.memref_slice %arg3[%c0_i32_586, %c0_i32_587, %c0_i32_588, %c0_i32_589] : memref<1x4x30x30xf32, #tpu.memory_space<vmem>> -> memref<1x4x30x30xf32, #tpu.memory_space<vmem>>
    %870 = tpu.memref_squeeze %869 : memref<1x4x30x30xf32, #tpu.memory_space<vmem>> -> memref<4x30x30xf32, #tpu.memory_space<vmem>>
    %c3_590 = arith.constant 3 : index
    %871 = arith.index_cast %841 : i32 to index
    %c0_591 = arith.constant 0 : index
    %872 = vector.load %870[%c3_590, %871, %c0_591] : memref<4x30x30xf32, #tpu.memory_space<vmem>>, vector<1x8x16xf32>
    %873 = vector.shape_cast %872 : vector<1x8x16xf32> to vector<8x16xf32>
    %c91 = arith.constant 91 : index
    %874 = memref.load %arg2[%c91] : memref<113xf32, #tpu.memory_space<smem>>
    %875 = vector.broadcast %874 : f32 to vector<8x16xf32>
    %876 = arith.mulf %875, %873 : vector<8x16xf32>
    %877 = arith.addf %859, %876 : vector<8x16xf32>
    %c7_i32_592 = arith.constant 7 : i32
    %878 = arith.addi %1, %c7_i32_592 : i32
    %c0_i32_593 = arith.constant 0 : i32
    %879 = arith.addi %878, %c0_i32_593 : i32
    %c0_i32_594 = arith.constant 0 : i32
    %c0_i32_595 = arith.constant 0 : i32
    %c0_i32_596 = arith.constant 0 : i32
    %c0_i32_597 = arith.constant 0 : i32
    %880 = tpu.memref_slice %arg3[%c0_i32_594, %c0_i32_595, %c0_i32_596, %c0_i32_597] : memref<1x4x30x30xf32, #tpu.memory_space<vmem>> -> memref<1x4x30x30xf32, #tpu.memory_space<vmem>>
    %881 = tpu.memref_squeeze %880 : memref<1x4x30x30xf32, #tpu.memory_space<vmem>> -> memref<4x30x30xf32, #tpu.memory_space<vmem>>
    %c0_598 = arith.constant 0 : index
    %882 = arith.index_cast %879 : i32 to index
    %c7_599 = arith.constant 7 : index
    %883 = vector.load %881[%c0_598, %882, %c7_599] : memref<4x30x30xf32, #tpu.memory_space<vmem>>, vector<1x8x16xf32>
    %884 = vector.shape_cast %883 : vector<1x8x16xf32> to vector<8x16xf32>
    %c92 = arith.constant 92 : index
    %885 = memref.load %arg2[%c92] : memref<113xf32, #tpu.memory_space<smem>>
    %886 = vector.broadcast %885 : f32 to vector<8x16xf32>
    %887 = arith.mulf %886, %884 : vector<8x16xf32>
    %888 = arith.addf %868, %887 : vector<8x16xf32>
    %c0_i32_600 = arith.constant 0 : i32
    %c0_i32_601 = arith.constant 0 : i32
    %c0_i32_602 = arith.constant 0 : i32
    %c0_i32_603 = arith.constant 0 : i32
    %889 = tpu.memref_slice %arg3[%c0_i32_600, %c0_i32_601, %c0_i32_602, %c0_i32_603] : memref<1x4x30x30xf32, #tpu.memory_space<vmem>> -> memref<1x4x30x30xf32, #tpu.memory_space<vmem>>
    %890 = tpu.memref_squeeze %889 : memref<1x4x30x30xf32, #tpu.memory_space<vmem>> -> memref<4x30x30xf32, #tpu.memory_space<vmem>>
    %c1_604 = arith.constant 1 : index
    %891 = arith.index_cast %879 : i32 to index
    %c7_605 = arith.constant 7 : index
    %892 = vector.load %890[%c1_604, %891, %c7_605] : memref<4x30x30xf32, #tpu.memory_space<vmem>>, vector<1x8x16xf32>
    %893 = vector.shape_cast %892 : vector<1x8x16xf32> to vector<8x16xf32>
    %c93 = arith.constant 93 : index
    %894 = memref.load %arg2[%c93] : memref<113xf32, #tpu.memory_space<smem>>
    %895 = vector.broadcast %894 : f32 to vector<8x16xf32>
    %896 = arith.mulf %895, %893 : vector<8x16xf32>
    %897 = arith.addf %877, %896 : vector<8x16xf32>
    %c0_i32_606 = arith.constant 0 : i32
    %c0_i32_607 = arith.constant 0 : i32
    %c0_i32_608 = arith.constant 0 : i32
    %c0_i32_609 = arith.constant 0 : i32
    %898 = tpu.memref_slice %arg3[%c0_i32_606, %c0_i32_607, %c0_i32_608, %c0_i32_609] : memref<1x4x30x30xf32, #tpu.memory_space<vmem>> -> memref<1x4x30x30xf32, #tpu.memory_space<vmem>>
    %899 = tpu.memref_squeeze %898 : memref<1x4x30x30xf32, #tpu.memory_space<vmem>> -> memref<4x30x30xf32, #tpu.memory_space<vmem>>
    %c2_610 = arith.constant 2 : index
    %900 = arith.index_cast %879 : i32 to index
    %c7_611 = arith.constant 7 : index
    %901 = vector.load %899[%c2_610, %900, %c7_611] : memref<4x30x30xf32, #tpu.memory_space<vmem>>, vector<1x8x16xf32>
    %902 = vector.shape_cast %901 : vector<1x8x16xf32> to vector<8x16xf32>
    %c94 = arith.constant 94 : index
    %903 = memref.load %arg2[%c94] : memref<113xf32, #tpu.memory_space<smem>>
    %904 = vector.broadcast %903 : f32 to vector<8x16xf32>
    %905 = arith.mulf %904, %902 : vector<8x16xf32>
    %906 = arith.addf %888, %905 : vector<8x16xf32>
    %c0_i32_612 = arith.constant 0 : i32
    %c0_i32_613 = arith.constant 0 : i32
    %c0_i32_614 = arith.constant 0 : i32
    %c0_i32_615 = arith.constant 0 : i32
    %907 = tpu.memref_slice %arg3[%c0_i32_612, %c0_i32_613, %c0_i32_614, %c0_i32_615] : memref<1x4x30x30xf32, #tpu.memory_space<vmem>> -> memref<1x4x30x30xf32, #tpu.memory_space<vmem>>
    %908 = tpu.memref_squeeze %907 : memref<1x4x30x30xf32, #tpu.memory_space<vmem>> -> memref<4x30x30xf32, #tpu.memory_space<vmem>>
    %c3_616 = arith.constant 3 : index
    %909 = arith.index_cast %879 : i32 to index
    %c7_617 = arith.constant 7 : index
    %910 = vector.load %908[%c3_616, %909, %c7_617] : memref<4x30x30xf32, #tpu.memory_space<vmem>>, vector<1x8x16xf32>
    %911 = vector.shape_cast %910 : vector<1x8x16xf32> to vector<8x16xf32>
    %c95 = arith.constant 95 : index
    %912 = memref.load %arg2[%c95] : memref<113xf32, #tpu.memory_space<smem>>
    %913 = vector.broadcast %912 : f32 to vector<8x16xf32>
    %914 = arith.mulf %913, %911 : vector<8x16xf32>
    %915 = arith.addf %897, %914 : vector<8x16xf32>
    %c7_i32_618 = arith.constant 7 : i32
    %916 = arith.addi %1, %c7_i32_618 : i32
    %c0_i32_619 = arith.constant 0 : i32
    %917 = arith.addi %916, %c0_i32_619 : i32
    %c0_i32_620 = arith.constant 0 : i32
    %c0_i32_621 = arith.constant 0 : i32
    %c0_i32_622 = arith.constant 0 : i32
    %c0_i32_623 = arith.constant 0 : i32
    %918 = tpu.memref_slice %arg3[%c0_i32_620, %c0_i32_621, %c0_i32_622, %c0_i32_623] : memref<1x4x30x30xf32, #tpu.memory_space<vmem>> -> memref<1x4x30x30xf32, #tpu.memory_space<vmem>>
    %919 = tpu.memref_squeeze %918 : memref<1x4x30x30xf32, #tpu.memory_space<vmem>> -> memref<4x30x30xf32, #tpu.memory_space<vmem>>
    %c0_624 = arith.constant 0 : index
    %920 = arith.index_cast %917 : i32 to index
    %c14_625 = arith.constant 14 : index
    %921 = vector.load %919[%c0_624, %920, %c14_625] : memref<4x30x30xf32, #tpu.memory_space<vmem>>, vector<1x8x16xf32>
    %922 = vector.shape_cast %921 : vector<1x8x16xf32> to vector<8x16xf32>
    %c96 = arith.constant 96 : index
    %923 = memref.load %arg2[%c96] : memref<113xf32, #tpu.memory_space<smem>>
    %924 = vector.broadcast %923 : f32 to vector<8x16xf32>
    %925 = arith.mulf %924, %922 : vector<8x16xf32>
    %926 = arith.addf %906, %925 : vector<8x16xf32>
    %c0_i32_626 = arith.constant 0 : i32
    %c0_i32_627 = arith.constant 0 : i32
    %c0_i32_628 = arith.constant 0 : i32
    %c0_i32_629 = arith.constant 0 : i32
    %927 = tpu.memref_slice %arg3[%c0_i32_626, %c0_i32_627, %c0_i32_628, %c0_i32_629] : memref<1x4x30x30xf32, #tpu.memory_space<vmem>> -> memref<1x4x30x30xf32, #tpu.memory_space<vmem>>
    %928 = tpu.memref_squeeze %927 : memref<1x4x30x30xf32, #tpu.memory_space<vmem>> -> memref<4x30x30xf32, #tpu.memory_space<vmem>>
    %c1_630 = arith.constant 1 : index
    %929 = arith.index_cast %917 : i32 to index
    %c14_631 = arith.constant 14 : index
    %930 = vector.load %928[%c1_630, %929, %c14_631] : memref<4x30x30xf32, #tpu.memory_space<vmem>>, vector<1x8x16xf32>
    %931 = vector.shape_cast %930 : vector<1x8x16xf32> to vector<8x16xf32>
    %c97 = arith.constant 97 : index
    %932 = memref.load %arg2[%c97] : memref<113xf32, #tpu.memory_space<smem>>
    %933 = vector.broadcast %932 : f32 to vector<8x16xf32>
    %934 = arith.mulf %933, %931 : vector<8x16xf32>
    %935 = arith.addf %915, %934 : vector<8x16xf32>
    %c0_i32_632 = arith.constant 0 : i32
    %c0_i32_633 = arith.constant 0 : i32
    %c0_i32_634 = arith.constant 0 : i32
    %c0_i32_635 = arith.constant 0 : i32
    %936 = tpu.memref_slice %arg3[%c0_i32_632, %c0_i32_633, %c0_i32_634, %c0_i32_635] : memref<1x4x30x30xf32, #tpu.memory_space<vmem>> -> memref<1x4x30x30xf32, #tpu.memory_space<vmem>>
    %937 = tpu.memref_squeeze %936 : memref<1x4x30x30xf32, #tpu.memory_space<vmem>> -> memref<4x30x30xf32, #tpu.memory_space<vmem>>
    %c2_636 = arith.constant 2 : index
    %938 = arith.index_cast %917 : i32 to index
    %c14_637 = arith.constant 14 : index
    %939 = vector.load %937[%c2_636, %938, %c14_637] : memref<4x30x30xf32, #tpu.memory_space<vmem>>, vector<1x8x16xf32>
    %940 = vector.shape_cast %939 : vector<1x8x16xf32> to vector<8x16xf32>
    %c98 = arith.constant 98 : index
    %941 = memref.load %arg2[%c98] : memref<113xf32, #tpu.memory_space<smem>>
    %942 = vector.broadcast %941 : f32 to vector<8x16xf32>
    %943 = arith.mulf %942, %940 : vector<8x16xf32>
    %944 = arith.addf %926, %943 : vector<8x16xf32>
    %c0_i32_638 = arith.constant 0 : i32
    %c0_i32_639 = arith.constant 0 : i32
    %c0_i32_640 = arith.constant 0 : i32
    %c0_i32_641 = arith.constant 0 : i32
    %945 = tpu.memref_slice %arg3[%c0_i32_638, %c0_i32_639, %c0_i32_640, %c0_i32_641] : memref<1x4x30x30xf32, #tpu.memory_space<vmem>> -> memref<1x4x30x30xf32, #tpu.memory_space<vmem>>
    %946 = tpu.memref_squeeze %945 : memref<1x4x30x30xf32, #tpu.memory_space<vmem>> -> memref<4x30x30xf32, #tpu.memory_space<vmem>>
    %c3_642 = arith.constant 3 : index
    %947 = arith.index_cast %917 : i32 to index
    %c14_643 = arith.constant 14 : index
    %948 = vector.load %946[%c3_642, %947, %c14_643] : memref<4x30x30xf32, #tpu.memory_space<vmem>>, vector<1x8x16xf32>
    %949 = vector.shape_cast %948 : vector<1x8x16xf32> to vector<8x16xf32>
    %c99 = arith.constant 99 : index
    %950 = memref.load %arg2[%c99] : memref<113xf32, #tpu.memory_space<smem>>
    %951 = vector.broadcast %950 : f32 to vector<8x16xf32>
    %952 = arith.mulf %951, %949 : vector<8x16xf32>
    %953 = arith.addf %935, %952 : vector<8x16xf32>
    %c7_i32_644 = arith.constant 7 : i32
    %954 = arith.addi %1, %c7_i32_644 : i32
    %c7_i32_645 = arith.constant 7 : i32
    %955 = arith.addi %954, %c7_i32_645 : i32
    %c0_i32_646 = arith.constant 0 : i32
    %c0_i32_647 = arith.constant 0 : i32
    %c0_i32_648 = arith.constant 0 : i32
    %c0_i32_649 = arith.constant 0 : i32
    %956 = tpu.memref_slice %arg3[%c0_i32_646, %c0_i32_647, %c0_i32_648, %c0_i32_649] : memref<1x4x30x30xf32, #tpu.memory_space<vmem>> -> memref<1x4x30x30xf32, #tpu.memory_space<vmem>>
    %957 = tpu.memref_squeeze %956 : memref<1x4x30x30xf32, #tpu.memory_space<vmem>> -> memref<4x30x30xf32, #tpu.memory_space<vmem>>
    %c0_650 = arith.constant 0 : index
    %958 = arith.index_cast %955 : i32 to index
    %c0_651 = arith.constant 0 : index
    %959 = vector.load %957[%c0_650, %958, %c0_651] : memref<4x30x30xf32, #tpu.memory_space<vmem>>, vector<1x8x16xf32>
    %960 = vector.shape_cast %959 : vector<1x8x16xf32> to vector<8x16xf32>
    %c100 = arith.constant 100 : index
    %961 = memref.load %arg2[%c100] : memref<113xf32, #tpu.memory_space<smem>>
    %962 = vector.broadcast %961 : f32 to vector<8x16xf32>
    %963 = arith.mulf %962, %960 : vector<8x16xf32>
    %964 = arith.addf %944, %963 : vector<8x16xf32>
    %c0_i32_652 = arith.constant 0 : i32
    %c0_i32_653 = arith.constant 0 : i32
    %c0_i32_654 = arith.constant 0 : i32
    %c0_i32_655 = arith.constant 0 : i32
    %965 = tpu.memref_slice %arg3[%c0_i32_652, %c0_i32_653, %c0_i32_654, %c0_i32_655] : memref<1x4x30x30xf32, #tpu.memory_space<vmem>> -> memref<1x4x30x30xf32, #tpu.memory_space<vmem>>
    %966 = tpu.memref_squeeze %965 : memref<1x4x30x30xf32, #tpu.memory_space<vmem>> -> memref<4x30x30xf32, #tpu.memory_space<vmem>>
    %c1_656 = arith.constant 1 : index
    %967 = arith.index_cast %955 : i32 to index
    %c0_657 = arith.constant 0 : index
    %968 = vector.load %966[%c1_656, %967, %c0_657] : memref<4x30x30xf32, #tpu.memory_space<vmem>>, vector<1x8x16xf32>
    %969 = vector.shape_cast %968 : vector<1x8x16xf32> to vector<8x16xf32>
    %c101 = arith.constant 101 : index
    %970 = memref.load %arg2[%c101] : memref<113xf32, #tpu.memory_space<smem>>
    %971 = vector.broadcast %970 : f32 to vector<8x16xf32>
    %972 = arith.mulf %971, %969 : vector<8x16xf32>
    %973 = arith.addf %953, %972 : vector<8x16xf32>
    %c0_i32_658 = arith.constant 0 : i32
    %c0_i32_659 = arith.constant 0 : i32
    %c0_i32_660 = arith.constant 0 : i32
    %c0_i32_661 = arith.constant 0 : i32
    %974 = tpu.memref_slice %arg3[%c0_i32_658, %c0_i32_659, %c0_i32_660, %c0_i32_661] : memref<1x4x30x30xf32, #tpu.memory_space<vmem>> -> memref<1x4x30x30xf32, #tpu.memory_space<vmem>>
    %975 = tpu.memref_squeeze %974 : memref<1x4x30x30xf32, #tpu.memory_space<vmem>> -> memref<4x30x30xf32, #tpu.memory_space<vmem>>
    %c2_662 = arith.constant 2 : index
    %976 = arith.index_cast %955 : i32 to index
    %c0_663 = arith.constant 0 : index
    %977 = vector.load %975[%c2_662, %976, %c0_663] : memref<4x30x30xf32, #tpu.memory_space<vmem>>, vector<1x8x16xf32>
    %978 = vector.shape_cast %977 : vector<1x8x16xf32> to vector<8x16xf32>
    %c102 = arith.constant 102 : index
    %979 = memref.load %arg2[%c102] : memref<113xf32, #tpu.memory_space<smem>>
    %980 = vector.broadcast %979 : f32 to vector<8x16xf32>
    %981 = arith.mulf %980, %978 : vector<8x16xf32>
    %982 = arith.addf %964, %981 : vector<8x16xf32>
    %c0_i32_664 = arith.constant 0 : i32
    %c0_i32_665 = arith.constant 0 : i32
    %c0_i32_666 = arith.constant 0 : i32
    %c0_i32_667 = arith.constant 0 : i32
    %983 = tpu.memref_slice %arg3[%c0_i32_664, %c0_i32_665, %c0_i32_666, %c0_i32_667] : memref<1x4x30x30xf32, #tpu.memory_space<vmem>> -> memref<1x4x30x30xf32, #tpu.memory_space<vmem>>
    %984 = tpu.memref_squeeze %983 : memref<1x4x30x30xf32, #tpu.memory_space<vmem>> -> memref<4x30x30xf32, #tpu.memory_space<vmem>>
    %c3_668 = arith.constant 3 : index
    %985 = arith.index_cast %955 : i32 to index
    %c0_669 = arith.constant 0 : index
    %986 = vector.load %984[%c3_668, %985, %c0_669] : memref<4x30x30xf32, #tpu.memory_space<vmem>>, vector<1x8x16xf32>
    %987 = vector.shape_cast %986 : vector<1x8x16xf32> to vector<8x16xf32>
    %c103 = arith.constant 103 : index
    %988 = memref.load %arg2[%c103] : memref<113xf32, #tpu.memory_space<smem>>
    %989 = vector.broadcast %988 : f32 to vector<8x16xf32>
    %990 = arith.mulf %989, %987 : vector<8x16xf32>
    %991 = arith.addf %973, %990 : vector<8x16xf32>
    %c7_i32_670 = arith.constant 7 : i32
    %992 = arith.addi %1, %c7_i32_670 : i32
    %c7_i32_671 = arith.constant 7 : i32
    %993 = arith.addi %992, %c7_i32_671 : i32
    %c0_i32_672 = arith.constant 0 : i32
    %c0_i32_673 = arith.constant 0 : i32
    %c0_i32_674 = arith.constant 0 : i32
    %c0_i32_675 = arith.constant 0 : i32
    %994 = tpu.memref_slice %arg3[%c0_i32_672, %c0_i32_673, %c0_i32_674, %c0_i32_675] : memref<1x4x30x30xf32, #tpu.memory_space<vmem>> -> memref<1x4x30x30xf32, #tpu.memory_space<vmem>>
    %995 = tpu.memref_squeeze %994 : memref<1x4x30x30xf32, #tpu.memory_space<vmem>> -> memref<4x30x30xf32, #tpu.memory_space<vmem>>
    %c0_676 = arith.constant 0 : index
    %996 = arith.index_cast %993 : i32 to index
    %c7_677 = arith.constant 7 : index
    %997 = vector.load %995[%c0_676, %996, %c7_677] : memref<4x30x30xf32, #tpu.memory_space<vmem>>, vector<1x8x16xf32>
    %998 = vector.shape_cast %997 : vector<1x8x16xf32> to vector<8x16xf32>
    %c104 = arith.constant 104 : index
    %999 = memref.load %arg2[%c104] : memref<113xf32, #tpu.memory_space<smem>>
    %1000 = vector.broadcast %999 : f32 to vector<8x16xf32>
    %1001 = arith.mulf %1000, %998 : vector<8x16xf32>
    %1002 = arith.addf %982, %1001 : vector<8x16xf32>
    %c0_i32_678 = arith.constant 0 : i32
    %c0_i32_679 = arith.constant 0 : i32
    %c0_i32_680 = arith.constant 0 : i32
    %c0_i32_681 = arith.constant 0 : i32
    %1003 = tpu.memref_slice %arg3[%c0_i32_678, %c0_i32_679, %c0_i32_680, %c0_i32_681] : memref<1x4x30x30xf32, #tpu.memory_space<vmem>> -> memref<1x4x30x30xf32, #tpu.memory_space<vmem>>
    %1004 = tpu.memref_squeeze %1003 : memref<1x4x30x30xf32, #tpu.memory_space<vmem>> -> memref<4x30x30xf32, #tpu.memory_space<vmem>>
    %c1_682 = arith.constant 1 : index
    %1005 = arith.index_cast %993 : i32 to index
    %c7_683 = arith.constant 7 : index
    %1006 = vector.load %1004[%c1_682, %1005, %c7_683] : memref<4x30x30xf32, #tpu.memory_space<vmem>>, vector<1x8x16xf32>
    %1007 = vector.shape_cast %1006 : vector<1x8x16xf32> to vector<8x16xf32>
    %c105 = arith.constant 105 : index
    %1008 = memref.load %arg2[%c105] : memref<113xf32, #tpu.memory_space<smem>>
    %1009 = vector.broadcast %1008 : f32 to vector<8x16xf32>
    %1010 = arith.mulf %1009, %1007 : vector<8x16xf32>
    %1011 = arith.addf %991, %1010 : vector<8x16xf32>
    %c0_i32_684 = arith.constant 0 : i32
    %c0_i32_685 = arith.constant 0 : i32
    %c0_i32_686 = arith.constant 0 : i32
    %c0_i32_687 = arith.constant 0 : i32
    %1012 = tpu.memref_slice %arg3[%c0_i32_684, %c0_i32_685, %c0_i32_686, %c0_i32_687] : memref<1x4x30x30xf32, #tpu.memory_space<vmem>> -> memref<1x4x30x30xf32, #tpu.memory_space<vmem>>
    %1013 = tpu.memref_squeeze %1012 : memref<1x4x30x30xf32, #tpu.memory_space<vmem>> -> memref<4x30x30xf32, #tpu.memory_space<vmem>>
    %c2_688 = arith.constant 2 : index
    %1014 = arith.index_cast %993 : i32 to index
    %c7_689 = arith.constant 7 : index
    %1015 = vector.load %1013[%c2_688, %1014, %c7_689] : memref<4x30x30xf32, #tpu.memory_space<vmem>>, vector<1x8x16xf32>
    %1016 = vector.shape_cast %1015 : vector<1x8x16xf32> to vector<8x16xf32>
    %c106 = arith.constant 106 : index
    %1017 = memref.load %arg2[%c106] : memref<113xf32, #tpu.memory_space<smem>>
    %1018 = vector.broadcast %1017 : f32 to vector<8x16xf32>
    %1019 = arith.mulf %1018, %1016 : vector<8x16xf32>
    %1020 = arith.addf %1002, %1019 : vector<8x16xf32>
    %c0_i32_690 = arith.constant 0 : i32
    %c0_i32_691 = arith.constant 0 : i32
    %c0_i32_692 = arith.constant 0 : i32
    %c0_i32_693 = arith.constant 0 : i32
    %1021 = tpu.memref_slice %arg3[%c0_i32_690, %c0_i32_691, %c0_i32_692, %c0_i32_693] : memref<1x4x30x30xf32, #tpu.memory_space<vmem>> -> memref<1x4x30x30xf32, #tpu.memory_space<vmem>>
    %1022 = tpu.memref_squeeze %1021 : memref<1x4x30x30xf32, #tpu.memory_space<vmem>> -> memref<4x30x30xf32, #tpu.memory_space<vmem>>
    %c3_694 = arith.constant 3 : index
    %1023 = arith.index_cast %993 : i32 to index
    %c7_695 = arith.constant 7 : index
    %1024 = vector.load %1022[%c3_694, %1023, %c7_695] : memref<4x30x30xf32, #tpu.memory_space<vmem>>, vector<1x8x16xf32>
    %1025 = vector.shape_cast %1024 : vector<1x8x16xf32> to vector<8x16xf32>
    %c107 = arith.constant 107 : index
    %1026 = memref.load %arg2[%c107] : memref<113xf32, #tpu.memory_space<smem>>
    %1027 = vector.broadcast %1026 : f32 to vector<8x16xf32>
    %1028 = arith.mulf %1027, %1025 : vector<8x16xf32>
    %1029 = arith.addf %1011, %1028 : vector<8x16xf32>
    %c7_i32_696 = arith.constant 7 : i32
    %1030 = arith.addi %1, %c7_i32_696 : i32
    %c7_i32_697 = arith.constant 7 : i32
    %1031 = arith.addi %1030, %c7_i32_697 : i32
    %c0_i32_698 = arith.constant 0 : i32
    %c0_i32_699 = arith.constant 0 : i32
    %c0_i32_700 = arith.constant 0 : i32
    %c0_i32_701 = arith.constant 0 : i32
    %1032 = tpu.memref_slice %arg3[%c0_i32_698, %c0_i32_699, %c0_i32_700, %c0_i32_701] : memref<1x4x30x30xf32, #tpu.memory_space<vmem>> -> memref<1x4x30x30xf32, #tpu.memory_space<vmem>>
    %1033 = tpu.memref_squeeze %1032 : memref<1x4x30x30xf32, #tpu.memory_space<vmem>> -> memref<4x30x30xf32, #tpu.memory_space<vmem>>
    %c0_702 = arith.constant 0 : index
    %1034 = arith.index_cast %1031 : i32 to index
    %c14_703 = arith.constant 14 : index
    %1035 = vector.load %1033[%c0_702, %1034, %c14_703] : memref<4x30x30xf32, #tpu.memory_space<vmem>>, vector<1x8x16xf32>
    %1036 = vector.shape_cast %1035 : vector<1x8x16xf32> to vector<8x16xf32>
    %c108 = arith.constant 108 : index
    %1037 = memref.load %arg2[%c108] : memref<113xf32, #tpu.memory_space<smem>>
    %1038 = vector.broadcast %1037 : f32 to vector<8x16xf32>
    %1039 = arith.mulf %1038, %1036 : vector<8x16xf32>
    %1040 = arith.addf %1020, %1039 : vector<8x16xf32>
    %c0_i32_704 = arith.constant 0 : i32
    %c0_i32_705 = arith.constant 0 : i32
    %c0_i32_706 = arith.constant 0 : i32
    %c0_i32_707 = arith.constant 0 : i32
    %1041 = tpu.memref_slice %arg3[%c0_i32_704, %c0_i32_705, %c0_i32_706, %c0_i32_707] : memref<1x4x30x30xf32, #tpu.memory_space<vmem>> -> memref<1x4x30x30xf32, #tpu.memory_space<vmem>>
    %1042 = tpu.memref_squeeze %1041 : memref<1x4x30x30xf32, #tpu.memory_space<vmem>> -> memref<4x30x30xf32, #tpu.memory_space<vmem>>
    %c1_708 = arith.constant 1 : index
    %1043 = arith.index_cast %1031 : i32 to index
    %c14_709 = arith.constant 14 : index
    %1044 = vector.load %1042[%c1_708, %1043, %c14_709] : memref<4x30x30xf32, #tpu.memory_space<vmem>>, vector<1x8x16xf32>
    %1045 = vector.shape_cast %1044 : vector<1x8x16xf32> to vector<8x16xf32>
    %c109 = arith.constant 109 : index
    %1046 = memref.load %arg2[%c109] : memref<113xf32, #tpu.memory_space<smem>>
    %1047 = vector.broadcast %1046 : f32 to vector<8x16xf32>
    %1048 = arith.mulf %1047, %1045 : vector<8x16xf32>
    %1049 = arith.addf %1029, %1048 : vector<8x16xf32>
    %c0_i32_710 = arith.constant 0 : i32
    %c0_i32_711 = arith.constant 0 : i32
    %c0_i32_712 = arith.constant 0 : i32
    %c0_i32_713 = arith.constant 0 : i32
    %1050 = tpu.memref_slice %arg3[%c0_i32_710, %c0_i32_711, %c0_i32_712, %c0_i32_713] : memref<1x4x30x30xf32, #tpu.memory_space<vmem>> -> memref<1x4x30x30xf32, #tpu.memory_space<vmem>>
    %1051 = tpu.memref_squeeze %1050 : memref<1x4x30x30xf32, #tpu.memory_space<vmem>> -> memref<4x30x30xf32, #tpu.memory_space<vmem>>
    %c2_714 = arith.constant 2 : index
    %1052 = arith.index_cast %1031 : i32 to index
    %c14_715 = arith.constant 14 : index
    %1053 = vector.load %1051[%c2_714, %1052, %c14_715] : memref<4x30x30xf32, #tpu.memory_space<vmem>>, vector<1x8x16xf32>
    %1054 = vector.shape_cast %1053 : vector<1x8x16xf32> to vector<8x16xf32>
    %c110 = arith.constant 110 : index
    %1055 = memref.load %arg2[%c110] : memref<113xf32, #tpu.memory_space<smem>>
    %1056 = vector.broadcast %1055 : f32 to vector<8x16xf32>
    %1057 = arith.mulf %1056, %1054 : vector<8x16xf32>
    %1058 = arith.addf %1040, %1057 : vector<8x16xf32>
    %c0_i32_716 = arith.constant 0 : i32
    %c0_i32_717 = arith.constant 0 : i32
    %c0_i32_718 = arith.constant 0 : i32
    %c0_i32_719 = arith.constant 0 : i32
    %1059 = tpu.memref_slice %arg3[%c0_i32_716, %c0_i32_717, %c0_i32_718, %c0_i32_719] : memref<1x4x30x30xf32, #tpu.memory_space<vmem>> -> memref<1x4x30x30xf32, #tpu.memory_space<vmem>>
    %1060 = tpu.memref_squeeze %1059 : memref<1x4x30x30xf32, #tpu.memory_space<vmem>> -> memref<4x30x30xf32, #tpu.memory_space<vmem>>
    %c3_720 = arith.constant 3 : index
    %1061 = arith.index_cast %1031 : i32 to index
    %c14_721 = arith.constant 14 : index
    %1062 = vector.load %1060[%c3_720, %1061, %c14_721] : memref<4x30x30xf32, #tpu.memory_space<vmem>>, vector<1x8x16xf32>
    %1063 = vector.shape_cast %1062 : vector<1x8x16xf32> to vector<8x16xf32>
    %c111 = arith.constant 111 : index
    %1064 = memref.load %arg2[%c111] : memref<113xf32, #tpu.memory_space<smem>>
    %1065 = vector.broadcast %1064 : f32 to vector<8x16xf32>
    %1066 = arith.mulf %1065, %1063 : vector<8x16xf32>
    %1067 = arith.addf %1049, %1066 : vector<8x16xf32>
    %1068 = arith.addf %1058, %1067 : vector<8x16xf32>
    %c112 = arith.constant 112 : index
    %1069 = memref.load %arg2[%c112] : memref<113xf32, #tpu.memory_space<smem>>
    %1070 = vector.broadcast %1069 : f32 to vector<8x16xf32>
    %1071 = arith.addf %1068, %1070 : vector<8x16xf32>
    %1072 = arith.negf %1071 : vector<8x16xf32>
    %1073 = math.exp %1072 : vector<8x16xf32>
    %cst_722 = arith.constant 1.000000e+00 : f32
    %1074 = vector.broadcast %cst_722 : f32 to vector<8x16xf32>
    %1075 = arith.addf %1074, %1073 : vector<8x16xf32>
    %1076 = arith.divf %1074, %1075 : vector<8x16xf32>
    %c0_723 = arith.constant 0 : index
    %c0_724 = arith.constant 0 : index
    %c0_725 = arith.constant 0 : index
    %1077 = vector.load %arg4[%c0_723, %c0_724, %c0_725] : memref<1x8x16xf32, #tpu.memory_space<vmem>>, vector<1x8x16xf32>
    %1078 = vector.shape_cast %1077 : vector<1x8x16xf32> to vector<8x16xf32>
    %1079 = vector.shape_cast %1076 : vector<8x16xf32> to vector<1x8x16xf32>
    tpu.vector_store %arg4[%c0_723, %c0_724, %c0_725], %1079 {strides = array<i32>} : memref<1x8x16xf32, #tpu.memory_space<vmem>>, vector<1x8x16xf32>,
    return
  }
  func.func @transform_0(%arg0: i32, %arg1: i32) -> i32 {
    %c0_i32 = arith.constant 0 : i32
    %c0_i32_0 = arith.constant 0 : i32
    return %c0_i32 : i32
  }
  func.func @transform_1(%arg0: i32, %arg1: i32) -> (i32, i32, i32, i32) {
    %c0_i32 = arith.constant 0 : i32
    %c0_i32_0 = arith.constant 0 : i32
    %c0_i32_1 = arith.constant 0 : i32
    %c0_i32_2 = arith.constant 0 : i32
    return %arg0, %c0_i32, %c0_i32_0, %c0_i32_1 : i32, i32, i32, i32
  }
  func.func @transform_2(%arg0: i32, %arg1: i32) -> (i32, i32, i32) {
    %c0_i32 = arith.constant 0 : i32
    %c0_i32_0 = arith.constant 0 : i32
    return %arg0, %arg1, %c0_i32 : i32, i32, i32
  }
}

</mosaic_0001>

<llo_original>
// kernel: rfb_s_forward.1
$region0: #{rfb_s_forward.1}
  #allocation0 [shape = 'u32[]', space=smem, size = 0x4, offset = 0x4, fixed_abs, tag = 'smem constant byte address 0x4 - core index']
  #allocation1 [shape = 'u32[72,128]{1,0:T(1,128)}', space=vmem, size = 0x9000, scoped, tag = 'internal scratch']
  %s0 = inlined_call_operand.vmem [shape: f32[113], index: 0, kind: input, shape index: {}]
  %s1 = inlined_call_operand.vmem [shape: f32[2,4,30,30], index: 1, kind: input, shape index: {}]
  %s2 = inlined_call_operand.hbm [shape: f32[2,16,16], index: 2, kind: output, shape index: {}]
  %s3 = sld [smem:[#allocation0]]
  $region45: #{rfb_s_forward.1} parent=0
    _
  %s5 = ssub.s32 1, %s3
  %s6 = scalar_select 0, %s5, %s3
  $region1: #{rfb_s_forward.1} parent=0
    #allocation2 [shape = 'u8[512]{0}', space=smem, size = 0x200, scoped, tag = 'input window, operand 0, single buffered']
    #allocation3 [shape = 's32[2]{0}', space=sflag, size = 0x8, scoped, tag = 'scoped memory for rfb_s_forward.1']
    #allocation4 [shape = 's32[2]{0}', space=sflag, size = 0x8, scoped, tag = 'scoped memory for rfb_s_forward.1']
    #allocation5 [shape = 'u8[8192]{0}', space=vmem, size = 0x2000, scoped, tag = 'output window, operand 0']
    %7 = vsyncpa [#allocation4], 0
    %8 = vsyncpa [#allocation3], 0
    %s9 = scalar_lea.sflag [#allocation3], 1
    %10 = vsyncpa %s9, 0
    loop: start=0, step=1, limit=6
    $region2: #{rfb_s_forward.1} parent=1 // loop_pre_header
      _
    $region3: #{rfb_s_forward.1} parent=1 // loop_header
      %s12 = sphi 0, %s16
      %p13 = scmp.ge.s32.totalorder %s12, 6
      %s19 = sphi 0, %s31
      %s20 = sphi 0, %s27
      %s21 = sphi 0, %s19
      %s22 = sphi 0, %s20
      %s23 = sphi 0, %s21
      %s24 = sphi 0, %s22
      %s32 = sphi 0, %s32
      %s34 = sphi 0, %s32
      %s35 = sphi 0, %s34
      %s49 = sphi 0, %s35
      %s55 = sphi 0, %s57
      %s58 = sphi 0, %s55
      %s59 = sphi 0, %s58
      %s75 = sphi 0, %s59
      %s83 = sphi 0, %s85
      %s86 = sphi 0, %s83
      %s87 = sphi 0, %s86
      %s103 = sphi 0, %s87
    $region4: #{rfb_s_forward.1} parent=1 // loop_header_branch
      %15 = sbr.rel (%p13) target = $region8
    $region5: #{rfb_s_forward.1} parent=1 // loop_body
      %s17 = ssub.s32 %s12, 1
      %s18 = ssub.s32 %s12, 2
      %s25 = sadd.s32 1, %s20
      %p26 = scmp.ge.s32.totalorder %s25, 2
      %s27 = scalar_select %p26, 0, %s25
      %s28 = sadd.s32 1, %s19
      %s29 = scalar_select %p26, %s28, %s19
      %p30 = scmp.ge.s32.totalorder %s29, 2
      %s31 = scalar_select %p30, 0, %s29
      %s33 = sadd.s32 %s32, 1
      %p36 = scmp.eq.s32.totalorder %s12, 3
      %p37 = scmp.ne.s32.totalorder %s32, %s34
      %p38 = scmp.eq.s32.totalorder %s12, 0
      %p39 = por %p37, %p38
      %p40 = scmp.ne.s32.totalorder %s32, %s34
      %p41 = scmp.eq.s32.totalorder %s17, 3
      %p42 = por %p40, %p41
      %p43 = scmp.ne.s32.totalorder %s34, %s35
      %p44 = scmp.eq.s32.totalorder %s17, 0
      %p45 = por %p43, %p44
      %p46 = scmp.ne.s32.totalorder %s34, %s35
      %p47 = scmp.eq.s32.totalorder %s18, 3
      %p48 = por %p46, %p47
      %p50 = scmp.ne.s32.totalorder %s35, %s49
      %p51 = scmp.eq.s32.totalorder %s18, 0
      %p52 = por %p50, %p51
      %s53 = ssub.s32 %s19, %s31
      %p54 = scmp.eq.s32.totalorder %s53, 0
      %s56 = sadd.s32 %s55, 1
      %s57 = scalar_select %p54, %s55, %s56
      %p60 = pneg %p54
      %p61 = scmp.eq.s32.totalorder %s12, 3
      %p62 = por %p60, %p61
      %p63 = scmp.ne.s32.totalorder %s55, %s58
      %p64 = scmp.eq.s32.totalorder %s12, 0
      %p65 = por %p63, %p64
      %p66 = scmp.ne.s32.totalorder %s55, %s58
      %p67 = scmp.eq.s32.totalorder %s17, 3
      %p68 = por %p66, %p67
      %p69 = scmp.ne.s32.totalorder %s58, %s59
      %p70 = scmp.eq.s32.totalorder %s17, 0
      %p71 = por %p69, %p70
      %p72 = scmp.ne.s32.totalorder %s58, %s59
      %p73 = scmp.eq.s32.totalorder %s18, 3
      %p74 = por %p72, %p73
      %p76 = scmp.ne.s32.totalorder %s59, %s75
      %p77 = scmp.eq.s32.totalorder %s18, 0
      %p78 = por %p76, %p77
      %s79 = ssub.s32 %s19, %s31
      %s80 = ssub.s32 %s20, %s27
      %s81 = sor.u32 %s79, %s80
      %p82 = scmp.eq.s32.totalorder %s81, 0
      %s84 = sadd.s32 %s83, 1
      %s85 = scalar_select %p82, %s83, %s84
      %p88 = pneg %p82
      %p89 = scmp.eq.s32.totalorder %s12, 3
      %p90 = por %p88, %p89
      %p91 = scmp.ne.s32.totalorder %s83, %s86
      %p92 = scmp.eq.s32.totalorder %s12, 0
      %p93 = por %p91, %p92
      %p94 = scmp.ne.s32.totalorder %s83, %s86
      %p95 = scmp.eq.s32.totalorder %s17, 3
      %p96 = por %p94, %p95
      %p97 = scmp.ne.s32.totalorder %s86, %s87
      %p98 = scmp.eq.s32.totalorder %s17, 0
      %p99 = por %p97, %p98
      %p100 = scmp.ne.s32.totalorder %s86, %s87
      %p101 = scmp.eq.s32.totalorder %s18, 3
      %p102 = por %p100, %p101
      %p104 = scmp.ne.s32.totalorder %s87, %s103
      %p105 = scmp.eq.s32.totalorder %s18, 0
      %p106 = por %p104, %p105
      %p107 = scmp.le.s32.totalorder 1, %s12
      %p108 = scmp.lt.s32.totalorder %s12, 5
      %p109 = pnand %p107, %p108
      %p110 = pneg %p109
      // Predicated region
      $region9: #{rfb_s_forward.1} parent=5 // pred_check
        _
      $region10: #{rfb_s_forward.1} parent=5 // pred_check_branch
        %112 = sbr.rel (%p109) target = $region12
      $region11: #{rfb_s_forward.1} parent=5 // pred_region
        %s113 = ssub.s32 %s12, 1
        // Predicated region
        $region13: #{rfb_s_forward.1} parent=11 // pred_check
          %p114 = pneg %p45
        $region14: #{rfb_s_forward.1} parent=11 // pred_check_branch
          %116 = sbr.rel (%p114) target = $region16
        $region15: #{rfb_s_forward.1} parent=11 // pred_region
          %118 = vsyncadd [#allocation4], 0
          %s120 = sshll.u32 %s0, 4
          %s121 = int_to_ptr.vmem [resolvable:$true] %s120
          %123 = dma.vmem_to_smem %s121, 16, [#allocation2], [#allocation4]
        $region16: #{rfb_s_forward.1} parent=11 // pred_fallthru
          _
      $region12: #{rfb_s_forward.1} parent=5 // pred_fallthru
        _
      %p124 = scmp.lt.s32.totalorder %s12, 4
      // Predicated region
      $region17: #{rfb_s_forward.1} parent=5 // pred_check
        %p125 = pneg %p124
      $region18: #{rfb_s_forward.1} parent=5 // pred_check_branch
        %127 = sbr.rel (%p125) target = $region20
      $region19: #{rfb_s_forward.1} parent=5 // pred_region
        // Predicated region
        $region21: #{rfb_s_forward.1} parent=19 // pred_check
          %p128 = pneg %p65
        $region22: #{rfb_s_forward.1} parent=19 // pred_check_branch
          %130 = sbr.rel (%p128) target = $region24
        $region23: #{rfb_s_forward.1} parent=19 // pred_region
          %p131 = scmp.lt.s32.totalorder %s19, 1
          %s132 = scalar_select %p131, %s19, 1
          %s133 = smul.addr %s132, 16
          %s134 = smul.addr %s133, 8
          %s135 = scalar_lea.vmem %s1, %s134
        $region24: #{rfb_s_forward.1} parent=19 // pred_fallthru
          _
      $region20: #{rfb_s_forward.1} parent=5 // pred_fallthru
        _
      %p136 = scmp.le.s32.totalorder 1, %s12
      %p137 = scmp.lt.s32.totalorder %s12, 5
      %p138 = pnand %p136, %p137
      %p139 = pneg %p138
      // Predicated region
      $region25: #{rfb_s_forward.1} parent=5 // pred_check
        _
      $region26: #{rfb_s_forward.1} parent=5 // pred_check_branch
        %141 = sbr.rel (%p138) target = $region28
      $region27: #{rfb_s_forward.1} parent=5 // pred_region
        %s142 = ssub.s32 %s12, 1
        // Predicated region
        $region29: #{rfb_s_forward.1} parent=27 // pred_check
          %p143 = pneg %p45
        $region30: #{rfb_s_forward.1} parent=27 // pred_check_branch
          %145 = sbr.rel (%p143) target = $region32
        $region31: #{rfb_s_forward.1} parent=27 // pred_region
          %147 = dma.done [#allocation4], 16
        $region32: #{rfb_s_forward.1} parent=27 // pred_fallthru
          _
        %148 = sfence
        %p149 = pneg %p45
        %p150 = pneg %p42
        %p151 = scmp.lt.s32.totalorder %s21, 1
        %s152 = scalar_select %p151, %s21, 1
        %s153 = smul.addr %s152, 16
        %s154 = smul.addr %s153, 8
        %s155 = scalar_lea.vmem %s1, %s154
        %p156 = pneg %p71
        %p157 = pneg %p68
        %p158 = pneg %p99
        %p159 = pneg %p96
        %s160 = sand.u32 %s86, 1
        %s161 = scalar_lea.sflag [#allocation3], %s160
        %s162 = sand.u32 %s86, 1
        %s163 = smul.addr %s162, 8
        %s164 = scalar_lea.vmem [#allocation5], %s163
        %p165 = scmp.lt.s32.totalorder %s21, 1
        %s166 = scalar_select %p165, %s21, 1
        %s167 = smul.addr %s166, 16
        %s168 = smul.addr %s167, 8
        %s169 = scalar_lea.vmem %s1, %s168
        %s170 = smul.u32 %s22, 8
        %s171 = sadd.s32 %s170, 7
        %s172 = scalar_lea.vmem %s169, %s171
        %v173 = vld [vmem:[%s172] sm:$0xff]
        %s174 = sld [smem:[#allocation2]]
        %v175 = vstv %s174
        %v176 = vmul.f32 %v175, %v173
        %v177 = vadd.f32 %v176, 0.0
        %s178 = sadd.s32 %s171, 32
        %s179 = scalar_lea.vmem %s169, %s178
        %v180 = vld [vmem:[%s179] sm:$0xff]
        %s181 = sld [smem:[#allocation2 + $0x1]]
        %v182 = vstv %s181
        %v183 = vmul.f32 %v182, %v180
        %v184 = vadd.f32 %v183, 0.0
        %s185 = sadd.s32 %s171, 64
        %s186 = scalar_lea.vmem %s169, %s185
        %v187 = vld [vmem:[%s186] sm:$0xff]
        %s188 = sld [smem:[#allocation2 + $0x2]]
        %v189 = vstv %s188
        %v190 = vmul.f32 %v189, %v187
        %v191 = vadd.f32 %v177, %v190
        %s192 = sadd.s32 %s171, 96
        %s193 = scalar_lea.vmem %s169, %s192
        %v194 = vld [vmem:[%s193] sm:$0xff]
        %s195 = sld [smem:[#allocation2 + $0x3]]
        %v196 = vstv %s195
        %v197 = vmul.f32 %v196, %v194
        %v198 = vadd.f32 %v184, %v197
        %s199 = sadd.s32 %s170, 4
        %s200 = scalar_lea.vmem %s169, %s199
        %v201 = vld [vmem:[%s200] sm:$0xff]
        %s202 = sld [smem:[#allocation2 + $0x4]]
        %v203 = vstv %s202
        %v204 = vmul.f32 %v203, %v201
        %206 = vrot.lane.b32.xlu0 %v204, 3
        %v207 = vpop.permute.xlu0 %206
        %v209 = vadd.f32 %v191, %v207
        %s210 = sadd.s32 %s199, 32
        %s211 = scalar_lea.vmem %s169, %s210
        %v212 = vld [vmem:[%s211] sm:$0xff]
        %s213 = sld [smem:[#allocation2 + $0x5]]
        %v214 = vstv %s213
        %v215 = vmul.f32 %v214, %v212
        %217 = vrot.lane.b32.xlu0 %v215, 3
        %v218 = vpop.permute.xlu0 %217
        %v220 = vadd.f32 %v198, %v218
        %s221 = sadd.s32 %s199, 64
        %s222 = scalar_lea.vmem %s169, %s221
        %v223 = vld [vmem:[%s222] sm:$0xff]
        %s224 = sld [smem:[#allocation2 + $0x6]]
        %v225 = vstv %s224
        %v226 = vmul.f32 %v225, %v223
        %228 = vrot.lane.b32.xlu0 %v226, 3
        %v229 = vpop.permute.xlu0 %228
        %v231 = vadd.f32 %v209, %v229
        %s232 = sadd.s32 %s199, 96
        %s233 = scalar_lea.vmem %s169, %s232
        %v234 = vld [vmem:[%s233] sm:$0xff]
        %s235 = sld [smem:[#allocation2 + $0x7]]
        %v236 = vstv %s235
        %v237 = vmul.f32 %v236, %v234
        %239 = vrot.lane.b32.xlu0 %v237, 3
        %v240 = vpop.permute.xlu0 %239
        %v242 = vadd.f32 %v220, %v240
        %s243 = sld [smem:[#allocation2 + $0x8]]
        %v244 = vstv %s243
        %v245 = vmul.f32 %v244, %v201
        %v246 = vadd.f32 %v231, %v245
        %s247 = sld [smem:[#allocation2 + $0x9]]
        %v248 = vstv %s247
        %v249 = vmul.f32 %v248, %v212
        %v250 = vadd.f32 %v242, %v249
        %s251 = sld [smem:[#allocation2 + $0xa]]
        %v252 = vstv %s251
        %v253 = vmul.f32 %v252, %v223
        %v254 = vadd.f32 %v246, %v253
        %s255 = sld [smem:[#allocation2 + $0xb]]
        %v256 = vstv %s255
        %v257 = vmul.f32 %v256, %v234
        %v258 = vadd.f32 %v250, %v257
        %s259 = sld [smem:[#allocation2 + $0xc]]
        %v260 = vstv %s259
        %v261 = vmul.f32 %v260, %v201
        %263 = vrot.lane.b32.xlu0 %v261, 125
        %v264 = vpop.permute.xlu0 %263
        %v266 = vadd.f32 %v254, %v264
        %s267 = sld [smem:[#allocation2 + $0xd]]
        %v268 = vstv %s267
        %v269 = vmul.f32 %v268, %v212
        %271 = vrot.lane.b32.xlu0 %v269, 125
        %v272 = vpop.permute.xlu0 %271
        %v274 = vadd.f32 %v258, %v272
        %s275 = sld [smem:[#allocation2 + $0xe]]
        %v276 = vstv %s275
        %v277 = vmul.f32 %v276, %v223
        %279 = vrot.lane.b32.xlu0 %v277, 125
        %v280 = vpop.permute.xlu0 %279
        %v282 = vadd.f32 %v266, %v280
        %s283 = sld [smem:[#allocation2 + $0xf]]
        %v284 = vstv %s283
        %v285 = vmul.f32 %v284, %v234
        %287 = vrot.lane.b32.xlu0 %v285, 125
        %v288 = vpop.permute.xlu0 %287
        %v290 = vadd.f32 %v274, %v288
        %s291 = sld [smem:[#allocation2 + $0x10]]
        %v292 = vstv %s291
        %v293 = vmul.f32 %v292, %v173
        %295 = vrot.lane.b32.xlu0 %v293, 3
        %v296 = vpop.permute.xlu0 %295
        %v298 = vadd.f32 %v282, %v296
        %s299 = sld [smem:[#allocation2 + $0x11]]
        %v300 = vstv %s299
        %v301 = vmul.f32 %v300, %v180
        %303 = vrot.lane.b32.xlu0 %v301, 3
        %v304 = vpop.permute.xlu0 %303
        %v306 = vadd.f32 %v290, %v304
        %s307 = sld [smem:[#allocation2 + $0x12]]
        %v308 = vstv %s307
        %v309 = vmul.f32 %v308, %v187
        %311 = vrot.lane.b32.xlu0 %v309, 3
        %v312 = vpop.permute.xlu0 %311
        %v314 = vadd.f32 %v298, %v312
        %s315 = sld [smem:[#allocation2 + $0x13]]
        %v316 = vstv %s315
        %v317 = vmul.f32 %v316, %v194
        %319 = vrot.lane.b32.xlu0 %v317, 3
        %v320 = vpop.permute.xlu0 %319
        %v322 = vadd.f32 %v306, %v320
        %s323 = sld [smem:[#allocation2 + $0x14]]
        %v324 = vstv %s323
        %v325 = vmul.f32 %v324, %v173
        %v326 = vadd.f32 %v314, %v325
        %s327 = sld [smem:[#allocation2 + $0x15]]
        %v328 = vstv %s327
        %v329 = vmul.f32 %v328, %v180
        %v330 = vadd.f32 %v322, %v329
        %s331 = sld [smem:[#allocation2 + $0x16]]
        %v332 = vstv %s331
        %v333 = vmul.f32 %v332, %v187
        %v334 = vadd.f32 %v326, %v333
        %s335 = sld [smem:[#allocation2 + $0x17]]
        %v336 = vstv %s335
        %v337 = vmul.f32 %v336, %v194
        %v338 = vadd.f32 %v330, %v337
        %s339 = sld [smem:[#allocation2 + $0x18]]
        %v340 = vstv %s339
        %v341 = vmul.f32 %v340, %v173
        %343 = vrot.lane.b32.xlu0 %v341, 125
        %v344 = vpop.permute.xlu0 %343
        %v346 = vadd.f32 %v334, %v344
        %s347 = sld [smem:[#allocation2 + $0x19]]
        %v348 = vstv %s347
        %v349 = vmul.f32 %v348, %v180
        %351 = vrot.lane.b32.xlu0 %v349, 125
        %v352 = vpop.permute.xlu0 %351
        %v354 = vadd.f32 %v338, %v352
        %s355 = sld [smem:[#allocation2 + $0x1a]]
        %v356 = vstv %s355
        %v357 = vmul.f32 %v356, %v187
        %359 = vrot.lane.b32.xlu0 %v357, 125
        %v360 = vpop.permute.xlu0 %359
        %v362 = vadd.f32 %v346, %v360
        %s363 = sld [smem:[#allocation2 + $0x1b]]
        %v364 = vstv %s363
        %v365 = vmul.f32 %v364, %v194
        %367 = vrot.lane.b32.xlu0 %v365, 125
        %v368 = vpop.permute.xlu0 %367
        %v370 = vadd.f32 %v354, %v368
        %s371 = sadd.s32 %s170, 10
        %s372 = scalar_lea.vmem %s169, %s371
        %v373 = vld [vmem:[%s372] sm:$0xff]
        %s374 = sld [smem:[#allocation2 + $0x1c]]
        %v375 = vstv %s374
        %v376 = vmul.f32 %v375, %v373
        %378 = vrot.lane.b32.xlu0 %v376, 3
        %v379 = vpop.permute.xlu0 %378
        %v381 = vadd.f32 %v362, %v379
        %s382 = sadd.s32 %s371, 32
        %s383 = scalar_lea.vmem %s169, %s382
        %v384 = vld [vmem:[%s383] sm:$0xff]
        %s385 = sld [smem:[#allocation2 + $0x1d]]
        %v386 = vstv %s385
        %v387 = vmul.f32 %v386, %v384
        %389 = vrot.lane.b32.xlu0 %v387, 3
        %v390 = vpop.permute.xlu0 %389
        %v392 = vadd.f32 %v370, %v390
        %s393 = sadd.s32 %s371, 64
        %s394 = scalar_lea.vmem %s169, %s393
        %v395 = vld [vmem:[%s394] sm:$0xff]
        %s396 = sld [smem:[#allocation2 + $0x1e]]
        %v397 = vstv %s396
        %v398 = vmul.f32 %v397, %v395
        %400 = vrot.lane.b32.xlu0 %v398, 3
        %v401 = vpop.permute.xlu0 %400
        %v403 = vadd.f32 %v381, %v401
        %s404 = sadd.s32 %s371, 96
        %s405 = scalar_lea.vmem %s169, %s404
        %v406 = vld [vmem:[%s405] sm:$0xff]
        %s407 = sld [smem:[#allocation2 + $0x1f]]
        %v408 = vstv %s407
        %v409 = vmul.f32 %v408, %v406
        %411 = vrot.lane.b32.xlu0 %v409, 3
        %v412 = vpop.permute.xlu0 %411
        %v414 = vadd.f32 %v392, %v412
        %s415 = sld [smem:[#allocation2 + $0x20]]
        %v416 = vstv %s415
        %v417 = vmul.f32 %v416, %v373
        %v418 = vadd.f32 %v403, %v417
        %s419 = sld [smem:[#allocation2 + $0x21]]
        %v420 = vstv %s419
        %v421 = vmul.f32 %v420, %v384
        %v422 = vadd.f32 %v414, %v421
        %s423 = sld [smem:[#allocation2 + $0x22]]
        %v424 = vstv %s423
        %v425 = vmul.f32 %v424, %v395
        %v426 = vadd.f32 %v418, %v425
        %s427 = sld [smem:[#allocation2 + $0x23]]
        %v428 = vstv %s427
        %v429 = vmul.f32 %v428, %v406
        %v430 = vadd.f32 %v422, %v429
        %s431 = sld [smem:[#allocation2 + $0x24]]
        %v432 = vstv %s431
        %v433 = vmul.f32 %v432, %v373
        %435 = vrot.lane.b32.xlu0 %v433, 125
        %v436 = vpop.permute.xlu0 %435
        %v438 = vadd.f32 %v426, %v436
        %s439 = sld [smem:[#allocation2 + $0x25]]
        %v440 = vstv %s439
        %v441 = vmul.f32 %v440, %v384
        %443 = vrot.lane.b32.xlu0 %v441, 125
        %v444 = vpop.permute.xlu0 %443
        %v446 = vadd.f32 %v430, %v444
        %s447 = sld [smem:[#allocation2 + $0x26]]
        %v448 = vstv %s447
        %v449 = vmul.f32 %v448, %v395
        %451 = vrot.lane.b32.xlu0 %v449, 125
        %v452 = vpop.permute.xlu0 %451
        %v454 = vadd.f32 %v438, %v452
        %s455 = sld [smem:[#allocation2 + $0x27]]
        %v456 = vstv %s455
        %v457 = vmul.f32 %v456, %v406
        %459 = vrot.lane.b32.xlu0 %v457, 125
        %v460 = vpop.permute.xlu0 %459
        %v462 = vadd.f32 %v446, %v460
        %s463 = sadd.s32 %s170, 2
        %s464 = scalar_lea.vmem %s169, %s463
        %v465 = vld [vmem:[%s464] sm:$0xff]
        %s466 = sld [smem:[#allocation2 + $0x28]]
        %v467 = vstv %s466
        %v468 = vmul.f32 %v467, %v465
        %470 = vrot.lane.b32.xlu0 %v468, 5
        %v471 = vpop.permute.xlu0 %470
        %v473 = vadd.f32 %v454, %v471
        %s474 = sadd.s32 %s463, 32
        %s475 = scalar_lea.vmem %s169, %s474
        %v476 = vld [vmem:[%s475] sm:$0xff]
        %s477 = sld [smem:[#allocation2 + $0x29]]
        %v478 = vstv %s477
        %v479 = vmul.f32 %v478, %v476
        %481 = vrot.lane.b32.xlu0 %v479, 5
        %v482 = vpop.permute.xlu0 %481
        %v484 = vadd.f32 %v462, %v482
        %s485 = sadd.s32 %s463, 64
        %s486 = scalar_lea.vmem %s169, %s485
        %v487 = vld [vmem:[%s486] sm:$0xff]
        %s488 = sld [smem:[#allocation2 + $0x2a]]
        %v489 = vstv %s488
        %v490 = vmul.f32 %v489, %v487
        %492 = vrot.lane.b32.xlu0 %v490, 5
        %v493 = vpop.permute.xlu0 %492
        %v495 = vadd.f32 %v473, %v493
        %s496 = sadd.s32 %s463, 96
        %s497 = scalar_lea.vmem %s169, %s496
        %v498 = vld [vmem:[%s497] sm:$0xff]
        %s499 = sld [smem:[#allocation2 + $0x2b]]
        %v500 = vstv %s499
        %v501 = vmul.f32 %v500, %v498
        %503 = vrot.lane.b32.xlu0 %v501, 5
        %v504 = vpop.permute.xlu0 %503
        %v506 = vadd.f32 %v484, %v504
        %s507 = sld [smem:[#allocation2 + $0x2c]]
        %v508 = vstv %s507
        %v509 = vmul.f32 %v508, %v465
        %v510 = vadd.f32 %v495, %v509
        %s511 = sld [smem:[#allocation2 + $0x2d]]
        %v512 = vstv %s511
        %v513 = vmul.f32 %v512, %v476
        %v514 = vadd.f32 %v506, %v513
        %s515 = sld [smem:[#allocation2 + $0x2e]]
        %v516 = vstv %s515
        %v517 = vmul.f32 %v516, %v487
        %v518 = vadd.f32 %v510, %v517
        %s519 = sld [smem:[#allocation2 + $0x2f]]
        %v520 = vstv %s519
        %v521 = vmul.f32 %v520, %v498
        %v522 = vadd.f32 %v514, %v521
        %s523 = sld [smem:[#allocation2 + $0x30]]
        %v524 = vstv %s523
        %v525 = vmul.f32 %v524, %v465
        %527 = vrot.lane.b32.xlu0 %v525, 123
        %v528 = vpop.permute.xlu0 %527
        %v530 = vadd.f32 %v518, %v528
        %s531 = sld [smem:[#allocation2 + $0x31]]
        %v532 = vstv %s531
        %v533 = vmul.f32 %v532, %v476
        %535 = vrot.lane.b32.xlu0 %v533, 123
        %v536 = vpop.permute.xlu0 %535
        %v538 = vadd.f32 %v522, %v536
        %s539 = sld [smem:[#allocation2 + $0x32]]
        %v540 = vstv %s539
        %v541 = vmul.f32 %v540, %v487
        %543 = vrot.lane.b32.xlu0 %v541, 123
        %v544 = vpop.permute.xlu0 %543
        %v546 = vadd.f32 %v530, %v544
        %s547 = sld [smem:[#allocation2 + $0x33]]
        %v548 = vstv %s547
        %v549 = vmul.f32 %v548, %v498
        %551 = vrot.lane.b32.xlu0 %v549, 123
        %v552 = vpop.permute.xlu0 %551
        %v554 = vadd.f32 %v538, %v552
        %s555 = sld [smem:[#allocation2 + $0x34]]
        %v556 = vstv %s555
        %v557 = vmul.f32 %v556, %v173
        %559 = vrot.lane.b32.xlu0 %v557, 5
        %v560 = vpop.permute.xlu0 %559
        %v562 = vadd.f32 %v546, %v560
        %s563 = sld [smem:[#allocation2 + $0x35]]
        %v564 = vstv %s563
        %v565 = vmul.f32 %v564, %v180
        %567 = vrot.lane.b32.xlu0 %v565, 5
        %v568 = vpop.permute.xlu0 %567
        %v570 = vadd.f32 %v554, %v568
        %s571 = sld [smem:[#allocation2 + $0x36]]
        %v572 = vstv %s571
        %v573 = vmul.f32 %v572, %v187
        %575 = vrot.lane.b32.xlu0 %v573, 5
        %v576 = vpop.permute.xlu0 %575
        %v578 = vadd.f32 %v562, %v576
        %s579 = sld [smem:[#allocation2 + $0x37]]
        %v580 = vstv %s579
        %v581 = vmul.f32 %v580, %v194
        %583 = vrot.lane.b32.xlu0 %v581, 5
        %v584 = vpop.permute.xlu0 %583
        %v586 = vadd.f32 %v570, %v584
        %s587 = sld [smem:[#allocation2 + $0x38]]
        %v588 = vstv %s587
        %v589 = vmul.f32 %v588, %v173
        %v590 = vadd.f32 %v578, %v589
        %s591 = sld [smem:[#allocation2 + $0x39]]
        %v592 = vstv %s591
        %v593 = vmul.f32 %v592, %v180
        %v594 = vadd.f32 %v586, %v593
        %s595 = sld [smem:[#allocation2 + $0x3a]]
        %v596 = vstv %s595
        %v597 = vmul.f32 %v596, %v187
        %v598 = vadd.f32 %v590, %v597
        %s599 = sld [smem:[#allocation2 + $0x3b]]
        %v600 = vstv %s599
        %v601 = vmul.f32 %v600, %v194
        %v602 = vadd.f32 %v594, %v601
        %s603 = sld [smem:[#allocation2 + $0x3c]]
        %v604 = vstv %s603
        %v605 = vmul.f32 %v604, %v173
        %607 = vrot.lane.b32.xlu0 %v605, 123
        %v608 = vpop.permute.xlu0 %607
        %v610 = vadd.f32 %v598, %v608
        %s611 = sld [smem:[#allocation2 + $0x3d]]
        %v612 = vstv %s611
        %v613 = vmul.f32 %v612, %v180
        %615 = vrot.lane.b32.xlu0 %v613, 123
        %v616 = vpop.permute.xlu0 %615
        %v618 = vadd.f32 %v602, %v616
        %s619 = sld [smem:[#allocation2 + $0x3e]]
        %v620 = vstv %s619
        %v621 = vmul.f32 %v620, %v187
        %623 = vrot.lane.b32.xlu0 %v621, 123
        %v624 = vpop.permute.xlu0 %623
        %v626 = vadd.f32 %v610, %v624
        %s627 = sld [smem:[#allocation2 + $0x3f]]
        %v628 = vstv %s627
        %v629 = vmul.f32 %v628, %v194
        %631 = vrot.lane.b32.xlu0 %v629, 123
        %v632 = vpop.permute.xlu0 %631
        %v634 = vadd.f32 %v618, %v632
        %s635 = sadd.s32 %s170, 12
        %s636 = scalar_lea.vmem %s169, %s635
        %v637 = vld [vmem:[%s636] sm:$0xff]
        %s638 = sld [smem:[#allocation2 + $0x40]]
        %v639 = vstv %s638
        %v640 = vmul.f32 %v639, %v637
        %642 = vrot.lane.b32.xlu0 %v640, 5
        %v643 = vpop.permute.xlu0 %642
        %v645 = vadd.f32 %v626, %v643
        %s646 = sadd.s32 %s635, 32
        %s647 = scalar_lea.vmem %s169, %s646
        %v648 = vld [vmem:[%s647] sm:$0xff]
        %s649 = sld [smem:[#allocation2 + $0x41]]
        %v650 = vstv %s649
        %v651 = vmul.f32 %v650, %v648
        %653 = vrot.lane.b32.xlu0 %v651, 5
        %v654 = vpop.permute.xlu0 %653
        %v656 = vadd.f32 %v634, %v654
        %s657 = sadd.s32 %s635, 64
        %s658 = scalar_lea.vmem %s169, %s657
        %v659 = vld [vmem:[%s658] sm:$0xff]
        %s660 = sld [smem:[#allocation2 + $0x42]]
        %v661 = vstv %s660
        %v662 = vmul.f32 %v661, %v659
        %664 = vrot.lane.b32.xlu0 %v662, 5
        %v665 = vpop.permute.xlu0 %664
        %v667 = vadd.f32 %v645, %v665
        %s668 = sadd.s32 %s635, 96
        %s669 = scalar_lea.vmem %s169, %s668
        %v670 = vld [vmem:[%s669] sm:$0xff]
        %s671 = sld [smem:[#allocation2 + $0x43]]
        %v672 = vstv %s671
        %v673 = vmul.f32 %v672, %v670
        %675 = vrot.lane.b32.xlu0 %v673, 5
        %v676 = vpop.permute.xlu0 %675
        %v678 = vadd.f32 %v656, %v676
        %s679 = sld [smem:[#allocation2 + $0x44]]
        %v680 = vstv %s679
        %v681 = vmul.f32 %v680, %v637
        %v682 = vadd.f32 %v667, %v681
        %s683 = sld [smem:[#allocation2 + $0x45]]
        %v684 = vstv %s683
        %v685 = vmul.f32 %v684, %v648
        %v686 = vadd.f32 %v678, %v685
        %s687 = sld [smem:[#allocation2 + $0x46]]
        %v688 = vstv %s687
        %v689 = vmul.f32 %v688, %v659
        %v690 = vadd.f32 %v682, %v689
        %s691 = sld [smem:[#allocation2 + $0x47]]
        %v692 = vstv %s691
        %v693 = vmul.f32 %v692, %v670
        %v694 = vadd.f32 %v686, %v693
        %s695 = sld [smem:[#allocation2 + $0x48]]
        %v696 = vstv %s695
        %v697 = vmul.f32 %v696, %v637
        %699 = vrot.lane.b32.xlu0 %v697, 123
        %v700 = vpop.permute.xlu0 %699
        %v702 = vadd.f32 %v690, %v700
        %s703 = sld [smem:[#allocation2 + $0x49]]
        %v704 = vstv %s703
        %v705 = vmul.f32 %v704, %v648
        %707 = vrot.lane.b32.xlu0 %v705, 123
        %v708 = vpop.permute.xlu0 %707
        %v710 = vadd.f32 %v694, %v708
        %s711 = sld [smem:[#allocation2 + $0x4a]]
        %v712 = vstv %s711
        %v713 = vmul.f32 %v712, %v659
        %715 = vrot.lane.b32.xlu0 %v713, 123
        %v716 = vpop.permute.xlu0 %715
        %v718 = vadd.f32 %v702, %v716
        %s719 = sld [smem:[#allocation2 + $0x4b]]
        %v720 = vstv %s719
        %v721 = vmul.f32 %v720, %v670
        %723 = vrot.lane.b32.xlu0 %v721, 123
        %v724 = vpop.permute.xlu0 %723
        %v726 = vadd.f32 %v710, %v724
        %s727 = scalar_lea.vmem %s169, %s170
        %v728 = vld [vmem:[%s727] sm:$0xff]
        %s729 = sld [smem:[#allocation2 + $0x4c]]
        %v730 = vstv %s729
        %v731 = vmul.f32 %v730, %v728
        %733 = vrot.lane.b32.xlu0 %v731, 7
        %v734 = vpop.permute.xlu0 %733
        %v736 = vadd.f32 %v718, %v734
        %s737 = sadd.s32 %s170, 32
        %s738 = scalar_lea.vmem %s169, %s737
        %v739 = vld [vmem:[%s738] sm:$0xff]
        %s740 = sld [smem:[#allocation2 + $0x4d]]
        %v741 = vstv %s740
        %v742 = vmul.f32 %v741, %v739
        %744 = vrot.lane.b32.xlu0 %v742, 7
        %v745 = vpop.permute.xlu0 %744
        %v747 = vadd.f32 %v726, %v745
        %s748 = sadd.s32 %s170, 64
        %s749 = scalar_lea.vmem %s169, %s748
        %v750 = vld [vmem:[%s749] sm:$0xff]
        %s751 = sld [smem:[#allocation2 + $0x4e]]
        %v752 = vstv %s751
        %v753 = vmul.f32 %v752, %v750
        %755 = vrot.lane.b32.xlu0 %v753, 7
        %v756 = vpop.permute.xlu0 %755
        %v758 = vadd.f32 %v736, %v756
        %s759 = sadd.s32 %s170, 96
        %s760 = scalar_lea.vmem %s169, %s759
        %v761 = vld [vmem:[%s760] sm:$0xff]
        %s762 = sld [smem:[#allocation2 + $0x4f]]
        %v763 = vstv %s762
        %v764 = vmul.f32 %v763, %v761
        %766 = vrot.lane.b32.xlu0 %v764, 7
        %v767 = vpop.permute.xlu0 %766
        %v769 = vadd.f32 %v747, %v767
        %s770 = sld [smem:[#allocation2 + $0x50]]
        %v771 = vstv %s770
        %v772 = vmul.f32 %v771, %v728
        %v773 = vadd.f32 %v758, %v772
        %s774 = sld [smem:[#allocation2 + $0x51]]
        %v775 = vstv %s774
        %v776 = vmul.f32 %v775, %v739
        %v777 = vadd.f32 %v769, %v776
        %s778 = sld [smem:[#allocation2 + $0x52]]
        %v779 = vstv %s778
        %v780 = vmul.f32 %v779, %v750
        %v781 = vadd.f32 %v773, %v780
        %s782 = sld [smem:[#allocation2 + $0x53]]
        %v783 = vstv %s782
        %v784 = vmul.f32 %v783, %v761
        %v785 = vadd.f32 %v777, %v784
        %s786 = sld [smem:[#allocation2 + $0x54]]
        %v787 = vstv %s786
        %v788 = vmul.f32 %v787, %v728
        %790 = vrot.lane.b32.xlu0 %v788, 121
        %v791 = vpop.permute.xlu0 %790
        %v793 = vadd.f32 %v781, %v791
        %s794 = sld [smem:[#allocation2 + $0x55]]
        %v795 = vstv %s794
        %v796 = vmul.f32 %v795, %v739
        %798 = vrot.lane.b32.xlu0 %v796, 121
        %v799 = vpop.permute.xlu0 %798
        %v801 = vadd.f32 %v785, %v799
        %s802 = sld [smem:[#allocation2 + $0x56]]
        %v803 = vstv %s802
        %v804 = vmul.f32 %v803, %v750
        %806 = vrot.lane.b32.xlu0 %v804, 121
        %v807 = vpop.permute.xlu0 %806
        %v809 = vadd.f32 %v793, %v807
        %s810 = sld [smem:[#allocation2 + $0x57]]
        %v811 = vstv %s810
        %v812 = vmul.f32 %v811, %v761
        %814 = vrot.lane.b32.xlu0 %v812, 121
        %v815 = vpop.permute.xlu0 %814
        %v817 = vadd.f32 %v801, %v815
        %s818 = sld [smem:[#allocation2 + $0x58]]
        %v819 = vstv %s818
        %v820 = vmul.f32 %v819, %v173
        %822 = vrot.lane.b32.xlu0 %v820, 7
        %v823 = vpop.permute.xlu0 %822
        %v825 = vadd.f32 %v809, %v823
        %s826 = sld [smem:[#allocation2 + $0x59]]
        %v827 = vstv %s826
        %v828 = vmul.f32 %v827, %v180
        %830 = vrot.lane.b32.xlu0 %v828, 7
        %v831 = vpop.permute.xlu0 %830
        %v833 = vadd.f32 %v817, %v831
        %s834 = sld [smem:[#allocation2 + $0x5a]]
        %v835 = vstv %s834
        %v836 = vmul.f32 %v835, %v187
        %838 = vrot.lane.b32.xlu0 %v836, 7
        %v839 = vpop.permute.xlu0 %838
        %v841 = vadd.f32 %v825, %v839
        %s842 = sld [smem:[#allocation2 + $0x5b]]
        %v843 = vstv %s842
        %v844 = vmul.f32 %v843, %v194
        %846 = vrot.lane.b32.xlu0 %v844, 7
        %v847 = vpop.permute.xlu0 %846
        %v849 = vadd.f32 %v833, %v847
        %s850 = sld [smem:[#allocation2 + $0x5c]]
        %v851 = vstv %s850
        %v852 = vmul.f32 %v851, %v173
        %v853 = vadd.f32 %v841, %v852
        %s854 = sld [smem:[#allocation2 + $0x5d]]
        %v855 = vstv %s854
        %v856 = vmul.f32 %v855, %v180
        %v857 = vadd.f32 %v849, %v856
        %s858 = sld [smem:[#allocation2 + $0x5e]]
        %v859 = vstv %s858
        %v860 = vmul.f32 %v859, %v187
        %v861 = vadd.f32 %v853, %v860
        %s862 = sld [smem:[#allocation2 + $0x5f]]
        %v863 = vstv %s862
        %v864 = vmul.f32 %v863, %v194
        %v865 = vadd.f32 %v857, %v864
        %s866 = sld [smem:[#allocation2 + $0x60]]
        %v867 = vstv %s866
        %v868 = vmul.f32 %v867, %v173
        %870 = vrot.lane.b32.xlu0 %v868, 121
        %v871 = vpop.permute.xlu0 %870
        %v873 = vadd.f32 %v861, %v871
        %s874 = sld [smem:[#allocation2 + $0x61]]
        %v875 = vstv %s874
        %v876 = vmul.f32 %v875, %v180
        %878 = vrot.lane.b32.xlu0 %v876, 121
        %v879 = vpop.permute.xlu0 %878
        %v881 = vadd.f32 %v865, %v879
        %s882 = sld [smem:[#allocation2 + $0x62]]
        %v883 = vstv %s882
        %v884 = vmul.f32 %v883, %v187
        %886 = vrot.lane.b32.xlu0 %v884, 121
        %v887 = vpop.permute.xlu0 %886
        %v889 = vadd.f32 %v873, %v887
        %s890 = sld [smem:[#allocation2 + $0x63]]
        %v891 = vstv %s890
        %v892 = vmul.f32 %v891, %v194
        %894 = vrot.lane.b32.xlu0 %v892, 121
        %v895 = vpop.permute.xlu0 %894
        %v897 = vadd.f32 %v881, %v895
        %s898 = sadd.s32 %s170, 14
        %s899 = scalar_lea.vmem %s169, %s898
        %v900 = vld [vmem:[%s899] sm:$0xff]
        %s901 = sld [smem:[#allocation2 + $0x64]]
        %v902 = vstv %s901
        %v903 = vmul.f32 %v902, %v900
        %905 = vrot.lane.b32.xlu0 %v903, 7
        %v906 = vpop.permute.xlu0 %905
        %v908 = vadd.f32 %v889, %v906
        %s909 = sadd.s32 %s898, 32
        %s910 = scalar_lea.vmem %s169, %s909
        %v911 = vld [vmem:[%s910] sm:$0xff]
        %s912 = sld [smem:[#allocation2 + $0x65]]
        %v913 = vstv %s912
        %v914 = vmul.f32 %v913, %v911
        %916 = vrot.lane.b32.xlu0 %v914, 7
        %v917 = vpop.permute.xlu0 %916
        %v919 = vadd.f32 %v897, %v917
        %s920 = sadd.s32 %s898, 64
        %s921 = scalar_lea.vmem %s169, %s920
        %v922 = vld [vmem:[%s921] sm:$0xff]
        %s923 = sld [smem:[#allocation2 + $0x66]]
        %v924 = vstv %s923
        %v925 = vmul.f32 %v924, %v922
        %927 = vrot.lane.b32.xlu0 %v925, 7
        %v928 = vpop.permute.xlu0 %927
        %v930 = vadd.f32 %v908, %v928
        %s931 = sadd.s32 %s898, 96
        %s932 = scalar_lea.vmem %s169, %s931
        %v933 = vld [vmem:[%s932] sm:$0xff]
        %s934 = sld [smem:[#allocation2 + $0x67]]
        %v935 = vstv %s934
        %v936 = vmul.f32 %v935, %v933
        %938 = vrot.lane.b32.xlu0 %v936, 7
        %v939 = vpop.permute.xlu0 %938
        %v941 = vadd.f32 %v919, %v939
        %s942 = sld [smem:[#allocation2 + $0x68]]
        %v943 = vstv %s942
        %v944 = vmul.f32 %v943, %v900
        %v945 = vadd.f32 %v930, %v944
        %s946 = sld [smem:[#allocation2 + $0x69]]
        %v947 = vstv %s946
        %v948 = vmul.f32 %v947, %v911
        %v949 = vadd.f32 %v941, %v948
        %s950 = sld [smem:[#allocation2 + $0x6a]]
        %v951 = vstv %s950
        %v952 = vmul.f32 %v951, %v922
        %v953 = vadd.f32 %v945, %v952
        %s954 = sld [smem:[#allocation2 + $0x6b]]
        %v955 = vstv %s954
        %v956 = vmul.f32 %v955, %v933
        %v957 = vadd.f32 %v949, %v956
        %s958 = sld [smem:[#allocation2 + $0x6c]]
        %v959 = vstv %s958
        %v960 = vmul.f32 %v959, %v900
        %962 = vrot.lane.b32.xlu0 %v960, 121
        %v963 = vpop.permute.xlu0 %962
        %v965 = vadd.f32 %v953, %v963
        %s966 = sld [smem:[#allocation2 + $0x6d]]
        %v967 = vstv %s966
        %v968 = vmul.f32 %v967, %v911
        %970 = vrot.lane.b32.xlu0 %v968, 121
        %v971 = vpop.permute.xlu0 %970
        %v973 = vadd.f32 %v957, %v971
        %s974 = sld [smem:[#allocation2 + $0x6e]]
        %v975 = vstv %s974
        %v976 = vmul.f32 %v975, %v922
        %978 = vrot.lane.b32.xlu0 %v976, 121
        %v979 = vpop.permute.xlu0 %978
        %v981 = vadd.f32 %v965, %v979
        %s982 = sld [smem:[#allocation2 + $0x6f]]
        %v983 = vstv %s982
        %v984 = vmul.f32 %v983, %v933
        %986 = vrot.lane.b32.xlu0 %v984, 121
        %v987 = vpop.permute.xlu0 %986
        %v989 = vadd.f32 %v973, %v987
        %v990 = vadd.f32 %v981, %v989
        %s991 = sld [smem:[#allocation2 + $0x70]]
        %v992 = vstv %s991
        %v993 = vadd.f32 %v990, %v992
        %v994 = vxor.u32 %v993, 2147483648
        %v995 = vmul.f32 %v994, 1.442695
        %v996 = vpow.pop %v995
        %v997 = vadd.f32 %v996, 1.0
        %v998 = vrcp.pop %v997
        %v999 = vmul.f32 %v997, %v998
        %v1000 = vsub.f32 1.0, %v999
        %v1001 = vmul.f32 %v998, %v1000
        %v1002 = vadd.f32 %v998, %v1001
        %vm1003 = vweird.f32 %v997
        %vm1004 = vweird.f32 %v998
        %vm1005 = vmor %vm1003, %vm1004
        %v1006 = vsel %vm1005, %v998, %v1002
        %v1007 = vand.u32 2147483647, %v997
        %vm1008 = vcmp.eq.f32.partialorder %v1007, 8.507059e+37
        %v1009 = vand.u32 %v997, 2147483648
        %v1010 = vor.u32 1.1754944e-38, %v1009
        %v1011 = vsel %vm1008, %v1010, %v1006
        %v1012 = vmul.f32 1.0, %v1011
        %1014 = vrot.lane.b32.xlu0 %v1012, 121
        %v1015 = vpop.permute.xlu0 %1014
        %vm1017 = vcmask 130048
        %1018 = vst.msk [vmem:[%s164] sm:$0xff] %vm1017, %v1015
        %s1019 = sand.u32 %s86, 1
        %s1020 = scalar_lea.sflag [#allocation3], %s1019
        %s1021 = sand.u32 %s86, 1
        %s1022 = smul.addr %s1021, 8
        %s1023 = scalar_lea.vmem [#allocation5], %s1022
        // Predicated region
        $region33: #{rfb_s_forward.1} parent=27 // pred_check
          %p1024 = pneg %p96
        $region34: #{rfb_s_forward.1} parent=27 // pred_check_branch
          %1026 = sbr.rel (%p1024) target = $region36
        $region35: #{rfb_s_forward.1} parent=27 // pred_region
          %1028 = vsyncadd %s1020, 0
          %s1029 = smul.addr %s21, 2
          %s1030 = sadd.s32 %s22, %s1029
          %s1031 = smul.addr %s1030, 8
          %s1032 = scalar_lea.hbm %s2, %s1031
          %s1034 = sshll.u32 %s1023, 4
          %s1035 = int_to_ptr.vmem [resolvable:$true] %s1034
          %s1036 = sshll.u32 %s1032, 4
          %s1037 = int_to_ptr.hbm [resolvable:$true] %s1036
          %1039 = dma.vmem_to_hbm [thread:$0]  %s1035, 128, %s1037, %s1020
        $region36: #{rfb_s_forward.1} parent=27 // pred_fallthru
          _
      $region28: #{rfb_s_forward.1} parent=5 // pred_fallthru
        _
      %p1040 = scmp.le.s32.totalorder 2, %s12
      // Predicated region
      $region37: #{rfb_s_forward.1} parent=5 // pred_check
        %p1041 = pneg %p1040
      $region38: #{rfb_s_forward.1} parent=5 // pred_check_branch
        %1043 = sbr.rel (%p1041) target = $region40
      $region39: #{rfb_s_forward.1} parent=5 // pred_region
        %s1044 = ssub.s32 %s12, 2
        // Predicated region
        $region41: #{rfb_s_forward.1} parent=39 // pred_check
          %p1045 = pneg %p102
        $region42: #{rfb_s_forward.1} parent=39 // pred_check_branch
          %1047 = sbr.rel (%p1045) target = $region44
        $region43: #{rfb_s_forward.1} parent=39 // pred_region
          %s1048 = sand.u32 %s87, 1
          %s1049 = scalar_lea.sflag [#allocation3], %s1048
          %s1050 = sand.u32 %s87, 1
          %s1051 = smul.addr %s1050, 8
          %s1052 = scalar_lea.vmem [#allocation5], %s1051
          %1054 = dma.done %s1049, 128
        $region44: #{rfb_s_forward.1} parent=39 // pred_fallthru
          _
      $region40: #{rfb_s_forward.1} parent=5 // pred_fallthru
        _
    $region6: #{rfb_s_forward.1} parent=1 // loop_footer
      %s16 = sadd.s32 1, %s12
    $region7: #{rfb_s_forward.1} parent=1 // loop_footer_branch
      %11 = sbr.rel target = $region3
    $region8: #{rfb_s_forward.1} parent=1 // loop_exit
      _
    %1055 = vsyncpa [#allocation3], 1
    %s1056 = scalar_lea.sflag [#allocation3], 1
    %1057 = vsyncpa %s1056, 1
    %1058 = vsyncpa [#allocation4], 1
    %s1059 = scalar_lea.sflag [#allocation4], 1
    %1060 = vsyncpa %s1059, 1

</llo_original>
